<compile_context>
chip_gen: v6e
topology: v6e:2x2x1
jax: 0.10.0
libtpu: 0.0.40
codegen_flags: <defaults>
</compile_context>

<pallas_src>
import jax
import jax.numpy as jnp
import numpy as np
from jax import lax
from jax.experimental import pallas as pl
from jax.experimental.pallas import tpu as pltpu


def _round_up(n, m):
    return ((n + m - 1) // m) * m


def _pad_to(a, shape):
    return jnp.pad(a, [(0, t - s) for s, t in zip(a.shape, shape)])


# ------------------------------ fused EGL kernel ------------------------------
def _egl_kernel(scal_ref,   # SMEM (2,)  [weekday, vehicles]
                eb_ref,     # SMEM (1,)  edge-summarizer bias
                xr_ref,     # (Nr, E)  embeddings, row-padded (i side)
                xct_ref,    # (E, Nc)  embeddings transposed, col-padded (j side)
                xc_ref,     # (Nc, E)  embeddings, col-padded (j side)
                th_ref,     # (Nr, Nc) 0.5*||xi||*||xj||, 1e30 on diag / padding
                smr_ref,    # (Nr, 1)  stop mask, i side
                smc_ref,    # (1, Nc)  stop mask, j side
                wl_ref,     # (E, Pp)  SAGE lin_l weight (pre-transposed)
                wr_ref,     # (E, Pp)  SAGE lin_r weight (pre-transposed)
                prow_ref,   # (3, Pp)  [lin_l bias ; edge_w left half ; edge_w right half]
                dist_ref,   # (Nr, Nc) dist, bf16
                wcp_ref,    # (Pp, Nc) combiner cols for preferences, bf16
                wce_ref,    # (Nr, Nc) combiner cols for edge summaries, bf16
                wcd_ref,    # (Nc, Nc) combiner cols for dist, bf16
                crow_ref,   # (4, Nc)  [weekday col ; vehicles col ; stop col ; bias (-1e30 pad)]
                out_ref):   # (Nr, Nc) log-softmax output
    f32 = jnp.float32
    bf16 = jnp.bfloat16
    hp = lax.Precision.HIGHEST

    x_r = xr_ref[...]

    # --- cosine-similarity adjacency ---------------------------------------
    # cos(i,j) > 0.5  <=>  <x_i, x_j> > 0.5*||x_i||*||x_j||.  The threshold
    # matrix (incl. the 1e30 diagonal / padding exclusion) is precomputed at
    # init; HIGHEST keeps the hard threshold faithful to the f32 reference.
    dots = jnp.dot(x_r, xct_ref[...], precision=hp, preferred_element_type=f32)   # (Nr, Nc)
    keep = (smr_ref[...] > 0.5) & (smc_ref[...] > 0.5)                             # stop mask
    adj = ((dots > th_ref[...]) & keep).astype(f32)

    # --- SAGEConv mean aggregation ------------------------------------------
    # adj's top NxN block is symmetric (dots[i,j] and dots[j,i] come from the
    # same matmul with identical accumulation order), so the row-sum degree and
    # adj @ x match the reference's adj.T formulation.
    # TODO(synk): accepted risk -- an exact tie at the threshold could in
    # principle break that symmetry for a single pair.
    deg = jnp.sum(adj, axis=1, keepdims=True)                                      # (Nr, 1) lane reduce
    aggr = jnp.dot(adj, xc_ref[...], precision=hp, preferred_element_type=f32)     # (Nr, E)
    aggr = jnp.where(deg > 0, aggr / jnp.maximum(deg, 1.0), 0.0)

    prow = prow_ref[...]
    bl_row, wel_row, wer_row = prow[0:1, :], prow[1:2, :], prow[2:3, :]

    # TODO(synk): the [aggr | x] single-matmul merge from the review is skipped:
    # lane-dim concatenation of E(<128)-wide operands is a Mosaic lowering risk,
    # and the saving is only one extra tiny (K=E) MXU issue.
    pref = (jnp.dot(aggr, wl_ref[...], precision=hp, preferred_element_type=f32) + bl_row
            + jnp.dot(x_r, wr_ref[...], precision=hp, preferred_element_type=f32))  # (Nr, Pp)

    # --- edge summaries: es[i,j] = LeakyReLU(wel.pref_i + wer.pref_j + eb) ----
    sl = jnp.sum(pref * wel_row, axis=1, keepdims=True) + eb_ref[0]                # (Nr, 1) lane reduce
    sr = lax.dot_general(wer_row, pref, (((1,), (1,)), ((), ())),
                         preferred_element_type=f32)                                # (1, Nr) = wer @ pref.T
    es = sl + sr                                                                    # (Nr, Nr)
    es = jnp.where(es >= 0, es, 0.01 * es)                                          # LeakyReLU(0.01)

    # --- combiner: bf16 MXU matmuls accumulated in f32 + rank-1 terms ---------
    crow = crow_ref[...]
    wk_row, wv_row, ws_row, bc_row = crow[0:1, :], crow[1:2, :], crow[2:3, :], crow[3:4, :]
    bias_row = scal_ref[0] * wk_row + scal_ref[1] * wv_row + bc_row                 # (1, Nc)

    out = (jnp.dot(pref.astype(bf16), wcp_ref[...], preferred_element_type=f32)
           + jnp.dot(es.astype(bf16), wce_ref[...], preferred_element_type=f32)
           + jnp.dot(dist_ref[...], wcd_ref[...], preferred_element_type=f32)
           + smr_ref[...] * ws_row                                                  # stop feature (VPU outer)
           + bias_row)                                                              # (Nr, Nc)

    # --- row-wise log-softmax --------------------------------------------------
    # padded columns carry a -1e30 bias, so exp(.) == 0 there and the real
    # columns are unaffected.
    m = jnp.max(out, axis=1, keepdims=True)
    z = out - m
    lse = jnp.log(jnp.sum(jnp.exp(z), axis=1, keepdims=True))
    out_ref[...] = z - lse


# --------------------------- one-time parameter prep ---------------------------
def egl_init(params):
    """Hoisted, parameter-only preprocessing (run once at model init)."""
    f32 = jnp.float32
    bf16 = jnp.bfloat16
    embed = jnp.asarray(params["embed"], f32)
    N, E = embed.shape
    P = params["sage_wl"].shape[0]

    Nr = _round_up(N, 16)    # sublane pad: satisfies f32 (8) and bf16 (16) tiling
    Nc = _round_up(N, 128)   # lane pad: keeps every vreg / store lane-dense
    Pp = _round_up(P, 128)

    x_r = _pad_to(embed, (Nr, E))
    x_c = _pad_to(embed, (Nc, E))
    x_ct = x_c.T                                                   # (E, Nc)

    nrm = jnp.sqrt(jnp.sum(embed * embed, axis=1))
    th = 0.5 * jnp.maximum(nrm[:, None] * nrm[None, :], 1e-8)      # (N, N)
    th = jnp.where(jnp.eye(N, dtype=bool), 1e30, th)               # no self-loops
    thresh = jnp.full((Nr, Nc), 1e30, f32).at[:N, :N].set(th)      # padding never connects

    wl_t = _pad_to(jnp.asarray(params["sage_wl"], f32).T, (E, Pp))
    wr_t = _pad_to(jnp.asarray(params["sage_wr"], f32).T, (E, Pp))

    edge_w = jnp.asarray(params["edge_w"], f32).reshape(2 * P)
    prow = jnp.zeros((3, Pp), f32)
    prow = prow.at[0, :P].set(jnp.asarray(params["sage_bl"], f32))
    prow = prow.at[1, :P].set(edge_w[:P])                          # left half  -> s_left
    prow = prow.at[2, :P].set(edge_w[P:])                          # right half -> s_right
    eb = jnp.asarray(params["edge_b"], f32).reshape(1)

    wc = jnp.asarray(params["comb_w"], f32)                        # (N, P + 2N + 3)
    wcp = _pad_to(wc[:, :P].T, (Pp, Nc)).astype(bf16)
    wce = _pad_to(wc[:, P:P + N].T, (Nr, Nc)).astype(bf16)         # es has only Nr columns
    wcd = _pad_to(wc[:, P + N:P + 2 * N].T, (Nc, Nc)).astype(bf16)
    wcs = wc[:, P + 2 * N:].T                                      # (3, N): weekday, vehicles, stop
    crow = jnp.zeros((4, Nc), f32)
    crow = crow.at[0, :N].set(wcs[0])
    crow = crow.at[1, :N].set(wcs[1])
    crow = crow.at[2, :N].set(wcs[2])
    crow = crow.at[3, :].set(jnp.full((Nc,), -1e30, f32).at[:N].set(
        jnp.asarray(params["comb_b"], f32)))

    return dict(x_r=x_r, x_ct=x_ct, x_c=x_c, thresh=thresh, wl_t=wl_t, wr_t=wr_t,
                prow=prow, eb=eb, wcp=wcp, wce=wce, wcd=wcd, crow=crow)


# ----------------------------------- forward -----------------------------------
@jax.jit
def egl_forward(prep, dist, stop_mask, weekday, vehicles):
    """Per-call EGL forward.  Only per-call inputs (dist, stop_mask, scalars)
    touch XLA glue here; everything parameter-derived comes from egl_init."""
    f32 = jnp.float32
    N = dist.shape[0]
    Nr, Nc = prep["thresh"].shape
    Pp = prep["wcp"].shape[0]
    E = prep["x_c"].shape[1]

    dist_p = _pad_to(jnp.asarray(dist, f32), (Nr, Nc)).astype(jnp.bfloat16)
    sm = jnp.asarray(stop_mask, f32).reshape(N, 1)
    sm_r = _pad_to(sm, (Nr, 1))
    sm_c = _pad_to(sm.reshape(1, N), (1, Nc))
    scalars = jnp.stack([jnp.asarray(weekday, f32), jnp.asarray(vehicles, f32)])

    smem = pl.BlockSpec(memory_space=pltpu.MemorySpace.SMEM)
    vmem = pl.BlockSpec(memory_space=pltpu.MemorySpace.VMEM)

    flops = (2 * Nr * Nc * E                  # dots
             + 2 * Nr * Nc * E                # mean aggregation
             + 4 * Nr * E * Pp                # SAGE projections
             + 4 * Nr * Pp                    # s_left / s_right
             + 2 * Nr * Nc * (Pp + Nr + Nc))  # combiner
    bytes_accessed = (4 * (3 * Nr * Nc + Nr * E + 2 * Nc * E + 7 * Pp + 5 * Nc)
                      + 2 * (2 * Nr * Nc + Pp * Nc + Nc * Nc))

    out_pad = pl.pallas_call(
        _egl_kernel,
        out_shape=jax.ShapeDtypeStruct((Nr, Nc), f32),
        in_specs=[smem, smem] + [vmem] * 14,
        out_specs=vmem,
        compiler_params=pltpu.CompilerParams(
            # No-op at today's sizes (<1 MiB resident); kept explicit so the
            # budget is visible if nnodes ever scales (v7x: 64 MiB VMEM / core).
            vmem_limit_bytes=48 * 1024 * 1024),
        cost_estimate=pl.CostEstimate(flops=int(flops),
                                      transcendentals=int(Nr * Nc),
                                      bytes_accessed=int(bytes_accessed)),
    )(scalars, prep["eb"], prep["x_r"], prep["x_ct"], prep["x_c"], prep["thresh"],
      sm_r, sm_c, prep["wl_t"], prep["wr_t"], prep["prow"], dist_p,
      prep["wcp"], prep["wce"], prep["wcd"], prep["crow"])

    return out_pad[:N, :N]


# ----------------------------- pure-JAX reference -----------------------------
def egl_reference(params, dist, stop_mask, weekday, vehicles):
    """Pure-JAX re-statement of the PyTorch forward (for validation)."""
    hp = lax.Precision.HIGHEST
    x = params["embed"]
    N = x.shape[0]
    P = params["sage_wl"].shape[0]
    nrm = jnp.sqrt(jnp.sum(x * x, axis=1, keepdims=True))
    cos = jnp.dot(x, x.T, precision=hp) / jnp.maximum(nrm * nrm.T, 1e-8)
    cos = cos * (1.0 - jnp.eye(N))
    cos = cos * (stop_mask @ stop_mask.T)
    adj = (cos > 0.5).astype(jnp.float32)
    deg = adj.sum(axis=0)[:, None]
    aggr = jnp.dot(adj.T, x, precision=hp)
    aggr = jnp.where(deg > 0, aggr / jnp.maximum(deg, 1.0), 0.0)
    pref = (jnp.dot(aggr, params["sage_wl"].T, precision=hp) + params["sage_bl"]
            + jnp.dot(x, params["sage_wr"].T, precision=hp))
    i = jnp.repeat(jnp.arange(N), N)
    j = jnp.tile(jnp.arange(N), N)
    edge_rep = jnp.concatenate([pref[i], pref[j]], axis=1)
    es = jnp.dot(edge_rep, params["edge_w"].T, precision=hp) + params["edge_b"]
    es = jnp.where(es >= 0, es, 0.01 * es).reshape(N, N)
    wk_feat = jnp.full((N, 1), weekday, jnp.float32)
    veh_feat = jnp.full((N, 1), vehicles, jnp.float32)
    combined = jnp.concatenate([pref, es, dist, wk_feat, veh_feat, stop_mask], axis=1)
    out = jnp.dot(combined, params["comb_w"].T, precision=hp) + params["comb_b"]
    return jax.nn.log_softmax(out, axis=1)


if __name__ == "__main__":
    # Small, module-consistent sizes (real module: nnodes=74, E=12, P=32).
    N = 18   # nnodes (not a multiple of 8/16 -> exercises row padding, Nr=32, Nc=128)
    E = 8    # stop_embedding_size
    P = 16   # preference_dim
    L = 2 * N + 3 + P  # combiner input length

    key = jax.random.PRNGKey(0)
    ks = jax.random.split(key, 10)
    params = {
        "embed":   jax.random.normal(ks[0], (N, E), jnp.float32),
        "sage_wl": jax.random.normal(ks[1], (P, E), jnp.float32) * 0.3,
        "sage_bl": jax.random.normal(ks[2], (P,), jnp.float32) * 0.1,
        "sage_wr": jax.random.normal(ks[3], (P, E), jnp.float32) * 0.3,
        "edge_w":  jax.random.normal(ks[4], (1, 2 * P), jnp.float32) * 0.3,
        "edge_b":  jax.random.normal(ks[5], (1,), jnp.float32) * 0.1,
        "comb_w":  jax.random.normal(ks[6], (N, L), jnp.float32) * 0.1,
        "comb_b":  jax.random.normal(ks[7], (N,), jnp.float32) * 0.1,
    }

    dist = jax.random.uniform(ks[8], (N, N), jnp.float32)
    stops = jnp.array([0, 2, 3, 5, 7, 8, 11, 13, 16], jnp.int32)
    stop_mask = jnp.zeros((N, 1), jnp.float32).at[stops, 0].set(1.0)
    weekday = 3.0
    vehicles = 5.0

    prep = egl_init(params)                       # one-time parameter preprocessing
    out = egl_forward(prep, dist, stop_mask, weekday, vehicles)
    out = jax.block_until_ready(out)

    ref = egl_reference(params, dist, stop_mask, weekday, vehicles)
    assert out.shape == (N, N)
    assert np.all(np.isfinite(np.asarray(out)))
    # bf16 combiner matmuls -> slightly looser tolerance than pure f32
    assert np.allclose(np.asarray(out), np.asarray(ref), atol=2e-2, rtol=2e-2), (
        "kernel/reference mismatch")
    print("KERNEL_OK")
</pallas_src>

<mosaic_0001>
module attributes {stable_mosaic.version = 11 : i64} {
  func.func @_egl_kernel(%arg0: memref<2xf32, #tpu.memory_space<smem>>, %arg1: memref<1xf32, #tpu.memory_space<smem>>, %arg2: memref<32x8xf32, #tpu.memory_space<vmem>>, %arg3: memref<8x128xf32, #tpu.memory_space<vmem>>, %arg4: memref<128x8xf32, #tpu.memory_space<vmem>>, %arg5: memref<32x128xf32, #tpu.memory_space<vmem>>, %arg6: memref<32x1xf32, #tpu.memory_space<vmem>>, %arg7: memref<1x128xf32, #tpu.memory_space<vmem>>, %arg8: memref<8x128xf32, #tpu.memory_space<vmem>>, %arg9: memref<8x128xf32, #tpu.memory_space<vmem>>, %arg10: memref<3x128xf32, #tpu.memory_space<vmem>>, %arg11: memref<32x128xbf16, #tpu.memory_space<vmem>>, %arg12: memref<128x128xbf16, #tpu.memory_space<vmem>>, %arg13: memref<32x128xbf16, #tpu.memory_space<vmem>>, %arg14: memref<128x128xbf16, #tpu.memory_space<vmem>>, %arg15: memref<4x128xf32, #tpu.memory_space<vmem>>, %arg16: memref<32x128xf32, #tpu.memory_space<vmem>>) attributes {dimension_semantics = [], scalar_prefetch = 0 : i64, scratch_operands = 0 : i64, tpu.core_type = #tpu.core_type<tc>} {
    %c0 = arith.constant 0 : index
    %c0_0 = arith.constant 0 : index
    %0 = vector.load %arg2[%c0, %c0_0] : memref<32x8xf32, #tpu.memory_space<vmem>>, vector<32x8xf32>
    %c0_1 = arith.constant 0 : index
    %c0_2 = arith.constant 0 : index
    %1 = vector.load %arg3[%c0_1, %c0_2] : memref<8x128xf32, #tpu.memory_space<vmem>>, vector<8x128xf32>
    %cst = arith.constant dense<0.000000e+00> : vector<32x128xf32>
    %2 = tpu.matmul %0, %1, %cst {dimension_numbers = #tpu.dot_dimension_numbers<[1], [0], [0], [1], [0, 0, 1, 1], [], []>, precision = #tpu.contract_precision<fp32>} : vector<32x8xf32>, vector<8x128xf32>, vector<32x128xf32> -> vector<32x128xf32>
    %c0_3 = arith.constant 0 : index
    %c0_4 = arith.constant 0 : index
    %3 = vector.load %arg6[%c0_3, %c0_4] : memref<32x1xf32, #tpu.memory_space<vmem>>, vector<32x1xf32>
    %cst_5 = arith.constant 5.000000e-01 : f32
    %4 = vector.broadcast %cst_5 : f32 to vector<32x1xf32>
    %5 = arith.cmpf ogt, %3, %4 : vector<32x1xf32>
    %c0_6 = arith.constant 0 : index
    %c0_7 = arith.constant 0 : index
    %6 = vector.load %arg7[%c0_6, %c0_7] : memref<1x128xf32, #tpu.memory_space<vmem>>, vector<1x128xf32>
    %cst_8 = arith.constant 5.000000e-01 : f32
    %7 = vector.broadcast %cst_8 : f32 to vector<1x128xf32>
    %8 = arith.cmpf ogt, %6, %7 : vector<1x128xf32>
    %9 = vector.broadcast %5 : vector<32x1xi1> to vector<32x128xi1>
    %10 = vector.broadcast %8 : vector<1x128xi1> to vector<32x128xi1>
    %11 = arith.andi %9, %10 : vector<32x128xi1>
    %c0_9 = arith.constant 0 : index
    %c0_10 = arith.constant 0 : index
    %12 = vector.load %arg5[%c0_9, %c0_10] : memref<32x128xf32, #tpu.memory_space<vmem>>, vector<32x128xf32>
    %13 = arith.cmpf ogt, %2, %12 : vector<32x128xf32>
    %14 = arith.andi %13, %11 : vector<32x128xi1>
    %15 = arith.extui %14 : vector<32x128xi1> to vector<32x128xi32>
    %16 = arith.sitofp %15 : vector<32x128xi32> to vector<32x128xf32>
    %cst_11 = arith.constant dense<0.000000e+00> : vector<32xf32>
    %17 = vector.multi_reduction <add>, %16, %cst_11 [1] : vector<32x128xf32> to vector<32xf32>
    %18 = vector.shape_cast %17 : vector<32xf32> to vector<32x1xf32>
    %c0_12 = arith.constant 0 : index
    %c0_13 = arith.constant 0 : index
    %19 = vector.load %arg4[%c0_12, %c0_13] : memref<128x8xf32, #tpu.memory_space<vmem>>, vector<128x8xf32>
    %cst_14 = arith.constant dense<0.000000e+00> : vector<32x8xf32>
    %20 = tpu.matmul %16, %19, %cst_14 {dimension_numbers = #tpu.dot_dimension_numbers<[1], [0], [0], [1], [0, 0, 1, 1], [], []>, precision = #tpu.contract_precision<fp32>} : vector<32x128xf32>, vector<128x8xf32>, vector<32x8xf32> -> vector<32x8xf32>
    %cst_15 = arith.constant 0.000000e+00 : f32
    %21 = vector.broadcast %cst_15 : f32 to vector<32x1xf32>
    %22 = arith.cmpf ogt, %18, %21 : vector<32x1xf32>
    %cst_16 = arith.constant 1.000000e+00 : f32
    %23 = vector.broadcast %cst_16 : f32 to vector<32x1xf32>
    %24 = arith.maximumf %18, %23 : vector<32x1xf32>
    %25 = vector.broadcast %24 : vector<32x1xf32> to vector<32x8xf32>
    %26 = arith.divf %20, %25 : vector<32x8xf32>
    %cst_17 = arith.constant 0.000000e+00 : f32
    %27 = vector.shape_cast %22 : vector<32x1xi1> to vector<32x1xi1>
    %28 = vector.broadcast %27 : vector<32x1xi1> to vector<32x8xi1>
    %29 = vector.broadcast %cst_17 : f32 to vector<32x8xf32>
    %30 = arith.select %28, %26, %29 : vector<32x8xi1>, vector<32x8xf32>
    %c0_18 = arith.constant 0 : index
    %c0_19 = arith.constant 0 : index
    %31 = vector.load %arg10[%c0_18, %c0_19] : memref<3x128xf32, #tpu.memory_space<vmem>>, vector<3x128xf32>
    %32 = vector.extract_strided_slice %31 {offsets = [0, 0], sizes = [1, 128], strides = [1, 1]} : vector<3x128xf32> to vector<1x128xf32>
    %33 = vector.extract_strided_slice %31 {offsets = [1, 0], sizes = [1, 128], strides = [1, 1]} : vector<3x128xf32> to vector<1x128xf32>
    %34 = vector.extract_strided_slice %31 {offsets = [2, 0], sizes = [1, 128], strides = [1, 1]} : vector<3x128xf32> to vector<1x128xf32>
    %c0_20 = arith.constant 0 : index
    %c0_21 = arith.constant 0 : index
    %35 = vector.load %arg8[%c0_20, %c0_21] : memref<8x128xf32, #tpu.memory_space<vmem>>, vector<8x128xf32>
    %cst_22 = arith.constant dense<0.000000e+00> : vector<32x128xf32>
    %36 = tpu.matmul %30, %35, %cst_22 {dimension_numbers = #tpu.dot_dimension_numbers<[1], [0], [0], [1], [0, 0, 1, 1], [], []>, precision = #tpu.contract_precision<fp32>} : vector<32x8xf32>, vector<8x128xf32>, vector<32x128xf32> -> vector<32x128xf32>
    %37 = vector.broadcast %32 : vector<1x128xf32> to vector<32x128xf32>
    %38 = arith.addf %36, %37 : vector<32x128xf32>
    %c0_23 = arith.constant 0 : index
    %c0_24 = arith.constant 0 : index
    %39 = vector.load %arg9[%c0_23, %c0_24] : memref<8x128xf32, #tpu.memory_space<vmem>>, vector<8x128xf32>
    %cst_25 = arith.constant dense<0.000000e+00> : vector<32x128xf32>
    %40 = tpu.matmul %0, %39, %cst_25 {dimension_numbers = #tpu.dot_dimension_numbers<[1], [0], [0], [1], [0, 0, 1, 1], [], []>, precision = #tpu.contract_precision<fp32>} : vector<32x8xf32>, vector<8x128xf32>, vector<32x128xf32> -> vector<32x128xf32>
    %41 = arith.addf %38, %40 : vector<32x128xf32>
    %42 = vector.broadcast %33 : vector<1x128xf32> to vector<32x128xf32>
    %43 = arith.mulf %41, %42 : vector<32x128xf32>
    %cst_26 = arith.constant dense<0.000000e+00> : vector<32xf32>
    %44 = vector.multi_reduction <add>, %43, %cst_26 [1] : vector<32x128xf32> to vector<32xf32>
    %45 = vector.shape_cast %44 : vector<32xf32> to vector<32x1xf32>
    %c0_27 = arith.constant 0 : index
    %46 = memref.load %arg1[%c0_27] : memref<1xf32, #tpu.memory_space<smem>>
    %47 = vector.broadcast %46 : f32 to vector<32x1xf32>
    %48 = arith.addf %45, %47 : vector<32x1xf32>
    %cst_28 = arith.constant dense<0.000000e+00> : vector<1x32xf32>
    %49 = tpu.matmul %34, %41, %cst_28 {dimension_numbers = #tpu.dot_dimension_numbers<[1], [1], [0], [0], [0, 0, 1, 0], [], []>} : vector<1x128xf32>, vector<32x128xf32>, vector<1x32xf32> -> vector<1x32xf32>
    %50 = vector.broadcast %48 : vector<32x1xf32> to vector<32x32xf32>
    %51 = vector.broadcast %49 : vector<1x32xf32> to vector<32x32xf32>
    %52 = arith.addf %50, %51 : vector<32x32xf32>
    %cst_29 = arith.constant 0.000000e+00 : f32
    %53 = vector.broadcast %cst_29 : f32 to vector<32x32xf32>
    %54 = arith.cmpf oge, %52, %53 : vector<32x32xf32>
    %cst_30 = arith.constant 0.00999999977 : f32
    %55 = vector.broadcast %cst_30 : f32 to vector<32x32xf32>
    %56 = arith.mulf %55, %52 : vector<32x32xf32>
    %57 = arith.select %54, %52, %56 : vector<32x32xi1>, vector<32x32xf32>
    %c0_31 = arith.constant 0 : index
    %c0_32 = arith.constant 0 : index
    %58 = vector.load %arg15[%c0_31, %c0_32] : memref<4x128xf32, #tpu.memory_space<vmem>>, vector<4x128xf32>
    %59 = vector.extract_strided_slice %58 {offsets = [0, 0], sizes = [1, 128], strides = [1, 1]} : vector<4x128xf32> to vector<1x128xf32>
    %60 = vector.extract_strided_slice %58 {offsets = [1, 0], sizes = [1, 128], strides = [1, 1]} : vector<4x128xf32> to vector<1x128xf32>
    %61 = vector.extract_strided_slice %58 {offsets = [2, 0], sizes = [1, 128], strides = [1, 1]} : vector<4x128xf32> to vector<1x128xf32>
    %62 = vector.extract_strided_slice %58 {offsets = [3, 0], sizes = [1, 128], strides = [1, 1]} : vector<4x128xf32> to vector<1x128xf32>
    %c0_33 = arith.constant 0 : index
    %63 = memref.load %arg0[%c0_33] : memref<2xf32, #tpu.memory_space<smem>>
    %64 = vector.broadcast %63 : f32 to vector<1x128xf32>
    %65 = arith.mulf %64, %59 : vector<1x128xf32>
    %c1 = arith.constant 1 : index
    %66 = memref.load %arg0[%c1] : memref<2xf32, #tpu.memory_space<smem>>
    %67 = vector.broadcast %66 : f32 to vector<1x128xf32>
    %68 = arith.mulf %67, %60 : vector<1x128xf32>
    %69 = arith.addf %65, %68 : vector<1x128xf32>
    %70 = arith.addf %69, %62 : vector<1x128xf32>
    %71 = arith.truncf %41 : vector<32x128xf32> to vector<32x128xbf16>
    %c0_34 = arith.constant 0 : index
    %c0_35 = arith.constant 0 : index
    %72 = vector.load %arg12[%c0_34, %c0_35] : memref<128x128xbf16, #tpu.memory_space<vmem>>, vector<128x128xbf16>
    %cst_36 = arith.constant dense<0.000000e+00> : vector<32x128xf32>
    %73 = tpu.matmul %71, %72, %cst_36 {dimension_numbers = #tpu.dot_dimension_numbers<[1], [0], [0], [1], [0, 0, 1, 1], [], []>} : vector<32x128xbf16>, vector<128x128xbf16>, vector<32x128xf32> -> vector<32x128xf32>
    %74 = arith.truncf %57 : vector<32x32xf32> to vector<32x32xbf16>
    %c0_37 = arith.constant 0 : index
    %c0_38 = arith.constant 0 : index
    %75 = vector.load %arg13[%c0_37, %c0_38] : memref<32x128xbf16, #tpu.memory_space<vmem>>, vector<32x128xbf16>
    %cst_39 = arith.constant dense<0.000000e+00> : vector<32x128xf32>
    %76 = tpu.matmul %74, %75, %cst_39 {dimension_numbers = #tpu.dot_dimension_numbers<[1], [0], [0], [1], [0, 0, 1, 1], [], []>} : vector<32x32xbf16>, vector<32x128xbf16>, vector<32x128xf32> -> vector<32x128xf32>
    %77 = arith.addf %73, %76 : vector<32x128xf32>
    %c0_40 = arith.constant 0 : index
    %c0_41 = arith.constant 0 : index
    %78 = vector.load %arg11[%c0_40, %c0_41] : memref<32x128xbf16, #tpu.memory_space<vmem>>, vector<32x128xbf16>
    %c0_42 = arith.constant 0 : index
    %c0_43 = arith.constant 0 : index
    %79 = vector.load %arg14[%c0_42, %c0_43] : memref<128x128xbf16, #tpu.memory_space<vmem>>, vector<128x128xbf16>
    %cst_44 = arith.constant dense<0.000000e+00> : vector<32x128xf32>
    %80 = tpu.matmul %78, %79, %cst_44 {dimension_numbers = #tpu.dot_dimension_numbers<[1], [0], [0], [1], [0, 0, 1, 1], [], []>} : vector<32x128xbf16>, vector<128x128xbf16>, vector<32x128xf32> -> vector<32x128xf32>
    %81 = arith.addf %77, %80 : vector<32x128xf32>
    %c0_45 = arith.constant 0 : index
    %c0_46 = arith.constant 0 : index
    %82 = vector.load %arg6[%c0_45, %c0_46] : memref<32x1xf32, #tpu.memory_space<vmem>>, vector<32x1xf32>
    %83 = vector.broadcast %82 : vector<32x1xf32> to vector<32x128xf32>
    %84 = vector.broadcast %61 : vector<1x128xf32> to vector<32x128xf32>
    %85 = arith.mulf %83, %84 : vector<32x128xf32>
    %86 = arith.addf %81, %85 : vector<32x128xf32>
    %87 = vector.broadcast %70 : vector<1x128xf32> to vector<32x128xf32>
    %88 = arith.addf %86, %87 : vector<32x128xf32>
    %cst_47 = arith.constant dense<0xFF800000> : vector<32xf32>
    %89 = vector.multi_reduction <maximumf>, %88, %cst_47 [1] : vector<32x128xf32> to vector<32xf32>
    %90 = vector.shape_cast %89 : vector<32xf32> to vector<32x1xf32>
    %91 = vector.broadcast %90 : vector<32x1xf32> to vector<32x128xf32>
    %92 = arith.subf %88, %91 : vector<32x128xf32>
    %93 = math.exp %92 : vector<32x128xf32>
    %cst_48 = arith.constant dense<0.000000e+00> : vector<32xf32>
    %94 = vector.multi_reduction <add>, %93, %cst_48 [1] : vector<32x128xf32> to vector<32xf32>
    %95 = vector.shape_cast %94 : vector<32xf32> to vector<32x1xf32>
    %96 = math.log %95 : vector<32x1xf32>
    %97 = vector.broadcast %96 : vector<32x1xf32> to vector<32x128xf32>
    %98 = arith.subf %92, %97 : vector<32x128xf32>
    %c0_49 = arith.constant 0 : index
    %c0_50 = arith.constant 0 : index
    %99 = vector.load %arg16[%c0_49, %c0_50] : memref<32x128xf32, #tpu.memory_space<vmem>>, vector<32x128xf32>
    tpu.vector_store %arg16[%c0_49, %c0_50], %98 {strides = array<i32>} : memref<32x128xf32, #tpu.memory_space<vmem>>, vector<32x128xf32>,
    return
  }
}

</mosaic_0001>

<llo_original>
// kernel: egl_forward.1
$region0: #{egl_forward.1}
  #allocation0 [shape = 'u32[]', space=smem, size = 0x4, offset = 0x4, fixed_abs, tag = 'smem constant byte address 0x4 - core index']
  #allocation1 [shape = 'u32[144,128]{1,0:T(1,128)}', space=vmem, size = 0x12000, scoped, tag = 'internal scratch']
  #allocation2 [shape = 'f32[1]{0:T(128)S(6)}', space=smem, size = 0x200, scoped, tag = 'scoped memory for egl_forward.1']
  %s0 = inlined_call_operand.vmem [shape: f32[2], index: 0, kind: input, shape index: {}]
  %s1 = inlined_call_operand.<no memory space> [shape: f32[1], index: 1, kind: input, shape index: {}]
  %s2 = inlined_call_operand.vmem [shape: f32[32,8], index: 2, kind: input, shape index: {}]
  %s3 = inlined_call_operand.vmem [shape: f32[8,128], index: 3, kind: input, shape index: {}]
  %s4 = inlined_call_operand.vmem [shape: f32[128,8], index: 4, kind: input, shape index: {}]
  %s5 = inlined_call_operand.vmem [shape: f32[32,128], index: 5, kind: input, shape index: {}]
  %s6 = inlined_call_operand.vmem [shape: f32[32,1], index: 6, kind: input, shape index: {}]
  %s7 = inlined_call_operand.vmem [shape: f32[1,128], index: 7, kind: input, shape index: {}]
  %s8 = inlined_call_operand.vmem [shape: f32[8,128], index: 8, kind: input, shape index: {}]
  %s9 = inlined_call_operand.vmem [shape: f32[8,128], index: 9, kind: input, shape index: {}]
  %s10 = inlined_call_operand.vmem [shape: f32[3,128], index: 10, kind: input, shape index: {}]
  %s11 = inlined_call_operand.vmem [shape: bf16[32,128], index: 11, kind: input, shape index: {}]
  %s12 = inlined_call_operand.vmem [shape: bf16[128,128], index: 12, kind: input, shape index: {}]
  %s13 = inlined_call_operand.vmem [shape: bf16[32,128], index: 13, kind: input, shape index: {}]
  %s14 = inlined_call_operand.vmem [shape: bf16[128,128], index: 14, kind: input, shape index: {}]
  %s15 = inlined_call_operand.vmem [shape: f32[4,128], index: 15, kind: input, shape index: {}]
  %s16 = inlined_call_operand.vmem [shape: f32[32,128], index: 16, kind: output, shape index: {}]
  %s17 = sld [smem:[#allocation0]]
  $region78: #{egl_forward.1} parent=0
    _
  %s19 = ssub.s32 1, %s17
  %s20 = scalar_select 0, %s19, %s17
  %21 = sst [smem:[#allocation2]] %s1
  $region1: #{egl_forward.1} parent=0
    #allocation3 [shape = 'u8[512]{0}', space=smem, size = 0x200, scoped, tag = 'input window, operand 0, single buffered']
    #allocation4 [shape = 's32[1]{0}', space=sflag, size = 0x4, scoped, tag = 'scoped memory for egl_forward.1']
    %22 = vsyncpa [#allocation4], 0
    // Predicated region
    $region2: #{egl_forward.1} parent=1 // pred_check
      _
    $region3: #{egl_forward.1} parent=1 // pred_check_branch
      %24 = sbr.rel (0) target = $region5
    $region4: #{egl_forward.1} parent=1 // pred_region
      %s26 = ssub.s32 16, 16
      %27 = vsyncadd [#allocation4], %s26
      %s29 = sshll.u32 %s0, 4
      %s30 = int_to_ptr.vmem [resolvable:$true] %s29
      %32 = dma.vmem_to_smem %s30, 16, [#allocation3], [#allocation4]
    $region5: #{egl_forward.1} parent=1 // pred_fallthru
      _
    // Predicated region
    $region6: #{egl_forward.1} parent=1 // pred_check
      _
    $region7: #{egl_forward.1} parent=1 // pred_check_branch
      %34 = sbr.rel (0) target = $region9
    $region8: #{egl_forward.1} parent=1 // pred_region
      _
    $region9: #{egl_forward.1} parent=1 // pred_fallthru
      _
    // Predicated region
    $region10: #{egl_forward.1} parent=1 // pred_check
      _
    $region11: #{egl_forward.1} parent=1 // pred_check_branch
      %36 = sbr.rel (0) target = $region13
    $region12: #{egl_forward.1} parent=1 // pred_region
      _
    $region13: #{egl_forward.1} parent=1 // pred_fallthru
      _
    // Predicated region
    $region14: #{egl_forward.1} parent=1 // pred_check
      _
    $region15: #{egl_forward.1} parent=1 // pred_check_branch
      %38 = sbr.rel (0) target = $region17
    $region16: #{egl_forward.1} parent=1 // pred_region
      _
    $region17: #{egl_forward.1} parent=1 // pred_fallthru
      _
    // Predicated region
    $region18: #{egl_forward.1} parent=1 // pred_check
      _
    $region19: #{egl_forward.1} parent=1 // pred_check_branch
      %40 = sbr.rel (0) target = $region21
    $region20: #{egl_forward.1} parent=1 // pred_region
      _
    $region21: #{egl_forward.1} parent=1 // pred_fallthru
      _
    // Predicated region
    $region22: #{egl_forward.1} parent=1 // pred_check
      _
    $region23: #{egl_forward.1} parent=1 // pred_check_branch
      %42 = sbr.rel (0) target = $region25
    $region24: #{egl_forward.1} parent=1 // pred_region
      _
    $region25: #{egl_forward.1} parent=1 // pred_fallthru
      _
    // Predicated region
    $region26: #{egl_forward.1} parent=1 // pred_check
      _
    $region27: #{egl_forward.1} parent=1 // pred_check_branch
      %44 = sbr.rel (0) target = $region29
    $region28: #{egl_forward.1} parent=1 // pred_region
      _
    $region29: #{egl_forward.1} parent=1 // pred_fallthru
      _
    // Predicated region
    $region30: #{egl_forward.1} parent=1 // pred_check
      _
    $region31: #{egl_forward.1} parent=1 // pred_check_branch
      %46 = sbr.rel (0) target = $region33
    $region32: #{egl_forward.1} parent=1 // pred_region
      _
    $region33: #{egl_forward.1} parent=1 // pred_fallthru
      _
    // Predicated region
    $region34: #{egl_forward.1} parent=1 // pred_check
      _
    $region35: #{egl_forward.1} parent=1 // pred_check_branch
      %48 = sbr.rel (0) target = $region37
    $region36: #{egl_forward.1} parent=1 // pred_region
      _
    $region37: #{egl_forward.1} parent=1 // pred_fallthru
      _
    // Predicated region
    $region38: #{egl_forward.1} parent=1 // pred_check
      _
    $region39: #{egl_forward.1} parent=1 // pred_check_branch
      %50 = sbr.rel (0) target = $region41
    $region40: #{egl_forward.1} parent=1 // pred_region
      _
    $region41: #{egl_forward.1} parent=1 // pred_fallthru
      _
    // Predicated region
    $region42: #{egl_forward.1} parent=1 // pred_check
      _
    $region43: #{egl_forward.1} parent=1 // pred_check_branch
      %52 = sbr.rel (0) target = $region45
    $region44: #{egl_forward.1} parent=1 // pred_region
      _
    $region45: #{egl_forward.1} parent=1 // pred_fallthru
      _
    // Predicated region
    $region46: #{egl_forward.1} parent=1 // pred_check
      _
    $region47: #{egl_forward.1} parent=1 // pred_check_branch
      %54 = sbr.rel (0) target = $region49
    $region48: #{egl_forward.1} parent=1 // pred_region
      _
    $region49: #{egl_forward.1} parent=1 // pred_fallthru
      _
    // Predicated region
    $region50: #{egl_forward.1} parent=1 // pred_check
      _
    $region51: #{egl_forward.1} parent=1 // pred_check_branch
      %56 = sbr.rel (0) target = $region53
    $region52: #{egl_forward.1} parent=1 // pred_region
      _
    $region53: #{egl_forward.1} parent=1 // pred_fallthru
      _
    // Predicated region
    $region54: #{egl_forward.1} parent=1 // pred_check
      _
    $region55: #{egl_forward.1} parent=1 // pred_check_branch
      %58 = sbr.rel (0) target = $region57
    $region56: #{egl_forward.1} parent=1 // pred_region
      _
    $region57: #{egl_forward.1} parent=1 // pred_fallthru
      _
    // Predicated region
    $region58: #{egl_forward.1} parent=1 // pred_check
      _
    $region59: #{egl_forward.1} parent=1 // pred_check_branch
      %60 = sbr.rel (0) target = $region61
    $region60: #{egl_forward.1} parent=1 // pred_region
      _
    $region61: #{egl_forward.1} parent=1 // pred_fallthru
      _
    // Predicated region
    $region62: #{egl_forward.1} parent=1 // pred_check
      _
    $region63: #{egl_forward.1} parent=1 // pred_check_branch
      %62 = sbr.rel (0) target = $region65
    $region64: #{egl_forward.1} parent=1 // pred_region
      _
    $region65: #{egl_forward.1} parent=1 // pred_fallthru
      _
    // Predicated region
    $region66: #{egl_forward.1} parent=1 // pred_check
      _
    $region67: #{egl_forward.1} parent=1 // pred_check_branch
      %64 = sbr.rel (0) target = $region69
    $region68: #{egl_forward.1} parent=1 // pred_region
      %65 = dma.done [#allocation4], 16
    $region69: #{egl_forward.1} parent=1 // pred_fallthru
      _
    %66 = sfence
    %v68 = vld [vmem:[%s2] sm:$0xff]
    %v69 = vld [vmem:[%s2 + $0x8] sm:$0xff]
    %v70 = vld [vmem:[%s2 + $0x10] sm:$0xff]
    %v71 = vld [vmem:[%s2 + $0x18] sm:$0xff]
    %v72 = vld [vmem:[%s3] sm:$0xff]
    %vm73 = vcmask 64512
    %v75 = vsel %vm73, %v68, 0
    %v78 = vsel %vm73, %v69, 0
    %v81 = vsel %vm73, %v70, 0
    %v84 = vsel %vm73, %v71, 0
    %86 = vmatprep.subr.mxu0 0.0
    %87 = vmatpush1.msra.mxu0 0.0
    %88 = vmatprep.subr.mxu0 0.0
    %89 = vmatpush1.msra.mxu0 0.0
    %90 = vmatprep.subr.mxu0 0.0
    %91 = vmatpush1.msra.mxu0 0.0
    %92 = vmatprep.subr.mxu0 0.0
    %93 = vmatpush1.msra.mxu0 0.0
    %94 = vmatprep.subr.mxu0 0.0
    %95 = vmatpush1.msra.mxu0 0.0
    %96 = vmatprep.subr.mxu0 0.0
    %97 = vmatpush1.msra.mxu0 0.0
    %98 = vmatprep.subr.mxu0 0.0
    %99 = vmatpush1.msra.mxu0 0.0
    %100 = vmatprep.subr.mxu0 0.0
    %101 = vmatpush1.msra.mxu0 0.0
    %102 = vmatprep.subr.mxu0 0.0
    %103 = vmatpush1.msra.mxu0 0.0
    %104 = vmatprep.subr.mxu0 0.0
    %105 = vmatpush1.msra.mxu0 0.0
    %106 = vmatprep.subr.mxu0 0.0
    %107 = vmatpush1.msra.mxu0 0.0
    %108 = vmatprep.subr.mxu0 0.0
    %109 = vmatpush1.msra.mxu0 0.0
    %110 = vmatprep.subr.mxu0 0.0
    %111 = vmatpush1.msra.mxu0 0.0
    %112 = vmatprep.subr.mxu0 0.0
    %113 = vmatpush1.msra.mxu0 0.0
    %114 = vmatprep.subr.mxu0 0.0
    %115 = vmatpush1.msra.mxu0 0.0
    %116 = vmatprep.subr.mxu0 0.0
    %v117 = vand.u32 %v72, 4294901760
    %118 = vmatpush1.msra.mxu0 %v117
    %119 = vmatprep.subr.mxu0 0.0
    %120 = vmatpush2.msra.mxu0 0.0
    %121 = vmatprep.subr.mxu0 0.0
    %122 = vmatpush2.msra.mxu0 0.0
    %123 = vmatprep.subr.mxu0 0.0
    %124 = vmatpush2.msra.mxu0 0.0
    %125 = vmatprep.subr.mxu0 0.0
    %126 = vmatpush2.msra.mxu0 0.0
    %127 = vmatprep.subr.mxu0 0.0
    %128 = vmatpush2.msra.mxu0 0.0
    %129 = vmatprep.subr.mxu0 0.0
    %130 = vmatpush2.msra.mxu0 0.0
    %131 = vmatprep.subr.mxu0 0.0
    %132 = vmatpush2.msra.mxu0 0.0
    %133 = vmatprep.subr.mxu0 0.0
    %134 = vmatpush2.msra.mxu0 0.0
    %135 = vmatprep.subr.mxu0 0.0
    %136 = vmatpush2.msra.mxu0 0.0
    %137 = vmatprep.subr.mxu0 0.0
    %138 = vmatpush2.msra.mxu0 0.0
    %139 = vmatprep.subr.mxu0 0.0
    %140 = vmatpush2.msra.mxu0 0.0
    %141 = vmatprep.subr.mxu0 0.0
    %142 = vmatpush2.msra.mxu0 0.0
    %143 = vmatprep.subr.mxu0 0.0
    %144 = vmatpush2.msra.mxu0 0.0
    %145 = vmatprep.subr.mxu0 0.0
    %146 = vmatpush2.msra.mxu0 0.0
    %147 = vmatprep.subr.mxu0 0.0
    %148 = vmatpush2.msra.mxu0 0.0
    %149 = vmatprep.subr.mxu0 0.0
    %150 = vmatpush2.msra.mxu0 0.0
    %151 = vmatprep.mubr.f32.mxu0 0.0
    %v152 = vand.u32 %v75, 4294901760
    %v153 = vsub.f32 %v75, %v152
    %v154 = vand.u32 %v153, 4294901760
    %v155 = vsub.f32 %v153, %v154
    %v156 = vand.u32 %v155, 4294901760
    %157 = vmatmul.mubr.f32.gmra.mxu0 %v156
    %v158 = vpop.f32.mrf.mxu0
    %v159 = vadd.f32 0.0, %v158
    %v160 = vpop.f32.mrf.mxu0
    %161 = vmatprep.mubr.f32.mxu0 0.0
    %v162 = vand.u32 %v78, 4294901760
    %v163 = vsub.f32 %v78, %v162
    %v164 = vand.u32 %v163, 4294901760
    %v165 = vsub.f32 %v163, %v164
    %v166 = vand.u32 %v165, 4294901760
    %167 = vmatmul.mubr.f32.gmra.mxu0 %v166
    %v168 = vpop.f32.mrf.mxu0
    %v169 = vadd.f32 0.0, %v168
    %v170 = vpop.f32.mrf.mxu0
    %171 = vmatprep.mubr.f32.mxu0 0.0
    %v172 = vand.u32 %v81, 4294901760
    %v173 = vsub.f32 %v81, %v172
    %v174 = vand.u32 %v173, 4294901760
    %v175 = vsub.f32 %v173, %v174
    %v176 = vand.u32 %v175, 4294901760
    %177 = vmatmul.mubr.f32.gmra.mxu0 %v176
    %v178 = vpop.f32.mrf.mxu0
    %v179 = vadd.f32 0.0, %v178
    %v180 = vpop.f32.mrf.mxu0
    %181 = vmatprep.mubr.f32.mxu0 0.0
    %v182 = vand.u32 %v84, 4294901760
    %v183 = vsub.f32 %v84, %v182
    %v184 = vand.u32 %v183, 4294901760
    %v185 = vsub.f32 %v183, %v184
    %v186 = vand.u32 %v185, 4294901760
    %187 = vmatmul.mubr.f32.gmra.mxu0 %v186
    %v188 = vpop.f32.mrf.mxu0
    %v189 = vadd.f32 0.0, %v188
    %v190 = vpop.f32.mrf.mxu0
    %191 = vdwg.mxu0
    %192 = vmatprep.subr.mxu0 0.0
    %193 = vmatpush1.msra.mxu0 0.0
    %194 = vmatprep.subr.mxu0 0.0
    %195 = vmatpush1.msra.mxu0 0.0
    %196 = vmatprep.subr.mxu0 0.0
    %197 = vmatpush1.msra.mxu0 0.0
    %198 = vmatprep.subr.mxu0 0.0
    %199 = vmatpush1.msra.mxu0 0.0
    %200 = vmatprep.subr.mxu0 0.0
    %201 = vmatpush1.msra.mxu0 0.0
    %202 = vmatprep.subr.mxu0 0.0
    %203 = vmatpush1.msra.mxu0 0.0
    %204 = vmatprep.subr.mxu0 0.0
    %205 = vmatpush1.msra.mxu0 0.0
    %206 = vmatprep.subr.mxu0 0.0
    %207 = vmatpush1.msra.mxu0 0.0
    %208 = vmatprep.subr.mxu0 0.0
    %209 = vmatpush1.msra.mxu0 0.0
    %210 = vmatprep.subr.mxu0 0.0
    %211 = vmatpush1.msra.mxu0 0.0
    %212 = vmatprep.subr.mxu0 0.0
    %213 = vmatpush1.msra.mxu0 0.0
    %214 = vmatprep.subr.mxu0 0.0
    %215 = vmatpush1.msra.mxu0 0.0
    %216 = vmatprep.subr.mxu0 0.0
    %217 = vmatpush1.msra.mxu0 0.0
    %218 = vmatprep.subr.mxu0 0.0
    %219 = vmatpush1.msra.mxu0 0.0
    %220 = vmatprep.subr.mxu0 0.0
    %221 = vmatpush1.msra.mxu0 0.0
    %222 = vmatprep.subr.mxu0 0.0
    %v223 = vand.u32 %v72, 4294901760
    %v224 = vsub.f32 %v72, %v223
    %v225 = vand.u32 %v224, 4294901760
    %v226 = vsub.f32 %v224, %v225
    %v227 = vand.u32 %v226, 4294901760
    %228 = vmatpush1.msra.mxu0 %v227
    %229 = vmatprep.subr.mxu0 0.0
    %230 = vmatpush2.msra.mxu0 0.0
    %231 = vmatprep.subr.mxu0 0.0
    %232 = vmatpush2.msra.mxu0 0.0
    %233 = vmatprep.subr.mxu0 0.0
    %234 = vmatpush2.msra.mxu0 0.0
    %235 = vmatprep.subr.mxu0 0.0
    %236 = vmatpush2.msra.mxu0 0.0
    %237 = vmatprep.subr.mxu0 0.0
    %238 = vmatpush2.msra.mxu0 0.0
    %239 = vmatprep.subr.mxu0 0.0
    %240 = vmatpush2.msra.mxu0 0.0
    %241 = vmatprep.subr.mxu0 0.0
    %242 = vmatpush2.msra.mxu0 0.0
    %243 = vmatprep.subr.mxu0 0.0
    %244 = vmatpush2.msra.mxu0 0.0
    %245 = vmatprep.subr.mxu0 0.0
    %246 = vmatpush2.msra.mxu0 0.0
    %247 = vmatprep.subr.mxu0 0.0
    %248 = vmatpush2.msra.mxu0 0.0
    %249 = vmatprep.subr.mxu0 0.0
    %250 = vmatpush2.msra.mxu0 0.0
    %251 = vmatprep.subr.mxu0 0.0
    %252 = vmatpush2.msra.mxu0 0.0
    %253 = vmatprep.subr.mxu0 0.0
    %254 = vmatpush2.msra.mxu0 0.0
    %255 = vmatprep.subr.mxu0 0.0
    %256 = vmatpush2.msra.mxu0 0.0
    %257 = vmatprep.subr.mxu0 0.0
    %258 = vmatpush2.msra.mxu0 0.0
    %259 = vmatprep.subr.mxu0 0.0
    %260 = vmatpush2.msra.mxu0 0.0
    %261 = vmatprep.mubr.f32.mxu0 0.0
    %v262 = vand.u32 %v75, 4294901760
    %263 = vmatmul.mubr.f32.gmra.mxu0 %v262
    %v264 = vpop.f32.mrf.mxu0
    %v265 = vadd.f32 %v159, %v264
    %v266 = vpop.f32.mrf.mxu0
    %267 = vmatprep.mubr.f32.mxu0 0.0
    %v268 = vand.u32 %v78, 4294901760
    %269 = vmatmul.mubr.f32.gmra.mxu0 %v268
    %v270 = vpop.f32.mrf.mxu0
    %v271 = vadd.f32 %v169, %v270
    %v272 = vpop.f32.mrf.mxu0
    %273 = vmatprep.mubr.f32.mxu0 0.0
    %v274 = vand.u32 %v81, 4294901760
    %275 = vmatmul.mubr.f32.gmra.mxu0 %v274
    %v276 = vpop.f32.mrf.mxu0
    %v277 = vadd.f32 %v179, %v276
    %v278 = vpop.f32.mrf.mxu0
    %279 = vmatprep.mubr.f32.mxu0 0.0
    %v280 = vand.u32 %v84, 4294901760
    %281 = vmatmul.mubr.f32.gmra.mxu0 %v280
    %v282 = vpop.f32.mrf.mxu0
    %v283 = vadd.f32 %v189, %v282
    %v284 = vpop.f32.mrf.mxu0
    %285 = vdwg.mxu0
    %286 = vmatprep.subr.mxu0 0.0
    %287 = vmatpush1.msra.mxu0 0.0
    %288 = vmatprep.subr.mxu0 0.0
    %289 = vmatpush1.msra.mxu0 0.0
    %290 = vmatprep.subr.mxu0 0.0
    %291 = vmatpush1.msra.mxu0 0.0
    %292 = vmatprep.subr.mxu0 0.0
    %293 = vmatpush1.msra.mxu0 0.0
    %294 = vmatprep.subr.mxu0 0.0
    %295 = vmatpush1.msra.mxu0 0.0
    %296 = vmatprep.subr.mxu0 0.0
    %297 = vmatpush1.msra.mxu0 0.0
    %298 = vmatprep.subr.mxu0 0.0
    %299 = vmatpush1.msra.mxu0 0.0
    %300 = vmatprep.subr.mxu0 0.0
    %301 = vmatpush1.msra.mxu0 0.0
    %302 = vmatprep.subr.mxu0 0.0
    %303 = vmatpush1.msra.mxu0 0.0
    %304 = vmatprep.subr.mxu0 0.0
    %305 = vmatpush1.msra.mxu0 0.0
    %306 = vmatprep.subr.mxu0 0.0
    %307 = vmatpush1.msra.mxu0 0.0
    %308 = vmatprep.subr.mxu0 0.0
    %309 = vmatpush1.msra.mxu0 0.0
    %310 = vmatprep.subr.mxu0 0.0
    %311 = vmatpush1.msra.mxu0 0.0
    %312 = vmatprep.subr.mxu0 0.0
    %313 = vmatpush1.msra.mxu0 0.0
    %314 = vmatprep.subr.mxu0 0.0
    %315 = vmatpush1.msra.mxu0 0.0
    %316 = vmatprep.subr.mxu0 0.0
    %v317 = vand.u32 %v72, 4294901760
    %v318 = vsub.f32 %v72, %v317
    %319 = vmatpush1.msra.mxu0 %v318
    %320 = vmatprep.subr.mxu0 0.0
    %321 = vmatpush2.msra.mxu0 0.0
    %322 = vmatprep.subr.mxu0 0.0
    %323 = vmatpush2.msra.mxu0 0.0
    %324 = vmatprep.subr.mxu0 0.0
    %325 = vmatpush2.msra.mxu0 0.0
    %326 = vmatprep.subr.mxu0 0.0
    %327 = vmatpush2.msra.mxu0 0.0
    %328 = vmatprep.subr.mxu0 0.0
    %329 = vmatpush2.msra.mxu0 0.0
    %330 = vmatprep.subr.mxu0 0.0
    %331 = vmatpush2.msra.mxu0 0.0
    %332 = vmatprep.subr.mxu0 0.0
    %333 = vmatpush2.msra.mxu0 0.0
    %334 = vmatprep.subr.mxu0 0.0
    %335 = vmatpush2.msra.mxu0 0.0
    %336 = vmatprep.subr.mxu0 0.0
    %337 = vmatpush2.msra.mxu0 0.0
    %338 = vmatprep.subr.mxu0 0.0
    %339 = vmatpush2.msra.mxu0 0.0
    %340 = vmatprep.subr.mxu0 0.0
    %341 = vmatpush2.msra.mxu0 0.0
    %342 = vmatprep.subr.mxu0 0.0
    %343 = vmatpush2.msra.mxu0 0.0
    %344 = vmatprep.subr.mxu0 0.0
    %345 = vmatpush2.msra.mxu0 0.0
    %346 = vmatprep.subr.mxu0 0.0
    %347 = vmatpush2.msra.mxu0 0.0
    %348 = vmatprep.subr.mxu0 0.0
    %349 = vmatpush2.msra.mxu0 0.0
    %350 = vmatprep.subr.mxu0 0.0
    %351 = vmatpush2.msra.mxu0 0.0
    %352 = vmatprep.mubr.f32.mxu0 0.0
    %v353 = vand.u32 %v75, 4294901760
    %v354 = vsub.f32 %v75, %v353
    %355 = vmatmul.mubr.f32.gmra.mxu0 %v354
    %v356 = vpop.f32.mrf.mxu0
    %v357 = vadd.f32 %v265, %v356
    %v358 = vpop.f32.mrf.mxu0
    %359 = vmatprep.mubr.f32.mxu0 0.0
    %v360 = vand.u32 %v78, 4294901760
    %v361 = vsub.f32 %v78, %v360
    %362 = vmatmul.mubr.f32.gmra.mxu0 %v361
    %v363 = vpop.f32.mrf.mxu0
    %v364 = vadd.f32 %v271, %v363
    %v365 = vpop.f32.mrf.mxu0
    %366 = vmatprep.mubr.f32.mxu0 0.0
    %v367 = vand.u32 %v81, 4294901760
    %v368 = vsub.f32 %v81, %v367
    %369 = vmatmul.mubr.f32.gmra.mxu0 %v368
    %v370 = vpop.f32.mrf.mxu0
    %v371 = vadd.f32 %v277, %v370
    %v372 = vpop.f32.mrf.mxu0
    %373 = vmatprep.mubr.f32.mxu0 0.0
    %v374 = vand.u32 %v84, 4294901760
    %v375 = vsub.f32 %v84, %v374
    %376 = vmatmul.mubr.f32.gmra.mxu0 %v375
    %v377 = vpop.f32.mrf.mxu0
    %v378 = vadd.f32 %v283, %v377
    %v379 = vpop.f32.mrf.mxu0
    %380 = vdwg.mxu0
    %381 = vmatprep.subr.mxu0 0.0
    %382 = vmatpush1.msra.mxu0 0.0
    %383 = vmatprep.subr.mxu0 0.0
    %384 = vmatpush1.msra.mxu0 0.0
    %385 = vmatprep.subr.mxu0 0.0
    %386 = vmatpush1.msra.mxu0 0.0
    %387 = vmatprep.subr.mxu0 0.0
    %388 = vmatpush1.msra.mxu0 0.0
    %389 = vmatprep.subr.mxu0 0.0
    %390 = vmatpush1.msra.mxu0 0.0
    %391 = vmatprep.subr.mxu0 0.0
    %392 = vmatpush1.msra.mxu0 0.0
    %393 = vmatprep.subr.mxu0 0.0
    %394 = vmatpush1.msra.mxu0 0.0
    %395 = vmatprep.subr.mxu0 0.0
    %396 = vmatpush1.msra.mxu0 0.0
    %397 = vmatprep.subr.mxu0 0.0
    %398 = vmatpush1.msra.mxu0 0.0
    %399 = vmatprep.subr.mxu0 0.0
    %400 = vmatpush1.msra.mxu0 0.0
    %401 = vmatprep.subr.mxu0 0.0
    %402 = vmatpush1.msra.mxu0 0.0
    %403 = vmatprep.subr.mxu0 0.0
    %404 = vmatpush1.msra.mxu0 0.0
    %405 = vmatprep.subr.mxu0 0.0
    %406 = vmatpush1.msra.mxu0 0.0
    %407 = vmatprep.subr.mxu0 0.0
    %408 = vmatpush1.msra.mxu0 0.0
    %409 = vmatprep.subr.mxu0 0.0
    %410 = vmatpush1.msra.mxu0 0.0
    %411 = vmatprep.subr.mxu0 0.0
    %v412 = vand.u32 %v72, 4294901760
    %413 = vmatpush1.msra.mxu0 %v412
    %414 = vmatprep.subr.mxu0 0.0
    %415 = vmatpush2.msra.mxu0 0.0
    %416 = vmatprep.subr.mxu0 0.0
    %417 = vmatpush2.msra.mxu0 0.0
    %418 = vmatprep.subr.mxu0 0.0
    %419 = vmatpush2.msra.mxu0 0.0
    %420 = vmatprep.subr.mxu0 0.0
    %421 = vmatpush2.msra.mxu0 0.0
    %422 = vmatprep.subr.mxu0 0.0
    %423 = vmatpush2.msra.mxu0 0.0
    %424 = vmatprep.subr.mxu0 0.0
    %425 = vmatpush2.msra.mxu0 0.0
    %426 = vmatprep.subr.mxu0 0.0
    %427 = vmatpush2.msra.mxu0 0.0
    %428 = vmatprep.subr.mxu0 0.0
    %429 = vmatpush2.msra.mxu0 0.0
    %430 = vmatprep.subr.mxu0 0.0
    %431 = vmatpush2.msra.mxu0 0.0
    %432 = vmatprep.subr.mxu0 0.0
    %433 = vmatpush2.msra.mxu0 0.0
    %434 = vmatprep.subr.mxu0 0.0
    %435 = vmatpush2.msra.mxu0 0.0
    %436 = vmatprep.subr.mxu0 0.0
    %437 = vmatpush2.msra.mxu0 0.0
    %438 = vmatprep.subr.mxu0 0.0
    %439 = vmatpush2.msra.mxu0 0.0
    %440 = vmatprep.subr.mxu0 0.0
    %441 = vmatpush2.msra.mxu0 0.0
    %442 = vmatprep.subr.mxu0 0.0
    %443 = vmatpush2.msra.mxu0 0.0
    %444 = vmatprep.subr.mxu0 0.0
    %445 = vmatpush2.msra.mxu0 0.0
    %446 = vmatprep.mubr.f32.mxu0 0.0
    %v447 = vand.u32 %v75, 4294901760
    %v448 = vsub.f32 %v75, %v447
    %v449 = vand.u32 %v448, 4294901760
    %450 = vmatmul.mubr.f32.gmra.mxu0 %v449
    %v451 = vpop.f32.mrf.mxu0
    %v452 = vadd.f32 %v357, %v451
    %v453 = vpop.f32.mrf.mxu0
    %454 = vmatprep.mubr.f32.mxu0 0.0
    %v455 = vand.u32 %v78, 4294901760
    %v456 = vsub.f32 %v78, %v455
    %v457 = vand.u32 %v456, 4294901760
    %458 = vmatmul.mubr.f32.gmra.mxu0 %v457
    %v459 = vpop.f32.mrf.mxu0
    %v460 = vadd.f32 %v364, %v459
    %v461 = vpop.f32.mrf.mxu0
    %462 = vmatprep.mubr.f32.mxu0 0.0
    %v463 = vand.u32 %v81, 4294901760
    %v464 = vsub.f32 %v81, %v463
    %v465 = vand.u32 %v464, 4294901760
    %466 = vmatmul.mubr.f32.gmra.mxu0 %v465
    %v467 = vpop.f32.mrf.mxu0
    %v468 = vadd.f32 %v371, %v467
    %v469 = vpop.f32.mrf.mxu0
    %470 = vmatprep.mubr.f32.mxu0 0.0
    %v471 = vand.u32 %v84, 4294901760
    %v472 = vsub.f32 %v84, %v471
    %v473 = vand.u32 %v472, 4294901760
    %474 = vmatmul.mubr.f32.gmra.mxu0 %v473
    %v475 = vpop.f32.mrf.mxu0
    %v476 = vadd.f32 %v378, %v475
    %v477 = vpop.f32.mrf.mxu0
    %478 = vdwg.mxu0
    %479 = vmatprep.subr.mxu0 0.0
    %480 = vmatpush1.msra.mxu0 0.0
    %481 = vmatprep.subr.mxu0 0.0
    %482 = vmatpush1.msra.mxu0 0.0
    %483 = vmatprep.subr.mxu0 0.0
    %484 = vmatpush1.msra.mxu0 0.0
    %485 = vmatprep.subr.mxu0 0.0
    %486 = vmatpush1.msra.mxu0 0.0
    %487 = vmatprep.subr.mxu0 0.0
    %488 = vmatpush1.msra.mxu0 0.0
    %489 = vmatprep.subr.mxu0 0.0
    %490 = vmatpush1.msra.mxu0 0.0
    %491 = vmatprep.subr.mxu0 0.0
    %492 = vmatpush1.msra.mxu0 0.0
    %493 = vmatprep.subr.mxu0 0.0
    %494 = vmatpush1.msra.mxu0 0.0
    %495 = vmatprep.subr.mxu0 0.0
    %496 = vmatpush1.msra.mxu0 0.0
    %497 = vmatprep.subr.mxu0 0.0
    %498 = vmatpush1.msra.mxu0 0.0
    %499 = vmatprep.subr.mxu0 0.0
    %500 = vmatpush1.msra.mxu0 0.0
    %501 = vmatprep.subr.mxu0 0.0
    %502 = vmatpush1.msra.mxu0 0.0
    %503 = vmatprep.subr.mxu0 0.0
    %504 = vmatpush1.msra.mxu0 0.0
    %505 = vmatprep.subr.mxu0 0.0
    %506 = vmatpush1.msra.mxu0 0.0
    %507 = vmatprep.subr.mxu0 0.0
    %508 = vmatpush1.msra.mxu0 0.0
    %509 = vmatprep.subr.mxu0 0.0
    %v510 = vand.u32 %v72, 4294901760
    %v511 = vsub.f32 %v72, %v510
    %v512 = vand.u32 %v511, 4294901760
    %513 = vmatpush1.msra.mxu0 %v512
    %514 = vmatprep.subr.mxu0 0.0
    %515 = vmatpush2.msra.mxu0 0.0
    %516 = vmatprep.subr.mxu0 0.0
    %517 = vmatpush2.msra.mxu0 0.0
    %518 = vmatprep.subr.mxu0 0.0
    %519 = vmatpush2.msra.mxu0 0.0
    %520 = vmatprep.subr.mxu0 0.0
    %521 = vmatpush2.msra.mxu0 0.0
    %522 = vmatprep.subr.mxu0 0.0
    %523 = vmatpush2.msra.mxu0 0.0
    %524 = vmatprep.subr.mxu0 0.0
    %525 = vmatpush2.msra.mxu0 0.0
    %526 = vmatprep.subr.mxu0 0.0
    %527 = vmatpush2.msra.mxu0 0.0
    %528 = vmatprep.subr.mxu0 0.0
    %529 = vmatpush2.msra.mxu0 0.0
    %530 = vmatprep.subr.mxu0 0.0
    %531 = vmatpush2.msra.mxu0 0.0
    %532 = vmatprep.subr.mxu0 0.0
    %533 = vmatpush2.msra.mxu0 0.0
    %534 = vmatprep.subr.mxu0 0.0
    %535 = vmatpush2.msra.mxu0 0.0
    %536 = vmatprep.subr.mxu0 0.0
    %537 = vmatpush2.msra.mxu0 0.0
    %538 = vmatprep.subr.mxu0 0.0
    %539 = vmatpush2.msra.mxu0 0.0
    %540 = vmatprep.subr.mxu0 0.0
    %541 = vmatpush2.msra.mxu0 0.0
    %542 = vmatprep.subr.mxu0 0.0
    %543 = vmatpush2.msra.mxu0 0.0
    %544 = vmatprep.subr.mxu0 0.0
    %545 = vmatpush2.msra.mxu0 0.0
    %546 = vmatprep.mubr.f32.mxu0 0.0
    %v547 = vand.u32 %v75, 4294901760
    %548 = vmatmul.mubr.f32.gmra.mxu0 %v547
    %v549 = vpop.f32.mrf.mxu0
    %v550 = vadd.f32 %v452, %v549
    %v551 = vpop.f32.mrf.mxu0
    %552 = vmatprep.mubr.f32.mxu0 0.0
    %v553 = vand.u32 %v78, 4294901760
    %554 = vmatmul.mubr.f32.gmra.mxu0 %v553
    %v555 = vpop.f32.mrf.mxu0
    %v556 = vadd.f32 %v460, %v555
    %v557 = vpop.f32.mrf.mxu0
    %558 = vmatprep.mubr.f32.mxu0 0.0
    %v559 = vand.u32 %v81, 4294901760
    %560 = vmatmul.mubr.f32.gmra.mxu0 %v559
    %v561 = vpop.f32.mrf.mxu0
    %v562 = vadd.f32 %v468, %v561
    %v563 = vpop.f32.mrf.mxu0
    %564 = vmatprep.mubr.f32.mxu0 0.0
    %v565 = vand.u32 %v84, 4294901760
    %566 = vmatmul.mubr.f32.gmra.mxu0 %v565
    %v567 = vpop.f32.mrf.mxu0
    %v568 = vadd.f32 %v476, %v567
    %v569 = vpop.f32.mrf.mxu0
    %570 = vdwg.mxu0
    %571 = vmatprep.subr.mxu0 0.0
    %572 = vmatpush1.msra.mxu0 0.0
    %573 = vmatprep.subr.mxu0 0.0
    %574 = vmatpush1.msra.mxu0 0.0
    %575 = vmatprep.subr.mxu0 0.0
    %576 = vmatpush1.msra.mxu0 0.0
    %577 = vmatprep.subr.mxu0 0.0
    %578 = vmatpush1.msra.mxu0 0.0
    %579 = vmatprep.subr.mxu0 0.0
    %580 = vmatpush1.msra.mxu0 0.0
    %581 = vmatprep.subr.mxu0 0.0
    %582 = vmatpush1.msra.mxu0 0.0
    %583 = vmatprep.subr.mxu0 0.0
    %584 = vmatpush1.msra.mxu0 0.0
    %585 = vmatprep.subr.mxu0 0.0
    %586 = vmatpush1.msra.mxu0 0.0
    %587 = vmatprep.subr.mxu0 0.0
    %588 = vmatpush1.msra.mxu0 0.0
    %589 = vmatprep.subr.mxu0 0.0
    %590 = vmatpush1.msra.mxu0 0.0
    %591 = vmatprep.subr.mxu0 0.0
    %592 = vmatpush1.msra.mxu0 0.0
    %593 = vmatprep.subr.mxu0 0.0
    %594 = vmatpush1.msra.mxu0 0.0
    %595 = vmatprep.subr.mxu0 0.0
    %596 = vmatpush1.msra.mxu0 0.0
    %597 = vmatprep.subr.mxu0 0.0
    %598 = vmatpush1.msra.mxu0 0.0
    %599 = vmatprep.subr.mxu0 0.0
    %600 = vmatpush1.msra.mxu0 0.0
    %601 = vmatprep.subr.mxu0 0.0
    %v602 = vand.u32 %v72, 4294901760
    %603 = vmatpush1.msra.mxu0 %v602
    %604 = vmatprep.subr.mxu0 0.0
    %605 = vmatpush2.msra.mxu0 0.0
    %606 = vmatprep.subr.mxu0 0.0
    %607 = vmatpush2.msra.mxu0 0.0
    %608 = vmatprep.subr.mxu0 0.0
    %609 = vmatpush2.msra.mxu0 0.0
    %610 = vmatprep.subr.mxu0 0.0
    %611 = vmatpush2.msra.mxu0 0.0
    %612 = vmatprep.subr.mxu0 0.0
    %613 = vmatpush2.msra.mxu0 0.0
    %614 = vmatprep.subr.mxu0 0.0
    %615 = vmatpush2.msra.mxu0 0.0
    %616 = vmatprep.subr.mxu0 0.0
    %617 = vmatpush2.msra.mxu0 0.0
    %618 = vmatprep.subr.mxu0 0.0
    %619 = vmatpush2.msra.mxu0 0.0
    %620 = vmatprep.subr.mxu0 0.0
    %621 = vmatpush2.msra.mxu0 0.0
    %622 = vmatprep.subr.mxu0 0.0
    %623 = vmatpush2.msra.mxu0 0.0
    %624 = vmatprep.subr.mxu0 0.0
    %625 = vmatpush2.msra.mxu0 0.0
    %626 = vmatprep.subr.mxu0 0.0
    %627 = vmatpush2.msra.mxu0 0.0
    %628 = vmatprep.subr.mxu0 0.0
    %629 = vmatpush2.msra.mxu0 0.0
    %630 = vmatprep.subr.mxu0 0.0
    %631 = vmatpush2.msra.mxu0 0.0
    %632 = vmatprep.subr.mxu0 0.0
    %633 = vmatpush2.msra.mxu0 0.0
    %634 = vmatprep.subr.mxu0 0.0
    %635 = vmatpush2.msra.mxu0 0.0
    %636 = vmatprep.mubr.f32.mxu0 0.0
    %v637 = vand.u32 %v75, 4294901760
    %638 = vmatmul.mubr.f32.gmra.mxu0 %v637
    %v639 = vpop.f32.mrf.mxu0
    %v640 = vadd.f32 %v550, %v639
    %v641 = vpop.f32.mrf.mxu0
    %642 = vmatprep.mubr.f32.mxu0 0.0
    %v643 = vand.u32 %v78, 4294901760
    %644 = vmatmul.mubr.f32.gmra.mxu0 %v643
    %v645 = vpop.f32.mrf.mxu0
    %v646 = vadd.f32 %v556, %v645
    %v647 = vpop.f32.mrf.mxu0
    %648 = vmatprep.mubr.f32.mxu0 0.0
    %v649 = vand.u32 %v81, 4294901760
    %650 = vmatmul.mubr.f32.gmra.mxu0 %v649
    %v651 = vpop.f32.mrf.mxu0
    %v652 = vadd.f32 %v562, %v651
    %v653 = vpop.f32.mrf.mxu0
    %654 = vmatprep.mubr.f32.mxu0 0.0
    %v655 = vand.u32 %v84, 4294901760
    %656 = vmatmul.mubr.f32.gmra.mxu0 %v655
    %v657 = vpop.f32.mrf.mxu0
    %v658 = vadd.f32 %v568, %v657
    %v659 = vpop.f32.mrf.mxu0
    %660 = vdwg.mxu0
    %v661 = vld [vmem:[%s6] sm:$0xff]
    %v662 = vld [vmem:[%s6 + $0x8] sm:$0xff]
    %v663 = vld [vmem:[%s6 + $0x10] sm:$0xff]
    %v664 = vld [vmem:[%s6 + $0x18] sm:$0xff]
    %vm665 = vcmp.gt.f32.partialorder %v661, 0.5
    %vm666 = vcmp.gt.f32.partialorder %v662, 0.5
    %vm667 = vcmp.gt.f32.partialorder %v663, 0.5
    %vm668 = vcmp.gt.f32.partialorder %v664, 0.5
    %v669 = vld [vmem:[%s7] sm:$0x1]
    %vm670 = vcmp.gt.f32.partialorder %v669, 0.5
    %v671 = vsel %vm665, 1, 0
    %v672 = vsel %vm666, 1, 0
    %v673 = vsel %vm667, 1, 0
    %v674 = vsel %vm668, 1, 0
    %675 = vset.pattern.permute.xlu0 0
    %676 = vperm.xlu0 %675, %v671
    %v677 = vpop.permute.xlu0 %676
    %678 = vset.pattern.permute.xlu0 0
    %679 = vperm.xlu0 %678, %v672
    %v680 = vpop.permute.xlu0 %679
    %681 = vset.pattern.permute.xlu0 0
    %682 = vperm.xlu0 %681, %v673
    %v683 = vpop.permute.xlu0 %682
    %684 = vset.pattern.permute.xlu0 0
    %685 = vperm.xlu0 %684, %v674
    %v686 = vpop.permute.xlu0 %685
    %vm687 = vcmp.eq.s32.totalorder %v677, 1
    %vm688 = vcmp.eq.s32.totalorder %v680, 1
    %vm689 = vcmp.eq.s32.totalorder %v683, 1
    %vm690 = vcmp.eq.s32.totalorder %v686, 1
    %v691 = vsel %vm670, 1, 0
    %v692 = vlaneseq
    %v693 = vshrl.u32 %v692, 7
    %v694 = vsub.s32 0, %v693
    %v695 = vrot.slane %v691, %v694
    %vm696 = vcmp.eq.s32.totalorder %v695, 1
    %vm697 = vmand %vm687, %vm696
    %vm698 = vmand %vm688, %vm696
    %vm699 = vmand %vm689, %vm696
    %vm700 = vmand %vm690, %vm696
    %v701 = vld [vmem:[%s5] sm:$0xff]
    %v702 = vld [vmem:[%s5 + $0x8] sm:$0xff]
    %v703 = vld [vmem:[%s5 + $0x10] sm:$0xff]
    %v704 = vld [vmem:[%s5 + $0x18] sm:$0xff]
    %vm705 = vcmp.gt.f32.partialorder %v640, %v701
    %vm706 = vcmp.gt.f32.partialorder %v646, %v702
    %vm707 = vcmp.gt.f32.partialorder %v652, %v703
    %vm708 = vcmp.gt.f32.partialorder %v658, %v704
    %vm709 = vmand %vm705, %vm697
    %vm710 = vmand %vm706, %vm698
    %vm711 = vmand %vm707, %vm699
    %vm712 = vmand %vm708, %vm700
    %v713 = vsel %vm709, 1, 0
    %v714 = vsel %vm710, 1, 0
    %v715 = vsel %vm711, 1, 0
    %v716 = vsel %vm712, 1, 0
    %v717 = vcvt.s32.f32 %v713
    %v718 = vcvt.s32.f32 %v714
    %v719 = vcvt.s32.f32 %v715
    %v720 = vcvt.s32.f32 %v716
    %721 = vadd.xlane.f32.xlu0 %v717
    %v722 = vpop.xlane.xlu0 %721
    %723 = vadd.xlane.f32.xlu0 %v718
    %v724 = vpop.xlane.xlu0 %723
    %725 = vadd.xlane.f32.xlu0 %v719
    %v726 = vpop.xlane.xlu0 %725
    %727 = vadd.xlane.f32.xlu0 %v720
    %v728 = vpop.xlane.xlu0 %727
    %v729 = vld [vmem:[%s4] sm:$0xff]
    %v730 = vld [vmem:[%s4 + $0x8] sm:$0xff]
    %v731 = vld [vmem:[%s4 + $0x10] sm:$0xff]
    %v732 = vld [vmem:[%s4 + $0x18] sm:$0xff]
    %v733 = vld [vmem:[%s4 + $0x20] sm:$0xff]
    %v734 = vld [vmem:[%s4 + $0x28] sm:$0xff]
    %v735 = vld [vmem:[%s4 + $0x30] sm:$0xff]
    %v736 = vld [vmem:[%s4 + $0x38] sm:$0xff]
    %v737 = vld [vmem:[%s4 + $0x40] sm:$0xff]
    %v738 = vld [vmem:[%s4 + $0x48] sm:$0xff]
    %v739 = vld [vmem:[%s4 + $0x50] sm:$0xff]
    %v740 = vld [vmem:[%s4 + $0x58] sm:$0xff]
    %v741 = vld [vmem:[%s4 + $0x60] sm:$0xff]
    %v742 = vld [vmem:[%s4 + $0x68] sm:$0xff]
    %v743 = vld [vmem:[%s4 + $0x70] sm:$0xff]
    %v744 = vld [vmem:[%s4 + $0x78] sm:$0xff]
    %745 = vmatprep.subr.mxu0 0.0
    %v746 = vand.u32 %v744, 4294901760
    %747 = vmatpush1.msra.mxu0 %v746
    %748 = vmatprep.subr.mxu0 0.0
    %v749 = vand.u32 %v743, 4294901760
    %750 = vmatpush1.msra.mxu0 %v749
    %751 = vmatprep.subr.mxu0 0.0
    %v752 = vand.u32 %v742, 4294901760
    %753 = vmatpush1.msra.mxu0 %v752
    %754 = vmatprep.subr.mxu0 0.0
    %v755 = vand.u32 %v741, 4294901760
    %756 = vmatpush1.msra.mxu0 %v755
    %757 = vmatprep.subr.mxu0 0.0
    %v758 = vand.u32 %v740, 4294901760
    %759 = vmatpush1.msra.mxu0 %v758
    %760 = vmatprep.subr.mxu0 0.0
    %v761 = vand.u32 %v739, 4294901760
    %762 = vmatpush1.msra.mxu0 %v761
    %763 = vmatprep.subr.mxu0 0.0
    %v764 = vand.u32 %v738, 4294901760
    %765 = vmatpush1.msra.mxu0 %v764
    %766 = vmatprep.subr.mxu0 0.0
    %v767 = vand.u32 %v737, 4294901760
    %768 = vmatpush1.msra.mxu0 %v767
    %769 = vmatprep.subr.mxu0 0.0
    %v770 = vand.u32 %v736, 4294901760
    %771 = vmatpush1.msra.mxu0 %v770
    %772 = vmatprep.subr.mxu0 0.0
    %v773 = vand.u32 %v735, 4294901760
    %774 = vmatpush1.msra.mxu0 %v773
    %775 = vmatprep.subr.mxu0 0.0
    %v776 = vand.u32 %v734, 4294901760
    %777 = vmatpush1.msra.mxu0 %v776
    %778 = vmatprep.subr.mxu0 0.0
    %v779 = vand.u32 %v733, 4294901760
    %780 = vmatpush1.msra.mxu0 %v779
    %781 = vmatprep.subr.mxu0 0.0
    %v782 = vand.u32 %v732, 4294901760
    %783 = vmatpush1.msra.mxu0 %v782
    %784 = vmatprep.subr.mxu0 0.0
    %v785 = vand.u32 %v731, 4294901760
    %786 = vmatpush1.msra.mxu0 %v785
    %787 = vmatprep.subr.mxu0 0.0
    %v788 = vand.u32 %v730, 4294901760
    %789 = vmatpush1.msra.mxu0 %v788
    %790 = vmatprep.subr.mxu0 0.0
    %v791 = vand.u32 %v729, 4294901760
    %792 = vmatpush1.msra.mxu0 %v791
    %793 = vmatprep.subr.mxu0 0.0
    %794 = vmatpush2.msra.mxu0 0.0
    %795 = vmatprep.subr.mxu0 0.0
    %796 = vmatpush2.msra.mxu0 0.0
    %797 = vmatprep.subr.mxu0 0.0
    %798 = vmatpush2.msra.mxu0 0.0
    %799 = vmatprep.subr.mxu0 0.0
    %800 = vmatpush2.msra.mxu0 0.0
    %801 = vmatprep.subr.mxu0 0.0
    %802 = vmatpush2.msra.mxu0 0.0
    %803 = vmatprep.subr.mxu0 0.0
    %804 = vmatpush2.msra.mxu0 0.0
    %805 = vmatprep.subr.mxu0 0.0
    %806 = vmatpush2.msra.mxu0 0.0
    %807 = vmatprep.subr.mxu0 0.0
    %808 = vmatpush2.msra.mxu0 0.0
    %809 = vmatprep.subr.mxu0 0.0
    %810 = vmatpush2.msra.mxu0 0.0
    %811 = vmatprep.subr.mxu0 0.0
    %812 = vmatpush2.msra.mxu0 0.0
    %813 = vmatprep.subr.mxu0 0.0
    %814 = vmatpush2.msra.mxu0 0.0
    %815 = vmatprep.subr.mxu0 0.0
    %816 = vmatpush2.msra.mxu0 0.0
    %817 = vmatprep.subr.mxu0 0.0
    %818 = vmatpush2.msra.mxu0 0.0
    %819 = vmatprep.subr.mxu0 0.0
    %820 = vmatpush2.msra.mxu0 0.0
    %821 = vmatprep.subr.mxu0 0.0
    %822 = vmatpush2.msra.mxu0 0.0
    %823 = vmatprep.subr.mxu0 0.0
    %824 = vmatpush2.msra.mxu0 0.0
    %825 = vmatprep.mubr.f32.mxu0 0.0
    %v826 = vand.u32 %v717, 4294901760
    %v827 = vsub.f32 %v717, %v826
    %v828 = vand.u32 %v827, 4294901760
    %v829 = vsub.f32 %v827, %v828
    %v830 = vand.u32 %v829, 4294901760
    %831 = vmatmul.mubr.f32.gmra.mxu0 %v830
    %v832 = vpop.f32.mrf.mxu0
    %v833 = vadd.f32 0.0, %v832
    %v834 = vpop.f32.mrf.mxu0
    %835 = vmatprep.mubr.f32.mxu0 0.0
    %v836 = vand.u32 %v718, 4294901760
    %v837 = vsub.f32 %v718, %v836
    %v838 = vand.u32 %v837, 4294901760
    %v839 = vsub.f32 %v837, %v838
    %v840 = vand.u32 %v839, 4294901760
    %841 = vmatmul.mubr.f32.gmra.mxu0 %v840
    %v842 = vpop.f32.mrf.mxu0
    %v843 = vadd.f32 0.0, %v842
    %v844 = vpop.f32.mrf.mxu0
    %845 = vmatprep.mubr.f32.mxu0 0.0
    %v846 = vand.u32 %v719, 4294901760
    %v847 = vsub.f32 %v719, %v846
    %v848 = vand.u32 %v847, 4294901760
    %v849 = vsub.f32 %v847, %v848
    %v850 = vand.u32 %v849, 4294901760
    %851 = vmatmul.mubr.f32.gmra.mxu0 %v850
    %v852 = vpop.f32.mrf.mxu0
    %v853 = vadd.f32 0.0, %v852
    %v854 = vpop.f32.mrf.mxu0
    %855 = vmatprep.mubr.f32.mxu0 0.0
    %v856 = vand.u32 %v720, 4294901760
    %v857 = vsub.f32 %v720, %v856
    %v858 = vand.u32 %v857, 4294901760
    %v859 = vsub.f32 %v857, %v858
    %v860 = vand.u32 %v859, 4294901760
    %861 = vmatmul.mubr.f32.gmra.mxu0 %v860
    %v862 = vpop.f32.mrf.mxu0
    %v863 = vadd.f32 0.0, %v862
    %v864 = vpop.f32.mrf.mxu0
    %865 = vdwg.mxu0
    %866 = vmatprep.subr.mxu0 0.0
    %v867 = vand.u32 %v744, 4294901760
    %v868 = vsub.f32 %v744, %v867
    %v869 = vand.u32 %v868, 4294901760
    %v870 = vsub.f32 %v868, %v869
    %v871 = vand.u32 %v870, 4294901760
    %872 = vmatpush1.msra.mxu0 %v871
    %873 = vmatprep.subr.mxu0 0.0
    %v874 = vand.u32 %v743, 4294901760
    %v875 = vsub.f32 %v743, %v874
    %v876 = vand.u32 %v875, 4294901760
    %v877 = vsub.f32 %v875, %v876
    %v878 = vand.u32 %v877, 4294901760
    %879 = vmatpush1.msra.mxu0 %v878
    %880 = vmatprep.subr.mxu0 0.0
    %v881 = vand.u32 %v742, 4294901760
    %v882 = vsub.f32 %v742, %v881
    %v883 = vand.u32 %v882, 4294901760
    %v884 = vsub.f32 %v882, %v883
    %v885 = vand.u32 %v884, 4294901760
    %886 = vmatpush1.msra.mxu0 %v885
    %887 = vmatprep.subr.mxu0 0.0
    %v888 = vand.u32 %v741, 4294901760
    %v889 = vsub.f32 %v741, %v888
    %v890 = vand.u32 %v889, 4294901760
    %v891 = vsub.f32 %v889, %v890
    %v892 = vand.u32 %v891, 4294901760
    %893 = vmatpush1.msra.mxu0 %v892
    %894 = vmatprep.subr.mxu0 0.0
    %v895 = vand.u32 %v740, 4294901760
    %v896 = vsub.f32 %v740, %v895
    %v897 = vand.u32 %v896, 4294901760
    %v898 = vsub.f32 %v896, %v897
    %v899 = vand.u32 %v898, 4294901760
    %900 = vmatpush1.msra.mxu0 %v899
    %901 = vmatprep.subr.mxu0 0.0
    %v902 = vand.u32 %v739, 4294901760
    %v903 = vsub.f32 %v739, %v902
    %v904 = vand.u32 %v903, 4294901760
    %v905 = vsub.f32 %v903, %v904
    %v906 = vand.u32 %v905, 4294901760
    %907 = vmatpush1.msra.mxu0 %v906
    %908 = vmatprep.subr.mxu0 0.0
    %v909 = vand.u32 %v738, 4294901760
    %v910 = vsub.f32 %v738, %v909
    %v911 = vand.u32 %v910, 4294901760
    %v912 = vsub.f32 %v910, %v911
    %v913 = vand.u32 %v912, 4294901760
    %914 = vmatpush1.msra.mxu0 %v913
    %915 = vmatprep.subr.mxu0 0.0
    %v916 = vand.u32 %v737, 4294901760
    %v917 = vsub.f32 %v737, %v916
    %v918 = vand.u32 %v917, 4294901760
    %v919 = vsub.f32 %v917, %v918
    %v920 = vand.u32 %v919, 4294901760
    %921 = vmatpush1.msra.mxu0 %v920
    %922 = vmatprep.subr.mxu0 0.0
    %v923 = vand.u32 %v736, 4294901760
    %v924 = vsub.f32 %v736, %v923
    %v925 = vand.u32 %v924, 4294901760
    %v926 = vsub.f32 %v924, %v925
    %v927 = vand.u32 %v926, 4294901760
    %928 = vmatpush1.msra.mxu0 %v927
    %929 = vmatprep.subr.mxu0 0.0
    %v930 = vand.u32 %v735, 4294901760
    %v931 = vsub.f32 %v735, %v930
    %v932 = vand.u32 %v931, 4294901760
    %v933 = vsub.f32 %v931, %v932
    %v934 = vand.u32 %v933, 4294901760
    %935 = vmatpush1.msra.mxu0 %v934
    %936 = vmatprep.subr.mxu0 0.0
    %v937 = vand.u32 %v734, 4294901760
    %v938 = vsub.f32 %v734, %v937
    %v939 = vand.u32 %v938, 4294901760
    %v940 = vsub.f32 %v938, %v939
    %v941 = vand.u32 %v940, 4294901760
    %942 = vmatpush1.msra.mxu0 %v941
    %943 = vmatprep.subr.mxu0 0.0
    %v944 = vand.u32 %v733, 4294901760
    %v945 = vsub.f32 %v733, %v944
    %v946 = vand.u32 %v945, 4294901760
    %v947 = vsub.f32 %v945, %v946
    %v948 = vand.u32 %v947, 4294901760
    %949 = vmatpush1.msra.mxu0 %v948
    %950 = vmatprep.subr.mxu0 0.0
    %v951 = vand.u32 %v732, 4294901760
    %v952 = vsub.f32 %v732, %v951
    %v953 = vand.u32 %v952, 4294901760
    %v954 = vsub.f32 %v952, %v953
    %v955 = vand.u32 %v954, 4294901760
    %956 = vmatpush1.msra.mxu0 %v955
    %957 = vmatprep.subr.mxu0 0.0
    %v958 = vand.u32 %v731, 4294901760
    %v959 = vsub.f32 %v731, %v958
    %v960 = vand.u32 %v959, 4294901760
    %v961 = vsub.f32 %v959, %v960
    %v962 = vand.u32 %v961, 4294901760
    %963 = vmatpush1.msra.mxu0 %v962
    %964 = vmatprep.subr.mxu0 0.0
    %v965 = vand.u32 %v730, 4294901760
    %v966 = vsub.f32 %v730, %v965
    %v967 = vand.u32 %v966, 4294901760
    %v968 = vsub.f32 %v966, %v967
    %v969 = vand.u32 %v968, 4294901760
    %970 = vmatpush1.msra.mxu0 %v969
    %971 = vmatprep.subr.mxu0 0.0
    %v972 = vand.u32 %v729, 4294901760
    %v973 = vsub.f32 %v729, %v972
    %v974 = vand.u32 %v973, 4294901760
    %v975 = vsub.f32 %v973, %v974
    %v976 = vand.u32 %v975, 4294901760
    %977 = vmatpush1.msra.mxu0 %v976
    %978 = vmatprep.subr.mxu0 0.0
    %979 = vmatpush2.msra.mxu0 0.0
    %980 = vmatprep.subr.mxu0 0.0
    %981 = vmatpush2.msra.mxu0 0.0
    %982 = vmatprep.subr.mxu0 0.0
    %983 = vmatpush2.msra.mxu0 0.0
    %984 = vmatprep.subr.mxu0 0.0
    %985 = vmatpush2.msra.mxu0 0.0
    %986 = vmatprep.subr.mxu0 0.0
    %987 = vmatpush2.msra.mxu0 0.0
    %988 = vmatprep.subr.mxu0 0.0
    %989 = vmatpush2.msra.mxu0 0.0
    %990 = vmatprep.subr.mxu0 0.0
    %991 = vmatpush2.msra.mxu0 0.0
    %992 = vmatprep.subr.mxu0 0.0
    %993 = vmatpush2.msra.mxu0 0.0
    %994 = vmatprep.subr.mxu0 0.0
    %995 = vmatpush2.msra.mxu0 0.0
    %996 = vmatprep.subr.mxu0 0.0
    %997 = vmatpush2.msra.mxu0 0.0
    %998 = vmatprep.subr.mxu0 0.0
    %999 = vmatpush2.msra.mxu0 0.0
    %1000 = vmatprep.subr.mxu0 0.0
    %1001 = vmatpush2.msra.mxu0 0.0
    %1002 = vmatprep.subr.mxu0 0.0
    %1003 = vmatpush2.msra.mxu0 0.0
    %1004 = vmatprep.subr.mxu0 0.0
    %1005 = vmatpush2.msra.mxu0 0.0
    %1006 = vmatprep.subr.mxu0 0.0
    %1007 = vmatpush2.msra.mxu0 0.0
    %1008 = vmatprep.subr.mxu0 0.0
    %1009 = vmatpush2.msra.mxu0 0.0
    %1010 = vmatprep.mubr.f32.mxu0 0.0
    %v1011 = vand.u32 %v717, 4294901760
    %1012 = vmatmul.mubr.f32.gmra.mxu0 %v1011
    %v1013 = vpop.f32.mrf.mxu0
    %v1014 = vadd.f32 %v833, %v1013
    %v1015 = vpop.f32.mrf.mxu0
    %1016 = vmatprep.mubr.f32.mxu0 0.0
    %v1017 = vand.u32 %v718, 4294901760
    %1018 = vmatmul.mubr.f32.gmra.mxu0 %v1017
    %v1019 = vpop.f32.mrf.mxu0
    %v1020 = vadd.f32 %v843, %v1019
    %v1021 = vpop.f32.mrf.mxu0
    %1022 = vmatprep.mubr.f32.mxu0 0.0
    %v1023 = vand.u32 %v719, 4294901760
    %1024 = vmatmul.mubr.f32.gmra.mxu0 %v1023
    %v1025 = vpop.f32.mrf.mxu0
    %v1026 = vadd.f32 %v853, %v1025
    %v1027 = vpop.f32.mrf.mxu0
    %1028 = vmatprep.mubr.f32.mxu0 0.0
    %v1029 = vand.u32 %v720, 4294901760
    %1030 = vmatmul.mubr.f32.gmra.mxu0 %v1029
    %v1031 = vpop.f32.mrf.mxu0
    %v1032 = vadd.f32 %v863, %v1031
    %v1033 = vpop.f32.mrf.mxu0
    %1034 = vdwg.mxu0
    %1035 = vmatprep.subr.mxu0 0.0
    %v1036 = vand.u32 %v744, 4294901760
    %v1037 = vsub.f32 %v744, %v1036
    %1038 = vmatpush1.msra.mxu0 %v1037
    %1039 = vmatprep.subr.mxu0 0.0
    %v1040 = vand.u32 %v743, 4294901760
    %v1041 = vsub.f32 %v743, %v1040
    %1042 = vmatpush1.msra.mxu0 %v1041
    %1043 = vmatprep.subr.mxu0 0.0
    %v1044 = vand.u32 %v742, 4294901760
    %v1045 = vsub.f32 %v742, %v1044
    %1046 = vmatpush1.msra.mxu0 %v1045
    %1047 = vmatprep.subr.mxu0 0.0
    %v1048 = vand.u32 %v741, 4294901760
    %v1049 = vsub.f32 %v741, %v1048
    %1050 = vmatpush1.msra.mxu0 %v1049
    %1051 = vmatprep.subr.mxu0 0.0
    %v1052 = vand.u32 %v740, 4294901760
    %v1053 = vsub.f32 %v740, %v1052
    %1054 = vmatpush1.msra.mxu0 %v1053
    %1055 = vmatprep.subr.mxu0 0.0
    %v1056 = vand.u32 %v739, 4294901760
    %v1057 = vsub.f32 %v739, %v1056
    %1058 = vmatpush1.msra.mxu0 %v1057
    %1059 = vmatprep.subr.mxu0 0.0
    %v1060 = vand.u32 %v738, 4294901760
    %v1061 = vsub.f32 %v738, %v1060
    %1062 = vmatpush1.msra.mxu0 %v1061
    %1063 = vmatprep.subr.mxu0 0.0
    %v1064 = vand.u32 %v737, 4294901760
    %v1065 = vsub.f32 %v737, %v1064
    %1066 = vmatpush1.msra.mxu0 %v1065
    %1067 = vmatprep.subr.mxu0 0.0
    %v1068 = vand.u32 %v736, 4294901760
    %v1069 = vsub.f32 %v736, %v1068
    %1070 = vmatpush1.msra.mxu0 %v1069
    %1071 = vmatprep.subr.mxu0 0.0
    %v1072 = vand.u32 %v735, 4294901760
    %v1073 = vsub.f32 %v735, %v1072
    %1074 = vmatpush1.msra.mxu0 %v1073
    %1075 = vmatprep.subr.mxu0 0.0
    %v1076 = vand.u32 %v734, 4294901760
    %v1077 = vsub.f32 %v734, %v1076
    %1078 = vmatpush1.msra.mxu0 %v1077
    %1079 = vmatprep.subr.mxu0 0.0
    %v1080 = vand.u32 %v733, 4294901760
    %v1081 = vsub.f32 %v733, %v1080
    %1082 = vmatpush1.msra.mxu0 %v1081
    %1083 = vmatprep.subr.mxu0 0.0
    %v1084 = vand.u32 %v732, 4294901760
    %v1085 = vsub.f32 %v732, %v1084
    %1086 = vmatpush1.msra.mxu0 %v1085
    %1087 = vmatprep.subr.mxu0 0.0
    %v1088 = vand.u32 %v731, 4294901760
    %v1089 = vsub.f32 %v731, %v1088
    %1090 = vmatpush1.msra.mxu0 %v1089
    %1091 = vmatprep.subr.mxu0 0.0
    %v1092 = vand.u32 %v730, 4294901760
    %v1093 = vsub.f32 %v730, %v1092
    %1094 = vmatpush1.msra.mxu0 %v1093
    %1095 = vmatprep.subr.mxu0 0.0
    %v1096 = vand.u32 %v729, 4294901760
    %v1097 = vsub.f32 %v729, %v1096
    %1098 = vmatpush1.msra.mxu0 %v1097
    %1099 = vmatprep.subr.mxu0 0.0
    %1100 = vmatpush2.msra.mxu0 0.0
    %1101 = vmatprep.subr.mxu0 0.0
    %1102 = vmatpush2.msra.mxu0 0.0
    %1103 = vmatprep.subr.mxu0 0.0
    %1104 = vmatpush2.msra.mxu0 0.0
    %1105 = vmatprep.subr.mxu0 0.0
    %1106 = vmatpush2.msra.mxu0 0.0
    %1107 = vmatprep.subr.mxu0 0.0
    %1108 = vmatpush2.msra.mxu0 0.0
    %1109 = vmatprep.subr.mxu0 0.0
    %1110 = vmatpush2.msra.mxu0 0.0
    %1111 = vmatprep.subr.mxu0 0.0
    %1112 = vmatpush2.msra.mxu0 0.0
    %1113 = vmatprep.subr.mxu0 0.0
    %1114 = vmatpush2.msra.mxu0 0.0
    %1115 = vmatprep.subr.mxu0 0.0
    %1116 = vmatpush2.msra.mxu0 0.0
    %1117 = vmatprep.subr.mxu0 0.0
    %1118 = vmatpush2.msra.mxu0 0.0
    %1119 = vmatprep.subr.mxu0 0.0
    %1120 = vmatpush2.msra.mxu0 0.0
    %1121 = vmatprep.subr.mxu0 0.0
    %1122 = vmatpush2.msra.mxu0 0.0
    %1123 = vmatprep.subr.mxu0 0.0
    %1124 = vmatpush2.msra.mxu0 0.0
    %1125 = vmatprep.subr.mxu0 0.0
    %1126 = vmatpush2.msra.mxu0 0.0
    %1127 = vmatprep.subr.mxu0 0.0
    %1128 = vmatpush2.msra.mxu0 0.0
    %1129 = vmatprep.subr.mxu0 0.0
    %1130 = vmatpush2.msra.mxu0 0.0
    %1131 = vmatprep.mubr.f32.mxu0 0.0
    %v1132 = vand.u32 %v717, 4294901760
    %v1133 = vsub.f32 %v717, %v1132
    %1134 = vmatmul.mubr.f32.gmra.mxu0 %v1133
    %v1135 = vpop.f32.mrf.mxu0
    %v1136 = vadd.f32 %v1014, %v1135
    %v1137 = vpop.f32.mrf.mxu0
    %1138 = vmatprep.mubr.f32.mxu0 0.0
    %v1139 = vand.u32 %v718, 4294901760
    %v1140 = vsub.f32 %v718, %v1139
    %1141 = vmatmul.mubr.f32.gmra.mxu0 %v1140
    %v1142 = vpop.f32.mrf.mxu0
    %v1143 = vadd.f32 %v1020, %v1142
    %v1144 = vpop.f32.mrf.mxu0
    %1145 = vmatprep.mubr.f32.mxu0 0.0
    %v1146 = vand.u32 %v719, 4294901760
    %v1147 = vsub.f32 %v719, %v1146
    %1148 = vmatmul.mubr.f32.gmra.mxu0 %v1147
    %v1149 = vpop.f32.mrf.mxu0
    %v1150 = vadd.f32 %v1026, %v1149
    %v1151 = vpop.f32.mrf.mxu0
    %1152 = vmatprep.mubr.f32.mxu0 0.0
    %v1153 = vand.u32 %v720, 4294901760
    %v1154 = vsub.f32 %v720, %v1153
    %1155 = vmatmul.mubr.f32.gmra.mxu0 %v1154
    %v1156 = vpop.f32.mrf.mxu0
    %v1157 = vadd.f32 %v1032, %v1156
    %v1158 = vpop.f32.mrf.mxu0
    %1159 = vdwg.mxu0
    %1160 = vmatprep.subr.mxu0 0.0
    %v1161 = vand.u32 %v744, 4294901760
    %1162 = vmatpush1.msra.mxu0 %v1161
    %1163 = vmatprep.subr.mxu0 0.0
    %v1164 = vand.u32 %v743, 4294901760
    %1165 = vmatpush1.msra.mxu0 %v1164
    %1166 = vmatprep.subr.mxu0 0.0
    %v1167 = vand.u32 %v742, 4294901760
    %1168 = vmatpush1.msra.mxu0 %v1167
    %1169 = vmatprep.subr.mxu0 0.0
    %v1170 = vand.u32 %v741, 4294901760
    %1171 = vmatpush1.msra.mxu0 %v1170
    %1172 = vmatprep.subr.mxu0 0.0
    %v1173 = vand.u32 %v740, 4294901760
    %1174 = vmatpush1.msra.mxu0 %v1173
    %1175 = vmatprep.subr.mxu0 0.0
    %v1176 = vand.u32 %v739, 4294901760
    %1177 = vmatpush1.msra.mxu0 %v1176
    %1178 = vmatprep.subr.mxu0 0.0
    %v1179 = vand.u32 %v738, 4294901760
    %1180 = vmatpush1.msra.mxu0 %v1179
    %1181 = vmatprep.subr.mxu0 0.0
    %v1182 = vand.u32 %v737, 4294901760
    %1183 = vmatpush1.msra.mxu0 %v1182
    %1184 = vmatprep.subr.mxu0 0.0
    %v1185 = vand.u32 %v736, 4294901760
    %1186 = vmatpush1.msra.mxu0 %v1185
    %1187 = vmatprep.subr.mxu0 0.0
    %v1188 = vand.u32 %v735, 4294901760
    %1189 = vmatpush1.msra.mxu0 %v1188
    %1190 = vmatprep.subr.mxu0 0.0
    %v1191 = vand.u32 %v734, 4294901760
    %1192 = vmatpush1.msra.mxu0 %v1191
    %1193 = vmatprep.subr.mxu0 0.0
    %v1194 = vand.u32 %v733, 4294901760
    %1195 = vmatpush1.msra.mxu0 %v1194
    %1196 = vmatprep.subr.mxu0 0.0
    %v1197 = vand.u32 %v732, 4294901760
    %1198 = vmatpush1.msra.mxu0 %v1197
    %1199 = vmatprep.subr.mxu0 0.0
    %v1200 = vand.u32 %v731, 4294901760
    %1201 = vmatpush1.msra.mxu0 %v1200
    %1202 = vmatprep.subr.mxu0 0.0
    %v1203 = vand.u32 %v730, 4294901760
    %1204 = vmatpush1.msra.mxu0 %v1203
    %1205 = vmatprep.subr.mxu0 0.0
    %v1206 = vand.u32 %v729, 4294901760
    %1207 = vmatpush1.msra.mxu0 %v1206
    %1208 = vmatprep.subr.mxu0 0.0
    %1209 = vmatpush2.msra.mxu0 0.0
    %1210 = vmatprep.subr.mxu0 0.0
    %1211 = vmatpush2.msra.mxu0 0.0
    %1212 = vmatprep.subr.mxu0 0.0
    %1213 = vmatpush2.msra.mxu0 0.0
    %1214 = vmatprep.subr.mxu0 0.0
    %1215 = vmatpush2.msra.mxu0 0.0
    %1216 = vmatprep.subr.mxu0 0.0
    %1217 = vmatpush2.msra.mxu0 0.0
    %1218 = vmatprep.subr.mxu0 0.0
    %1219 = vmatpush2.msra.mxu0 0.0
    %1220 = vmatprep.subr.mxu0 0.0
    %1221 = vmatpush2.msra.mxu0 0.0
    %1222 = vmatprep.subr.mxu0 0.0
    %1223 = vmatpush2.msra.mxu0 0.0
    %1224 = vmatprep.subr.mxu0 0.0
    %1225 = vmatpush2.msra.mxu0 0.0
    %1226 = vmatprep.subr.mxu0 0.0
    %1227 = vmatpush2.msra.mxu0 0.0
    %1228 = vmatprep.subr.mxu0 0.0
    %1229 = vmatpush2.msra.mxu0 0.0
    %1230 = vmatprep.subr.mxu0 0.0
    %1231 = vmatpush2.msra.mxu0 0.0
    %1232 = vmatprep.subr.mxu0 0.0
    %1233 = vmatpush2.msra.mxu0 0.0
    %1234 = vmatprep.subr.mxu0 0.0
    %1235 = vmatpush2.msra.mxu0 0.0
    %1236 = vmatprep.subr.mxu0 0.0
    %1237 = vmatpush2.msra.mxu0 0.0
    %1238 = vmatprep.subr.mxu0 0.0
    %1239 = vmatpush2.msra.mxu0 0.0
    %1240 = vmatprep.mubr.f32.mxu0 0.0
    %v1241 = vand.u32 %v717, 4294901760
    %v1242 = vsub.f32 %v717, %v1241
    %v1243 = vand.u32 %v1242, 4294901760
    %1244 = vmatmul.mubr.f32.gmra.mxu0 %v1243
    %v1245 = vpop.f32.mrf.mxu0
    %v1246 = vadd.f32 %v1136, %v1245
    %v1247 = vpop.f32.mrf.mxu0
    %1248 = vmatprep.mubr.f32.mxu0 0.0
    %v1249 = vand.u32 %v718, 4294901760
    %v1250 = vsub.f32 %v718, %v1249
    %v1251 = vand.u32 %v1250, 4294901760
    %1252 = vmatmul.mubr.f32.gmra.mxu0 %v1251
    %v1253 = vpop.f32.mrf.mxu0
    %v1254 = vadd.f32 %v1143, %v1253
    %v1255 = vpop.f32.mrf.mxu0
    %1256 = vmatprep.mubr.f32.mxu0 0.0
    %v1257 = vand.u32 %v719, 4294901760
    %v1258 = vsub.f32 %v719, %v1257
    %v1259 = vand.u32 %v1258, 4294901760
    %1260 = vmatmul.mubr.f32.gmra.mxu0 %v1259
    %v1261 = vpop.f32.mrf.mxu0
    %v1262 = vadd.f32 %v1150, %v1261
    %v1263 = vpop.f32.mrf.mxu0
    %1264 = vmatprep.mubr.f32.mxu0 0.0
    %v1265 = vand.u32 %v720, 4294901760
    %v1266 = vsub.f32 %v720, %v1265
    %v1267 = vand.u32 %v1266, 4294901760
    %1268 = vmatmul.mubr.f32.gmra.mxu0 %v1267
    %v1269 = vpop.f32.mrf.mxu0
    %v1270 = vadd.f32 %v1157, %v1269
    %v1271 = vpop.f32.mrf.mxu0
    %1272 = vdwg.mxu0
    %1273 = vmatprep.subr.mxu0 0.0
    %v1274 = vand.u32 %v744, 4294901760
    %v1275 = vsub.f32 %v744, %v1274
    %v1276 = vand.u32 %v1275, 4294901760
    %1277 = vmatpush1.msra.mxu0 %v1276
    %1278 = vmatprep.subr.mxu0 0.0
    %v1279 = vand.u32 %v743, 4294901760
    %v1280 = vsub.f32 %v743, %v1279
    %v1281 = vand.u32 %v1280, 4294901760
    %1282 = vmatpush1.msra.mxu0 %v1281
    %1283 = vmatprep.subr.mxu0 0.0
    %v1284 = vand.u32 %v742, 4294901760
    %v1285 = vsub.f32 %v742, %v1284
    %v1286 = vand.u32 %v1285, 4294901760
    %1287 = vmatpush1.msra.mxu0 %v1286
    %1288 = vmatprep.subr.mxu0 0.0
    %v1289 = vand.u32 %v741, 4294901760
    %v1290 = vsub.f32 %v741, %v1289
    %v1291 = vand.u32 %v1290, 4294901760
    %1292 = vmatpush1.msra.mxu0 %v1291
    %1293 = vmatprep.subr.mxu0 0.0
    %v1294 = vand.u32 %v740, 4294901760
    %v1295 = vsub.f32 %v740, %v1294
    %v1296 = vand.u32 %v1295, 4294901760
    %1297 = vmatpush1.msra.mxu0 %v1296
    %1298 = vmatprep.subr.mxu0 0.0
    %v1299 = vand.u32 %v739, 4294901760
    %v1300 = vsub.f32 %v739, %v1299
    %v1301 = vand.u32 %v1300, 4294901760
    %1302 = vmatpush1.msra.mxu0 %v1301
    %1303 = vmatprep.subr.mxu0 0.0
    %v1304 = vand.u32 %v738, 4294901760
    %v1305 = vsub.f32 %v738, %v1304
    %v1306 = vand.u32 %v1305, 4294901760
    %1307 = vmatpush1.msra.mxu0 %v1306
    %1308 = vmatprep.subr.mxu0 0.0
    %v1309 = vand.u32 %v737, 4294901760
    %v1310 = vsub.f32 %v737, %v1309
    %v1311 = vand.u32 %v1310, 4294901760
    %1312 = vmatpush1.msra.mxu0 %v1311
    %1313 = vmatprep.subr.mxu0 0.0
    %v1314 = vand.u32 %v736, 4294901760
    %v1315 = vsub.f32 %v736, %v1314
    %v1316 = vand.u32 %v1315, 4294901760
    %1317 = vmatpush1.msra.mxu0 %v1316
    %1318 = vmatprep.subr.mxu0 0.0
    %v1319 = vand.u32 %v735, 4294901760
    %v1320 = vsub.f32 %v735, %v1319
    %v1321 = vand.u32 %v1320, 4294901760
    %1322 = vmatpush1.msra.mxu0 %v1321
    %1323 = vmatprep.subr.mxu0 0.0
    %v1324 = vand.u32 %v734, 4294901760
    %v1325 = vsub.f32 %v734, %v1324
    %v1326 = vand.u32 %v1325, 4294901760
    %1327 = vmatpush1.msra.mxu0 %v1326
    %1328 = vmatprep.subr.mxu0 0.0
    %v1329 = vand.u32 %v733, 4294901760
    %v1330 = vsub.f32 %v733, %v1329
    %v1331 = vand.u32 %v1330, 4294901760
    %1332 = vmatpush1.msra.mxu0 %v1331
    %1333 = vmatprep.subr.mxu0 0.0
    %v1334 = vand.u32 %v732, 4294901760
    %v1335 = vsub.f32 %v732, %v1334
    %v1336 = vand.u32 %v1335, 4294901760
    %1337 = vmatpush1.msra.mxu0 %v1336
    %1338 = vmatprep.subr.mxu0 0.0
    %v1339 = vand.u32 %v731, 4294901760
    %v1340 = vsub.f32 %v731, %v1339
    %v1341 = vand.u32 %v1340, 4294901760
    %1342 = vmatpush1.msra.mxu0 %v1341
    %1343 = vmatprep.subr.mxu0 0.0
    %v1344 = vand.u32 %v730, 4294901760
    %v1345 = vsub.f32 %v730, %v1344
    %v1346 = vand.u32 %v1345, 4294901760
    %1347 = vmatpush1.msra.mxu0 %v1346
    %1348 = vmatprep.subr.mxu0 0.0
    %v1349 = vand.u32 %v729, 4294901760
    %v1350 = vsub.f32 %v729, %v1349
    %v1351 = vand.u32 %v1350, 4294901760
    %1352 = vmatpush1.msra.mxu0 %v1351
    %1353 = vmatprep.subr.mxu0 0.0
    %1354 = vmatpush2.msra.mxu0 0.0
    %1355 = vmatprep.subr.mxu0 0.0
    %1356 = vmatpush2.msra.mxu0 0.0
    %1357 = vmatprep.subr.mxu0 0.0
    %1358 = vmatpush2.msra.mxu0 0.0
    %1359 = vmatprep.subr.mxu0 0.0
    %1360 = vmatpush2.msra.mxu0 0.0
    %1361 = vmatprep.subr.mxu0 0.0
    %1362 = vmatpush2.msra.mxu0 0.0
    %1363 = vmatprep.subr.mxu0 0.0
    %1364 = vmatpush2.msra.mxu0 0.0
    %1365 = vmatprep.subr.mxu0 0.0
    %1366 = vmatpush2.msra.mxu0 0.0
    %1367 = vmatprep.subr.mxu0 0.0
    %1368 = vmatpush2.msra.mxu0 0.0
    %1369 = vmatprep.subr.mxu0 0.0
    %1370 = vmatpush2.msra.mxu0 0.0
    %1371 = vmatprep.subr.mxu0 0.0
    %1372 = vmatpush2.msra.mxu0 0.0
    %1373 = vmatprep.subr.mxu0 0.0
    %1374 = vmatpush2.msra.mxu0 0.0
    %1375 = vmatprep.subr.mxu0 0.0
    %1376 = vmatpush2.msra.mxu0 0.0
    %1377 = vmatprep.subr.mxu0 0.0
    %1378 = vmatpush2.msra.mxu0 0.0
    %1379 = vmatprep.subr.mxu0 0.0
    %1380 = vmatpush2.msra.mxu0 0.0
    %1381 = vmatprep.subr.mxu0 0.0
    %1382 = vmatpush2.msra.mxu0 0.0
    %1383 = vmatprep.subr.mxu0 0.0
    %1384 = vmatpush2.msra.mxu0 0.0
    %1385 = vmatprep.mubr.f32.mxu0 0.0
    %v1386 = vand.u32 %v717, 4294901760
    %1387 = vmatmul.mubr.f32.gmra.mxu0 %v1386
    %v1388 = vpop.f32.mrf.mxu0
    %v1389 = vadd.f32 %v1246, %v1388
    %v1390 = vpop.f32.mrf.mxu0
    %1391 = vmatprep.mubr.f32.mxu0 0.0
    %v1392 = vand.u32 %v718, 4294901760
    %1393 = vmatmul.mubr.f32.gmra.mxu0 %v1392
    %v1394 = vpop.f32.mrf.mxu0
    %v1395 = vadd.f32 %v1254, %v1394
    %v1396 = vpop.f32.mrf.mxu0
    %1397 = vmatprep.mubr.f32.mxu0 0.0
    %v1398 = vand.u32 %v719, 4294901760
    %1399 = vmatmul.mubr.f32.gmra.mxu0 %v1398
    %v1400 = vpop.f32.mrf.mxu0
    %v1401 = vadd.f32 %v1262, %v1400
    %v1402 = vpop.f32.mrf.mxu0
    %1403 = vmatprep.mubr.f32.mxu0 0.0
    %v1404 = vand.u32 %v720, 4294901760
    %1405 = vmatmul.mubr.f32.gmra.mxu0 %v1404
    %v1406 = vpop.f32.mrf.mxu0
    %v1407 = vadd.f32 %v1270, %v1406
    %v1408 = vpop.f32.mrf.mxu0
    %1409 = vdwg.mxu0
    %1410 = vmatprep.subr.mxu0 0.0
    %v1411 = vand.u32 %v744, 4294901760
    %1412 = vmatpush1.msra.mxu0 %v1411
    %1413 = vmatprep.subr.mxu0 0.0
    %v1414 = vand.u32 %v743, 4294901760
    %1415 = vmatpush1.msra.mxu0 %v1414
    %1416 = vmatprep.subr.mxu0 0.0
    %v1417 = vand.u32 %v742, 4294901760
    %1418 = vmatpush1.msra.mxu0 %v1417
    %1419 = vmatprep.subr.mxu0 0.0
    %v1420 = vand.u32 %v741, 4294901760
    %1421 = vmatpush1.msra.mxu0 %v1420
    %1422 = vmatprep.subr.mxu0 0.0
    %v1423 = vand.u32 %v740, 4294901760
    %1424 = vmatpush1.msra.mxu0 %v1423
    %1425 = vmatprep.subr.mxu0 0.0
    %v1426 = vand.u32 %v739, 4294901760
    %1427 = vmatpush1.msra.mxu0 %v1426
    %1428 = vmatprep.subr.mxu0 0.0
    %v1429 = vand.u32 %v738, 4294901760
    %1430 = vmatpush1.msra.mxu0 %v1429
    %1431 = vmatprep.subr.mxu0 0.0
    %v1432 = vand.u32 %v737, 4294901760
    %1433 = vmatpush1.msra.mxu0 %v1432
    %1434 = vmatprep.subr.mxu0 0.0
    %v1435 = vand.u32 %v736, 4294901760
    %1436 = vmatpush1.msra.mxu0 %v1435
    %1437 = vmatprep.subr.mxu0 0.0
    %v1438 = vand.u32 %v735, 4294901760
    %1439 = vmatpush1.msra.mxu0 %v1438
    %1440 = vmatprep.subr.mxu0 0.0
    %v1441 = vand.u32 %v734, 4294901760
    %1442 = vmatpush1.msra.mxu0 %v1441
    %1443 = vmatprep.subr.mxu0 0.0
    %v1444 = vand.u32 %v733, 4294901760
    %1445 = vmatpush1.msra.mxu0 %v1444
    %1446 = vmatprep.subr.mxu0 0.0
    %v1447 = vand.u32 %v732, 4294901760
    %1448 = vmatpush1.msra.mxu0 %v1447
    %1449 = vmatprep.subr.mxu0 0.0
    %v1450 = vand.u32 %v731, 4294901760
    %1451 = vmatpush1.msra.mxu0 %v1450
    %1452 = vmatprep.subr.mxu0 0.0
    %v1453 = vand.u32 %v730, 4294901760
    %1454 = vmatpush1.msra.mxu0 %v1453
    %1455 = vmatprep.subr.mxu0 0.0
    %v1456 = vand.u32 %v729, 4294901760
    %1457 = vmatpush1.msra.mxu0 %v1456
    %1458 = vmatprep.subr.mxu0 0.0
    %1459 = vmatpush2.msra.mxu0 0.0
    %1460 = vmatprep.subr.mxu0 0.0
    %1461 = vmatpush2.msra.mxu0 0.0
    %1462 = vmatprep.subr.mxu0 0.0
    %1463 = vmatpush2.msra.mxu0 0.0
    %1464 = vmatprep.subr.mxu0 0.0
    %1465 = vmatpush2.msra.mxu0 0.0
    %1466 = vmatprep.subr.mxu0 0.0
    %1467 = vmatpush2.msra.mxu0 0.0
    %1468 = vmatprep.subr.mxu0 0.0
    %1469 = vmatpush2.msra.mxu0 0.0
    %1470 = vmatprep.subr.mxu0 0.0
    %1471 = vmatpush2.msra.mxu0 0.0
    %1472 = vmatprep.subr.mxu0 0.0
    %1473 = vmatpush2.msra.mxu0 0.0
    %1474 = vmatprep.subr.mxu0 0.0
    %1475 = vmatpush2.msra.mxu0 0.0
    %1476 = vmatprep.subr.mxu0 0.0
    %1477 = vmatpush2.msra.mxu0 0.0
    %1478 = vmatprep.subr.mxu0 0.0
    %1479 = vmatpush2.msra.mxu0 0.0
    %1480 = vmatprep.subr.mxu0 0.0
    %1481 = vmatpush2.msra.mxu0 0.0
    %1482 = vmatprep.subr.mxu0 0.0
    %1483 = vmatpush2.msra.mxu0 0.0
    %1484 = vmatprep.subr.mxu0 0.0
    %1485 = vmatpush2.msra.mxu0 0.0
    %1486 = vmatprep.subr.mxu0 0.0
    %1487 = vmatpush2.msra.mxu0 0.0
    %1488 = vmatprep.subr.mxu0 0.0
    %1489 = vmatpush2.msra.mxu0 0.0
    %1490 = vmatprep.mubr.f32.mxu0 0.0
    %v1491 = vand.u32 %v717, 4294901760
    %1492 = vmatmul.mubr.f32.gmra.mxu0 %v1491
    %v1493 = vpop.f32.mrf.mxu0
    %v1494 = vadd.f32 %v1389, %v1493
    %v1495 = vpop.f32.mrf.mxu0
    %1496 = vmatprep.mubr.f32.mxu0 0.0
    %v1497 = vand.u32 %v718, 4294901760
    %1498 = vmatmul.mubr.f32.gmra.mxu0 %v1497
    %v1499 = vpop.f32.mrf.mxu0
    %v1500 = vadd.f32 %v1395, %v1499
    %v1501 = vpop.f32.mrf.mxu0
    %1502 = vmatprep.mubr.f32.mxu0 0.0
    %v1503 = vand.u32 %v719, 4294901760
    %1504 = vmatmul.mubr.f32.gmra.mxu0 %v1503
    %v1505 = vpop.f32.mrf.mxu0
    %v1506 = vadd.f32 %v1401, %v1505
    %v1507 = vpop.f32.mrf.mxu0
    %1508 = vmatprep.mubr.f32.mxu0 0.0
    %v1509 = vand.u32 %v720, 4294901760
    %1510 = vmatmul.mubr.f32.gmra.mxu0 %v1509
    %v1511 = vpop.f32.mrf.mxu0
    %v1512 = vadd.f32 %v1407, %v1511
    %v1513 = vpop.f32.mrf.mxu0
    %1514 = vdwg.mxu0
    %vm1515 = vcmp.gt.f32.partialorder %v722, 0.0
    %vm1516 = vcmp.gt.f32.partialorder %v724, 0.0
    %vm1517 = vcmp.gt.f32.partialorder %v726, 0.0
    %vm1518 = vcmp.gt.f32.partialorder %v728, 0.0
    %v1519 = vmax.f32 %v722, 1.0
    %v1520 = vmax.f32 %v724, 1.0
    %v1521 = vmax.f32 %v726, 1.0
    %v1522 = vmax.f32 %v728, 1.0
    %v1523 = vrcp.pop %v1519
    %v1524 = vmul.f32 %v1494, %v1523
    %v1525 = vrcp.pop %v1520
    %v1526 = vmul.f32 %v1500, %v1525
    %v1527 = vrcp.pop %v1521
    %v1528 = vmul.f32 %v1506, %v1527
    %v1529 = vrcp.pop %v1522
    %v1530 = vmul.f32 %v1512, %v1529
    %v1531 = vsel %vm1515, 1, 0
    %v1532 = vsel %vm1516, 1, 0
    %v1533 = vsel %vm1517, 1, 0
    %v1534 = vsel %vm1518, 1, 0
    %vm1535 = vcmp.eq.s32.totalorder %v1531, 1
    %vm1536 = vcmp.eq.s32.totalorder %v1532, 1
    %vm1537 = vcmp.eq.s32.totalorder %v1533, 1
    %vm1538 = vcmp.eq.s32.totalorder %v1534, 1
    %v1539 = vsel %vm1535, %v1524, 0.0
    %v1540 = vsel %vm1536, %v1526, 0.0
    %v1541 = vsel %vm1537, %v1528, 0.0
    %v1542 = vsel %vm1538, %v1530, 0.0
    %v1543 = vld [vmem:[%s10] sm:$0x7]
    %v1544 = vld [vmem:[%s8] sm:$0xff]
    %v1545 = vlaneseq
    %v1546 = vshrl.u32 %v1545, 7
    %v1547 = vsub.s32 0, %v1546
    %v1548 = vrot.slane %v1543, %v1547
    %v1550 = vsel %vm73, %v1539, 0
    %v1553 = vsel %vm73, %v1540, 0
    %v1556 = vsel %vm73, %v1541, 0
    %v1559 = vsel %vm73, %v1542, 0
    %1561 = vmatprep.subr.mxu0 0.0
    %1562 = vmatpush1.msra.mxu0 0.0
    %1563 = vmatprep.subr.mxu0 0.0
    %1564 = vmatpush1.msra.mxu0 0.0
    %1565 = vmatprep.subr.mxu0 0.0
    %1566 = vmatpush1.msra.mxu0 0.0
    %1567 = vmatprep.subr.mxu0 0.0
    %1568 = vmatpush1.msra.mxu0 0.0
    %1569 = vmatprep.subr.mxu0 0.0
    %1570 = vmatpush1.msra.mxu0 0.0
    %1571 = vmatprep.subr.mxu0 0.0
    %1572 = vmatpush1.msra.mxu0 0.0
    %1573 = vmatprep.subr.mxu0 0.0
    %1574 = vmatpush1.msra.mxu0 0.0
    %1575 = vmatprep.subr.mxu0 0.0
    %1576 = vmatpush1.msra.mxu0 0.0
    %1577 = vmatprep.subr.mxu0 0.0
    %1578 = vmatpush1.msra.mxu0 0.0
    %1579 = vmatprep.subr.mxu0 0.0
    %1580 = vmatpush1.msra.mxu0 0.0
    %1581 = vmatprep.subr.mxu0 0.0
    %1582 = vmatpush1.msra.mxu0 0.0
    %1583 = vmatprep.subr.mxu0 0.0
    %1584 = vmatpush1.msra.mxu0 0.0
    %1585 = vmatprep.subr.mxu0 0.0
    %1586 = vmatpush1.msra.mxu0 0.0
    %1587 = vmatprep.subr.mxu0 0.0
    %1588 = vmatpush1.msra.mxu0 0.0
    %1589 = vmatprep.subr.mxu0 0.0
    %1590 = vmatpush1.msra.mxu0 0.0
    %1591 = vmatprep.subr.mxu0 0.0
    %v1592 = vand.u32 %v1544, 4294901760
    %1593 = vmatpush1.msra.mxu0 %v1592
    %1594 = vmatprep.subr.mxu0 0.0
    %1595 = vmatpush2.msra.mxu0 0.0
    %1596 = vmatprep.subr.mxu0 0.0
    %1597 = vmatpush2.msra.mxu0 0.0
    %1598 = vmatprep.subr.mxu0 0.0
    %1599 = vmatpush2.msra.mxu0 0.0
    %1600 = vmatprep.subr.mxu0 0.0
    %1601 = vmatpush2.msra.mxu0 0.0
    %1602 = vmatprep.subr.mxu0 0.0
    %1603 = vmatpush2.msra.mxu0 0.0
    %1604 = vmatprep.subr.mxu0 0.0
    %1605 = vmatpush2.msra.mxu0 0.0
    %1606 = vmatprep.subr.mxu0 0.0
    %1607 = vmatpush2.msra.mxu0 0.0
    %1608 = vmatprep.subr.mxu0 0.0
    %1609 = vmatpush2.msra.mxu0 0.0
    %1610 = vmatprep.subr.mxu0 0.0
    %1611 = vmatpush2.msra.mxu0 0.0
    %1612 = vmatprep.subr.mxu0 0.0
    %1613 = vmatpush2.msra.mxu0 0.0
    %1614 = vmatprep.subr.mxu0 0.0
    %1615 = vmatpush2.msra.mxu0 0.0
    %1616 = vmatprep.subr.mxu0 0.0
    %1617 = vmatpush2.msra.mxu0 0.0
    %1618 = vmatprep.subr.mxu0 0.0
    %1619 = vmatpush2.msra.mxu0 0.0
    %1620 = vmatprep.subr.mxu0 0.0
    %1621 = vmatpush2.msra.mxu0 0.0
    %1622 = vmatprep.subr.mxu0 0.0
    %1623 = vmatpush2.msra.mxu0 0.0
    %1624 = vmatprep.subr.mxu0 0.0
    %1625 = vmatpush2.msra.mxu0 0.0
    %1626 = vmatprep.mubr.f32.mxu0 0.0
    %v1627 = vand.u32 %v1550, 4294901760
    %v1628 = vsub.f32 %v1550, %v1627
    %v1629 = vand.u32 %v1628, 4294901760
    %v1630 = vsub.f32 %v1628, %v1629
    %v1631 = vand.u32 %v1630, 4294901760
    %1632 = vmatmul.mubr.f32.gmra.mxu0 %v1631
    %v1633 = vpop.f32.mrf.mxu0
    %v1634 = vadd.f32 %v1548, %v1633
    %v1635 = vpop.f32.mrf.mxu0
    %1636 = vmatprep.mubr.f32.mxu0 0.0
    %v1637 = vand.u32 %v1553, 4294901760
    %v1638 = vsub.f32 %v1553, %v1637
    %v1639 = vand.u32 %v1638, 4294901760
    %v1640 = vsub.f32 %v1638, %v1639
    %v1641 = vand.u32 %v1640, 4294901760
    %1642 = vmatmul.mubr.f32.gmra.mxu0 %v1641
    %v1643 = vpop.f32.mrf.mxu0
    %v1644 = vadd.f32 %v1548, %v1643
    %v1645 = vpop.f32.mrf.mxu0
    %1646 = vmatprep.mubr.f32.mxu0 0.0
    %v1647 = vand.u32 %v1556, 4294901760
    %v1648 = vsub.f32 %v1556, %v1647
    %v1649 = vand.u32 %v1648, 4294901760
    %v1650 = vsub.f32 %v1648, %v1649
    %v1651 = vand.u32 %v1650, 4294901760
    %1652 = vmatmul.mubr.f32.gmra.mxu0 %v1651
    %v1653 = vpop.f32.mrf.mxu0
    %v1654 = vadd.f32 %v1548, %v1653
    %v1655 = vpop.f32.mrf.mxu0
    %1656 = vmatprep.mubr.f32.mxu0 0.0
    %v1657 = vand.u32 %v1559, 4294901760
    %v1658 = vsub.f32 %v1559, %v1657
    %v1659 = vand.u32 %v1658, 4294901760
    %v1660 = vsub.f32 %v1658, %v1659
    %v1661 = vand.u32 %v1660, 4294901760
    %1662 = vmatmul.mubr.f32.gmra.mxu0 %v1661
    %v1663 = vpop.f32.mrf.mxu0
    %v1664 = vadd.f32 %v1548, %v1663
    %v1665 = vpop.f32.mrf.mxu0
    %1666 = vdwg.mxu0
    %1667 = vmatprep.subr.mxu0 0.0
    %1668 = vmatpush1.msra.mxu0 0.0
    %1669 = vmatprep.subr.mxu0 0.0
    %1670 = vmatpush1.msra.mxu0 0.0
    %1671 = vmatprep.subr.mxu0 0.0
    %1672 = vmatpush1.msra.mxu0 0.0
    %1673 = vmatprep.subr.mxu0 0.0
    %1674 = vmatpush1.msra.mxu0 0.0
    %1675 = vmatprep.subr.mxu0 0.0
    %1676 = vmatpush1.msra.mxu0 0.0
    %1677 = vmatprep.subr.mxu0 0.0
    %1678 = vmatpush1.msra.mxu0 0.0
    %1679 = vmatprep.subr.mxu0 0.0
    %1680 = vmatpush1.msra.mxu0 0.0
    %1681 = vmatprep.subr.mxu0 0.0
    %1682 = vmatpush1.msra.mxu0 0.0
    %1683 = vmatprep.subr.mxu0 0.0
    %1684 = vmatpush1.msra.mxu0 0.0
    %1685 = vmatprep.subr.mxu0 0.0
    %1686 = vmatpush1.msra.mxu0 0.0
    %1687 = vmatprep.subr.mxu0 0.0
    %1688 = vmatpush1.msra.mxu0 0.0
    %1689 = vmatprep.subr.mxu0 0.0
    %1690 = vmatpush1.msra.mxu0 0.0
    %1691 = vmatprep.subr.mxu0 0.0
    %1692 = vmatpush1.msra.mxu0 0.0
    %1693 = vmatprep.subr.mxu0 0.0
    %1694 = vmatpush1.msra.mxu0 0.0
    %1695 = vmatprep.subr.mxu0 0.0
    %1696 = vmatpush1.msra.mxu0 0.0
    %1697 = vmatprep.subr.mxu0 0.0
    %v1698 = vand.u32 %v1544, 4294901760
    %v1699 = vsub.f32 %v1544, %v1698
    %v1700 = vand.u32 %v1699, 4294901760
    %v1701 = vsub.f32 %v1699, %v1700
    %v1702 = vand.u32 %v1701, 4294901760
    %1703 = vmatpush1.msra.mxu0 %v1702
    %1704 = vmatprep.subr.mxu0 0.0
    %1705 = vmatpush2.msra.mxu0 0.0
    %1706 = vmatprep.subr.mxu0 0.0
    %1707 = vmatpush2.msra.mxu0 0.0
    %1708 = vmatprep.subr.mxu0 0.0
    %1709 = vmatpush2.msra.mxu0 0.0
    %1710 = vmatprep.subr.mxu0 0.0
    %1711 = vmatpush2.msra.mxu0 0.0
    %1712 = vmatprep.subr.mxu0 0.0
    %1713 = vmatpush2.msra.mxu0 0.0
    %1714 = vmatprep.subr.mxu0 0.0
    %1715 = vmatpush2.msra.mxu0 0.0
    %1716 = vmatprep.subr.mxu0 0.0
    %1717 = vmatpush2.msra.mxu0 0.0
    %1718 = vmatprep.subr.mxu0 0.0
    %1719 = vmatpush2.msra.mxu0 0.0
    %1720 = vmatprep.subr.mxu0 0.0
    %1721 = vmatpush2.msra.mxu0 0.0
    %1722 = vmatprep.subr.mxu0 0.0
    %1723 = vmatpush2.msra.mxu0 0.0
    %1724 = vmatprep.subr.mxu0 0.0
    %1725 = vmatpush2.msra.mxu0 0.0
    %1726 = vmatprep.subr.mxu0 0.0
    %1727 = vmatpush2.msra.mxu0 0.0
    %1728 = vmatprep.subr.mxu0 0.0
    %1729 = vmatpush2.msra.mxu0 0.0
    %1730 = vmatprep.subr.mxu0 0.0
    %1731 = vmatpush2.msra.mxu0 0.0
    %1732 = vmatprep.subr.mxu0 0.0
    %1733 = vmatpush2.msra.mxu0 0.0
    %1734 = vmatprep.subr.mxu0 0.0
    %1735 = vmatpush2.msra.mxu0 0.0
    %1736 = vmatprep.mubr.f32.mxu0 0.0
    %v1737 = vand.u32 %v1550, 4294901760
    %1738 = vmatmul.mubr.f32.gmra.mxu0 %v1737
    %v1739 = vpop.f32.mrf.mxu0
    %v1740 = vadd.f32 %v1634, %v1739
    %v1741 = vpop.f32.mrf.mxu0
    %1742 = vmatprep.mubr.f32.mxu0 0.0
    %v1743 = vand.u32 %v1553, 4294901760
    %1744 = vmatmul.mubr.f32.gmra.mxu0 %v1743
    %v1745 = vpop.f32.mrf.mxu0
    %v1746 = vadd.f32 %v1644, %v1745
    %v1747 = vpop.f32.mrf.mxu0
    %1748 = vmatprep.mubr.f32.mxu0 0.0
    %v1749 = vand.u32 %v1556, 4294901760
    %1750 = vmatmul.mubr.f32.gmra.mxu0 %v1749
    %v1751 = vpop.f32.mrf.mxu0
    %v1752 = vadd.f32 %v1654, %v1751
    %v1753 = vpop.f32.mrf.mxu0
    %1754 = vmatprep.mubr.f32.mxu0 0.0
    %v1755 = vand.u32 %v1559, 4294901760
    %1756 = vmatmul.mubr.f32.gmra.mxu0 %v1755
    %v1757 = vpop.f32.mrf.mxu0
    %v1758 = vadd.f32 %v1664, %v1757
    %v1759 = vpop.f32.mrf.mxu0
    %1760 = vdwg.mxu0
    %1761 = vmatprep.subr.mxu0 0.0
    %1762 = vmatpush1.msra.mxu0 0.0
    %1763 = vmatprep.subr.mxu0 0.0
    %1764 = vmatpush1.msra.mxu0 0.0
    %1765 = vmatprep.subr.mxu0 0.0
    %1766 = vmatpush1.msra.mxu0 0.0
    %1767 = vmatprep.subr.mxu0 0.0
    %1768 = vmatpush1.msra.mxu0 0.0
    %1769 = vmatprep.subr.mxu0 0.0
    %1770 = vmatpush1.msra.mxu0 0.0
    %1771 = vmatprep.subr.mxu0 0.0
    %1772 = vmatpush1.msra.mxu0 0.0
    %1773 = vmatprep.subr.mxu0 0.0
    %1774 = vmatpush1.msra.mxu0 0.0
    %1775 = vmatprep.subr.mxu0 0.0
    %1776 = vmatpush1.msra.mxu0 0.0
    %1777 = vmatprep.subr.mxu0 0.0
    %1778 = vmatpush1.msra.mxu0 0.0
    %1779 = vmatprep.subr.mxu0 0.0
    %1780 = vmatpush1.msra.mxu0 0.0
    %1781 = vmatprep.subr.mxu0 0.0
    %1782 = vmatpush1.msra.mxu0 0.0
    %1783 = vmatprep.subr.mxu0 0.0
    %1784 = vmatpush1.msra.mxu0 0.0
    %1785 = vmatprep.subr.mxu0 0.0
    %1786 = vmatpush1.msra.mxu0 0.0
    %1787 = vmatprep.subr.mxu0 0.0
    %1788 = vmatpush1.msra.mxu0 0.0
    %1789 = vmatprep.subr.mxu0 0.0
    %1790 = vmatpush1.msra.mxu0 0.0
    %1791 = vmatprep.subr.mxu0 0.0
    %v1792 = vand.u32 %v1544, 4294901760
    %v1793 = vsub.f32 %v1544, %v1792
    %1794 = vmatpush1.msra.mxu0 %v1793
    %1795 = vmatprep.subr.mxu0 0.0
    %1796 = vmatpush2.msra.mxu0 0.0
    %1797 = vmatprep.subr.mxu0 0.0
    %1798 = vmatpush2.msra.mxu0 0.0
    %1799 = vmatprep.subr.mxu0 0.0
    %1800 = vmatpush2.msra.mxu0 0.0
    %1801 = vmatprep.subr.mxu0 0.0
    %1802 = vmatpush2.msra.mxu0 0.0
    %1803 = vmatprep.subr.mxu0 0.0
    %1804 = vmatpush2.msra.mxu0 0.0
    %1805 = vmatprep.subr.mxu0 0.0
    %1806 = vmatpush2.msra.mxu0 0.0
    %1807 = vmatprep.subr.mxu0 0.0
    %1808 = vmatpush2.msra.mxu0 0.0
    %1809 = vmatprep.subr.mxu0 0.0
    %1810 = vmatpush2.msra.mxu0 0.0
    %1811 = vmatprep.subr.mxu0 0.0
    %1812 = vmatpush2.msra.mxu0 0.0
    %1813 = vmatprep.subr.mxu0 0.0
    %1814 = vmatpush2.msra.mxu0 0.0
    %1815 = vmatprep.subr.mxu0 0.0
    %1816 = vmatpush2.msra.mxu0 0.0
    %1817 = vmatprep.subr.mxu0 0.0
    %1818 = vmatpush2.msra.mxu0 0.0
    %1819 = vmatprep.subr.mxu0 0.0
    %1820 = vmatpush2.msra.mxu0 0.0
    %1821 = vmatprep.subr.mxu0 0.0
    %1822 = vmatpush2.msra.mxu0 0.0
    %1823 = vmatprep.subr.mxu0 0.0
    %1824 = vmatpush2.msra.mxu0 0.0
    %1825 = vmatprep.subr.mxu0 0.0
    %1826 = vmatpush2.msra.mxu0 0.0
    %1827 = vmatprep.mubr.f32.mxu0 0.0
    %v1828 = vand.u32 %v1550, 4294901760
    %v1829 = vsub.f32 %v1550, %v1828
    %1830 = vmatmul.mubr.f32.gmra.mxu0 %v1829
    %v1831 = vpop.f32.mrf.mxu0
    %v1832 = vadd.f32 %v1740, %v1831
    %v1833 = vpop.f32.mrf.mxu0
    %1834 = vmatprep.mubr.f32.mxu0 0.0
    %v1835 = vand.u32 %v1553, 4294901760
    %v1836 = vsub.f32 %v1553, %v1835
    %1837 = vmatmul.mubr.f32.gmra.mxu0 %v1836
    %v1838 = vpop.f32.mrf.mxu0
    %v1839 = vadd.f32 %v1746, %v1838
    %v1840 = vpop.f32.mrf.mxu0
    %1841 = vmatprep.mubr.f32.mxu0 0.0
    %v1842 = vand.u32 %v1556, 4294901760
    %v1843 = vsub.f32 %v1556, %v1842
    %1844 = vmatmul.mubr.f32.gmra.mxu0 %v1843
    %v1845 = vpop.f32.mrf.mxu0
    %v1846 = vadd.f32 %v1752, %v1845
    %v1847 = vpop.f32.mrf.mxu0
    %1848 = vmatprep.mubr.f32.mxu0 0.0
    %v1849 = vand.u32 %v1559, 4294901760
    %v1850 = vsub.f32 %v1559, %v1849
    %1851 = vmatmul.mubr.f32.gmra.mxu0 %v1850
    %v1852 = vpop.f32.mrf.mxu0
    %v1853 = vadd.f32 %v1758, %v1852
    %v1854 = vpop.f32.mrf.mxu0
    %1855 = vdwg.mxu0
    %1856 = vmatprep.subr.mxu0 0.0
    %1857 = vmatpush1.msra.mxu0 0.0
    %1858 = vmatprep.subr.mxu0 0.0
    %1859 = vmatpush1.msra.mxu0 0.0
    %1860 = vmatprep.subr.mxu0 0.0
    %1861 = vmatpush1.msra.mxu0 0.0
    %1862 = vmatprep.subr.mxu0 0.0
    %1863 = vmatpush1.msra.mxu0 0.0
    %1864 = vmatprep.subr.mxu0 0.0
    %1865 = vmatpush1.msra.mxu0 0.0
    %1866 = vmatprep.subr.mxu0 0.0
    %1867 = vmatpush1.msra.mxu0 0.0
    %1868 = vmatprep.subr.mxu0 0.0
    %1869 = vmatpush1.msra.mxu0 0.0
    %1870 = vmatprep.subr.mxu0 0.0
    %1871 = vmatpush1.msra.mxu0 0.0
    %1872 = vmatprep.subr.mxu0 0.0
    %1873 = vmatpush1.msra.mxu0 0.0
    %1874 = vmatprep.subr.mxu0 0.0
    %1875 = vmatpush1.msra.mxu0 0.0
    %1876 = vmatprep.subr.mxu0 0.0
    %1877 = vmatpush1.msra.mxu0 0.0
    %1878 = vmatprep.subr.mxu0 0.0
    %1879 = vmatpush1.msra.mxu0 0.0
    %1880 = vmatprep.subr.mxu0 0.0
    %1881 = vmatpush1.msra.mxu0 0.0
    %1882 = vmatprep.subr.mxu0 0.0
    %1883 = vmatpush1.msra.mxu0 0.0
    %1884 = vmatprep.subr.mxu0 0.0
    %1885 = vmatpush1.msra.mxu0 0.0
    %1886 = vmatprep.subr.mxu0 0.0
    %v1887 = vand.u32 %v1544, 4294901760
    %1888 = vmatpush1.msra.mxu0 %v1887
    %1889 = vmatprep.subr.mxu0 0.0
    %1890 = vmatpush2.msra.mxu0 0.0
    %1891 = vmatprep.subr.mxu0 0.0
    %1892 = vmatpush2.msra.mxu0 0.0
    %1893 = vmatprep.subr.mxu0 0.0
    %1894 = vmatpush2.msra.mxu0 0.0
    %1895 = vmatprep.subr.mxu0 0.0
    %1896 = vmatpush2.msra.mxu0 0.0
    %1897 = vmatprep.subr.mxu0 0.0
    %1898 = vmatpush2.msra.mxu0 0.0
    %1899 = vmatprep.subr.mxu0 0.0
    %1900 = vmatpush2.msra.mxu0 0.0
    %1901 = vmatprep.subr.mxu0 0.0
    %1902 = vmatpush2.msra.mxu0 0.0
    %1903 = vmatprep.subr.mxu0 0.0
    %1904 = vmatpush2.msra.mxu0 0.0
    %1905 = vmatprep.subr.mxu0 0.0
    %1906 = vmatpush2.msra.mxu0 0.0
    %1907 = vmatprep.subr.mxu0 0.0
    %1908 = vmatpush2.msra.mxu0 0.0
    %1909 = vmatprep.subr.mxu0 0.0
    %1910 = vmatpush2.msra.mxu0 0.0
    %1911 = vmatprep.subr.mxu0 0.0
    %1912 = vmatpush2.msra.mxu0 0.0
    %1913 = vmatprep.subr.mxu0 0.0
    %1914 = vmatpush2.msra.mxu0 0.0
    %1915 = vmatprep.subr.mxu0 0.0
    %1916 = vmatpush2.msra.mxu0 0.0
    %1917 = vmatprep.subr.mxu0 0.0
    %1918 = vmatpush2.msra.mxu0 0.0
    %1919 = vmatprep.subr.mxu0 0.0
    %1920 = vmatpush2.msra.mxu0 0.0
    %1921 = vmatprep.mubr.f32.mxu0 0.0
    %v1922 = vand.u32 %v1550, 4294901760
    %v1923 = vsub.f32 %v1550, %v1922
    %v1924 = vand.u32 %v1923, 4294901760
    %1925 = vmatmul.mubr.f32.gmra.mxu0 %v1924
    %v1926 = vpop.f32.mrf.mxu0
    %v1927 = vadd.f32 %v1832, %v1926
    %v1928 = vpop.f32.mrf.mxu0
    %1929 = vmatprep.mubr.f32.mxu0 0.0
    %v1930 = vand.u32 %v1553, 4294901760
    %v1931 = vsub.f32 %v1553, %v1930
    %v1932 = vand.u32 %v1931, 4294901760
    %1933 = vmatmul.mubr.f32.gmra.mxu0 %v1932
    %v1934 = vpop.f32.mrf.mxu0
    %v1935 = vadd.f32 %v1839, %v1934
    %v1936 = vpop.f32.mrf.mxu0
    %1937 = vmatprep.mubr.f32.mxu0 0.0
    %v1938 = vand.u32 %v1556, 4294901760
    %v1939 = vsub.f32 %v1556, %v1938
    %v1940 = vand.u32 %v1939, 4294901760
    %1941 = vmatmul.mubr.f32.gmra.mxu0 %v1940
    %v1942 = vpop.f32.mrf.mxu0
    %v1943 = vadd.f32 %v1846, %v1942
    %v1944 = vpop.f32.mrf.mxu0
    %1945 = vmatprep.mubr.f32.mxu0 0.0
    %v1946 = vand.u32 %v1559, 4294901760
    %v1947 = vsub.f32 %v1559, %v1946
    %v1948 = vand.u32 %v1947, 4294901760
    %1949 = vmatmul.mubr.f32.gmra.mxu0 %v1948
    %v1950 = vpop.f32.mrf.mxu0
    %v1951 = vadd.f32 %v1853, %v1950
    %v1952 = vpop.f32.mrf.mxu0
    %1953 = vdwg.mxu0
    %1954 = vmatprep.subr.mxu0 0.0
    %1955 = vmatpush1.msra.mxu0 0.0
    %1956 = vmatprep.subr.mxu0 0.0
    %1957 = vmatpush1.msra.mxu0 0.0
    %1958 = vmatprep.subr.mxu0 0.0
    %1959 = vmatpush1.msra.mxu0 0.0
    %1960 = vmatprep.subr.mxu0 0.0
    %1961 = vmatpush1.msra.mxu0 0.0
    %1962 = vmatprep.subr.mxu0 0.0
    %1963 = vmatpush1.msra.mxu0 0.0
    %1964 = vmatprep.subr.mxu0 0.0
    %1965 = vmatpush1.msra.mxu0 0.0
    %1966 = vmatprep.subr.mxu0 0.0
    %1967 = vmatpush1.msra.mxu0 0.0
    %1968 = vmatprep.subr.mxu0 0.0
    %1969 = vmatpush1.msra.mxu0 0.0
    %1970 = vmatprep.subr.mxu0 0.0
    %1971 = vmatpush1.msra.mxu0 0.0
    %1972 = vmatprep.subr.mxu0 0.0
    %1973 = vmatpush1.msra.mxu0 0.0
    %1974 = vmatprep.subr.mxu0 0.0
    %1975 = vmatpush1.msra.mxu0 0.0
    %1976 = vmatprep.subr.mxu0 0.0
    %1977 = vmatpush1.msra.mxu0 0.0
    %1978 = vmatprep.subr.mxu0 0.0
    %1979 = vmatpush1.msra.mxu0 0.0
    %1980 = vmatprep.subr.mxu0 0.0
    %1981 = vmatpush1.msra.mxu0 0.0
    %1982 = vmatprep.subr.mxu0 0.0
    %1983 = vmatpush1.msra.mxu0 0.0
    %1984 = vmatprep.subr.mxu0 0.0
    %v1985 = vand.u32 %v1544, 4294901760
    %v1986 = vsub.f32 %v1544, %v1985
    %v1987 = vand.u32 %v1986, 4294901760
    %1988 = vmatpush1.msra.mxu0 %v1987
    %1989 = vmatprep.subr.mxu0 0.0
    %1990 = vmatpush2.msra.mxu0 0.0
    %1991 = vmatprep.subr.mxu0 0.0
    %1992 = vmatpush2.msra.mxu0 0.0
    %1993 = vmatprep.subr.mxu0 0.0
    %1994 = vmatpush2.msra.mxu0 0.0
    %1995 = vmatprep.subr.mxu0 0.0
    %1996 = vmatpush2.msra.mxu0 0.0
    %1997 = vmatprep.subr.mxu0 0.0
    %1998 = vmatpush2.msra.mxu0 0.0
    %1999 = vmatprep.subr.mxu0 0.0
    %2000 = vmatpush2.msra.mxu0 0.0
    %2001 = vmatprep.subr.mxu0 0.0
    %2002 = vmatpush2.msra.mxu0 0.0
    %2003 = vmatprep.subr.mxu0 0.0
    %2004 = vmatpush2.msra.mxu0 0.0
    %2005 = vmatprep.subr.mxu0 0.0
    %2006 = vmatpush2.msra.mxu0 0.0
    %2007 = vmatprep.subr.mxu0 0.0
    %2008 = vmatpush2.msra.mxu0 0.0
    %2009 = vmatprep.subr.mxu0 0.0
    %2010 = vmatpush2.msra.mxu0 0.0
    %2011 = vmatprep.subr.mxu0 0.0
    %2012 = vmatpush2.msra.mxu0 0.0
    %2013 = vmatprep.subr.mxu0 0.0
    %2014 = vmatpush2.msra.mxu0 0.0
    %2015 = vmatprep.subr.mxu0 0.0
    %2016 = vmatpush2.msra.mxu0 0.0
    %2017 = vmatprep.subr.mxu0 0.0
    %2018 = vmatpush2.msra.mxu0 0.0
    %2019 = vmatprep.subr.mxu0 0.0
    %2020 = vmatpush2.msra.mxu0 0.0
    %2021 = vmatprep.mubr.f32.mxu0 0.0
    %v2022 = vand.u32 %v1550, 4294901760
    %2023 = vmatmul.mubr.f32.gmra.mxu0 %v2022
    %v2024 = vpop.f32.mrf.mxu0
    %v2025 = vadd.f32 %v1927, %v2024
    %v2026 = vpop.f32.mrf.mxu0
    %2027 = vmatprep.mubr.f32.mxu0 0.0
    %v2028 = vand.u32 %v1553, 4294901760
    %2029 = vmatmul.mubr.f32.gmra.mxu0 %v2028
    %v2030 = vpop.f32.mrf.mxu0
    %v2031 = vadd.f32 %v1935, %v2030
    %v2032 = vpop.f32.mrf.mxu0
    %2033 = vmatprep.mubr.f32.mxu0 0.0
    %v2034 = vand.u32 %v1556, 4294901760
    %2035 = vmatmul.mubr.f32.gmra.mxu0 %v2034
    %v2036 = vpop.f32.mrf.mxu0
    %v2037 = vadd.f32 %v1943, %v2036
    %v2038 = vpop.f32.mrf.mxu0
    %2039 = vmatprep.mubr.f32.mxu0 0.0
    %v2040 = vand.u32 %v1559, 4294901760
    %2041 = vmatmul.mubr.f32.gmra.mxu0 %v2040
    %v2042 = vpop.f32.mrf.mxu0
    %v2043 = vadd.f32 %v1951, %v2042
    %v2044 = vpop.f32.mrf.mxu0
    %2045 = vdwg.mxu0
    %2046 = vmatprep.subr.mxu0 0.0
    %2047 = vmatpush1.msra.mxu0 0.0
    %2048 = vmatprep.subr.mxu0 0.0
    %2049 = vmatpush1.msra.mxu0 0.0
    %2050 = vmatprep.subr.mxu0 0.0
    %2051 = vmatpush1.msra.mxu0 0.0
    %2052 = vmatprep.subr.mxu0 0.0
    %2053 = vmatpush1.msra.mxu0 0.0
    %2054 = vmatprep.subr.mxu0 0.0
    %2055 = vmatpush1.msra.mxu0 0.0
    %2056 = vmatprep.subr.mxu0 0.0
    %2057 = vmatpush1.msra.mxu0 0.0
    %2058 = vmatprep.subr.mxu0 0.0
    %2059 = vmatpush1.msra.mxu0 0.0
    %2060 = vmatprep.subr.mxu0 0.0
    %2061 = vmatpush1.msra.mxu0 0.0
    %2062 = vmatprep.subr.mxu0 0.0
    %2063 = vmatpush1.msra.mxu0 0.0
    %2064 = vmatprep.subr.mxu0 0.0
    %2065 = vmatpush1.msra.mxu0 0.0
    %2066 = vmatprep.subr.mxu0 0.0
    %2067 = vmatpush1.msra.mxu0 0.0
    %2068 = vmatprep.subr.mxu0 0.0
    %2069 = vmatpush1.msra.mxu0 0.0
    %2070 = vmatprep.subr.mxu0 0.0
    %2071 = vmatpush1.msra.mxu0 0.0
    %2072 = vmatprep.subr.mxu0 0.0
    %2073 = vmatpush1.msra.mxu0 0.0
    %2074 = vmatprep.subr.mxu0 0.0
    %2075 = vmatpush1.msra.mxu0 0.0
    %2076 = vmatprep.subr.mxu0 0.0
    %v2077 = vand.u32 %v1544, 4294901760
    %2078 = vmatpush1.msra.mxu0 %v2077
    %2079 = vmatprep.subr.mxu0 0.0
    %2080 = vmatpush2.msra.mxu0 0.0
    %2081 = vmatprep.subr.mxu0 0.0
    %2082 = vmatpush2.msra.mxu0 0.0
    %2083 = vmatprep.subr.mxu0 0.0
    %2084 = vmatpush2.msra.mxu0 0.0
    %2085 = vmatprep.subr.mxu0 0.0
    %2086 = vmatpush2.msra.mxu0 0.0
    %2087 = vmatprep.subr.mxu0 0.0
    %2088 = vmatpush2.msra.mxu0 0.0
    %2089 = vmatprep.subr.mxu0 0.0
    %2090 = vmatpush2.msra.mxu0 0.0
    %2091 = vmatprep.subr.mxu0 0.0
    %2092 = vmatpush2.msra.mxu0 0.0
    %2093 = vmatprep.subr.mxu0 0.0
    %2094 = vmatpush2.msra.mxu0 0.0
    %2095 = vmatprep.subr.mxu0 0.0
    %2096 = vmatpush2.msra.mxu0 0.0
    %2097 = vmatprep.subr.mxu0 0.0
    %2098 = vmatpush2.msra.mxu0 0.0
    %2099 = vmatprep.subr.mxu0 0.0
    %2100 = vmatpush2.msra.mxu0 0.0
    %2101 = vmatprep.subr.mxu0 0.0
    %2102 = vmatpush2.msra.mxu0 0.0
    %2103 = vmatprep.subr.mxu0 0.0
    %2104 = vmatpush2.msra.mxu0 0.0
    %2105 = vmatprep.subr.mxu0 0.0
    %2106 = vmatpush2.msra.mxu0 0.0
    %2107 = vmatprep.subr.mxu0 0.0
    %2108 = vmatpush2.msra.mxu0 0.0
    %2109 = vmatprep.subr.mxu0 0.0
    %2110 = vmatpush2.msra.mxu0 0.0
    %2111 = vmatprep.mubr.f32.mxu0 0.0
    %v2112 = vand.u32 %v1550, 4294901760
    %2113 = vmatmul.mubr.f32.gmra.mxu0 %v2112
    %v2114 = vpop.f32.mrf.mxu0
    %v2115 = vadd.f32 %v2025, %v2114
    %v2116 = vpop.f32.mrf.mxu0
    %2117 = vmatprep.mubr.f32.mxu0 0.0
    %v2118 = vand.u32 %v1553, 4294901760
    %2119 = vmatmul.mubr.f32.gmra.mxu0 %v2118
    %v2120 = vpop.f32.mrf.mxu0
    %v2121 = vadd.f32 %v2031, %v2120
    %v2122 = vpop.f32.mrf.mxu0
    %2123 = vmatprep.mubr.f32.mxu0 0.0
    %v2124 = vand.u32 %v1556, 4294901760
    %2125 = vmatmul.mubr.f32.gmra.mxu0 %v2124
    %v2126 = vpop.f32.mrf.mxu0
    %v2127 = vadd.f32 %v2037, %v2126
    %v2128 = vpop.f32.mrf.mxu0
    %2129 = vmatprep.mubr.f32.mxu0 0.0
    %v2130 = vand.u32 %v1559, 4294901760
    %2131 = vmatmul.mubr.f32.gmra.mxu0 %v2130
    %v2132 = vpop.f32.mrf.mxu0
    %v2133 = vadd.f32 %v2043, %v2132
    %v2134 = vpop.f32.mrf.mxu0
    %2135 = vdwg.mxu0
    %v2136 = vld [vmem:[%s9] sm:$0xff]
    %2137 = vmatprep.subr.mxu0 0.0
    %2138 = vmatpush1.msra.mxu0 0.0
    %2139 = vmatprep.subr.mxu0 0.0
    %2140 = vmatpush1.msra.mxu0 0.0
    %2141 = vmatprep.subr.mxu0 0.0
    %2142 = vmatpush1.msra.mxu0 0.0
    %2143 = vmatprep.subr.mxu0 0.0
    %2144 = vmatpush1.msra.mxu0 0.0
    %2145 = vmatprep.subr.mxu0 0.0
    %2146 = vmatpush1.msra.mxu0 0.0
    %2147 = vmatprep.subr.mxu0 0.0
    %2148 = vmatpush1.msra.mxu0 0.0
    %2149 = vmatprep.subr.mxu0 0.0
    %2150 = vmatpush1.msra.mxu0 0.0
    %2151 = vmatprep.subr.mxu0 0.0
    %2152 = vmatpush1.msra.mxu0 0.0
    %2153 = vmatprep.subr.mxu0 0.0
    %2154 = vmatpush1.msra.mxu0 0.0
    %2155 = vmatprep.subr.mxu0 0.0
    %2156 = vmatpush1.msra.mxu0 0.0
    %2157 = vmatprep.subr.mxu0 0.0
    %2158 = vmatpush1.msra.mxu0 0.0
    %2159 = vmatprep.subr.mxu0 0.0
    %2160 = vmatpush1.msra.mxu0 0.0
    %2161 = vmatprep.subr.mxu0 0.0
    %2162 = vmatpush1.msra.mxu0 0.0
    %2163 = vmatprep.subr.mxu0 0.0
    %2164 = vmatpush1.msra.mxu0 0.0
    %2165 = vmatprep.subr.mxu0 0.0
    %2166 = vmatpush1.msra.mxu0 0.0
    %2167 = vmatprep.subr.mxu0 0.0
    %v2168 = vand.u32 %v2136, 4294901760
    %2169 = vmatpush1.msra.mxu0 %v2168
    %2170 = vmatprep.subr.mxu0 0.0
    %2171 = vmatpush2.msra.mxu0 0.0
    %2172 = vmatprep.subr.mxu0 0.0
    %2173 = vmatpush2.msra.mxu0 0.0
    %2174 = vmatprep.subr.mxu0 0.0
    %2175 = vmatpush2.msra.mxu0 0.0
    %2176 = vmatprep.subr.mxu0 0.0
    %2177 = vmatpush2.msra.mxu0 0.0
    %2178 = vmatprep.subr.mxu0 0.0
    %2179 = vmatpush2.msra.mxu0 0.0
    %2180 = vmatprep.subr.mxu0 0.0
    %2181 = vmatpush2.msra.mxu0 0.0
    %2182 = vmatprep.subr.mxu0 0.0
    %2183 = vmatpush2.msra.mxu0 0.0
    %2184 = vmatprep.subr.mxu0 0.0
    %2185 = vmatpush2.msra.mxu0 0.0
    %2186 = vmatprep.subr.mxu0 0.0
    %2187 = vmatpush2.msra.mxu0 0.0
    %2188 = vmatprep.subr.mxu0 0.0
    %2189 = vmatpush2.msra.mxu0 0.0
    %2190 = vmatprep.subr.mxu0 0.0
    %2191 = vmatpush2.msra.mxu0 0.0
    %2192 = vmatprep.subr.mxu0 0.0
    %2193 = vmatpush2.msra.mxu0 0.0
    %2194 = vmatprep.subr.mxu0 0.0
    %2195 = vmatpush2.msra.mxu0 0.0
    %2196 = vmatprep.subr.mxu0 0.0
    %2197 = vmatpush2.msra.mxu0 0.0
    %2198 = vmatprep.subr.mxu0 0.0
    %2199 = vmatpush2.msra.mxu0 0.0
    %2200 = vmatprep.subr.mxu0 0.0
    %2201 = vmatpush2.msra.mxu0 0.0
    %2202 = vmatprep.mubr.f32.mxu0 0.0
    %v2203 = vand.u32 %v75, 4294901760
    %v2204 = vsub.f32 %v75, %v2203
    %v2205 = vand.u32 %v2204, 4294901760
    %v2206 = vsub.f32 %v2204, %v2205
    %v2207 = vand.u32 %v2206, 4294901760
    %2208 = vmatmul.mubr.f32.gmra.mxu0 %v2207
    %v2209 = vpop.f32.mrf.mxu0
    %v2210 = vadd.f32 0.0, %v2209
    %v2211 = vpop.f32.mrf.mxu0
    %2212 = vmatprep.mubr.f32.mxu0 0.0
    %v2213 = vand.u32 %v78, 4294901760
    %v2214 = vsub.f32 %v78, %v2213
    %v2215 = vand.u32 %v2214, 4294901760
    %v2216 = vsub.f32 %v2214, %v2215
    %v2217 = vand.u32 %v2216, 4294901760
    %2218 = vmatmul.mubr.f32.gmra.mxu0 %v2217
    %v2219 = vpop.f32.mrf.mxu0
    %v2220 = vadd.f32 0.0, %v2219
    %v2221 = vpop.f32.mrf.mxu0
    %2222 = vmatprep.mubr.f32.mxu0 0.0
    %v2223 = vand.u32 %v81, 4294901760
    %v2224 = vsub.f32 %v81, %v2223
    %v2225 = vand.u32 %v2224, 4294901760
    %v2226 = vsub.f32 %v2224, %v2225
    %v2227 = vand.u32 %v2226, 4294901760
    %2228 = vmatmul.mubr.f32.gmra.mxu0 %v2227
    %v2229 = vpop.f32.mrf.mxu0
    %v2230 = vadd.f32 0.0, %v2229
    %v2231 = vpop.f32.mrf.mxu0
    %2232 = vmatprep.mubr.f32.mxu0 0.0
    %v2233 = vand.u32 %v84, 4294901760
    %v2234 = vsub.f32 %v84, %v2233
    %v2235 = vand.u32 %v2234, 4294901760
    %v2236 = vsub.f32 %v2234, %v2235
    %v2237 = vand.u32 %v2236, 4294901760
    %2238 = vmatmul.mubr.f32.gmra.mxu0 %v2237
    %v2239 = vpop.f32.mrf.mxu0
    %v2240 = vadd.f32 0.0, %v2239
    %v2241 = vpop.f32.mrf.mxu0
    %2242 = vdwg.mxu0
    %2243 = vmatprep.subr.mxu0 0.0
    %2244 = vmatpush1.msra.mxu0 0.0
    %2245 = vmatprep.subr.mxu0 0.0
    %2246 = vmatpush1.msra.mxu0 0.0
    %2247 = vmatprep.subr.mxu0 0.0
    %2248 = vmatpush1.msra.mxu0 0.0
    %2249 = vmatprep.subr.mxu0 0.0
    %2250 = vmatpush1.msra.mxu0 0.0
    %2251 = vmatprep.subr.mxu0 0.0
    %2252 = vmatpush1.msra.mxu0 0.0
    %2253 = vmatprep.subr.mxu0 0.0
    %2254 = vmatpush1.msra.mxu0 0.0
    %2255 = vmatprep.subr.mxu0 0.0
    %2256 = vmatpush1.msra.mxu0 0.0
    %2257 = vmatprep.subr.mxu0 0.0
    %2258 = vmatpush1.msra.mxu0 0.0
    %2259 = vmatprep.subr.mxu0 0.0
    %2260 = vmatpush1.msra.mxu0 0.0
    %2261 = vmatprep.subr.mxu0 0.0
    %2262 = vmatpush1.msra.mxu0 0.0
    %2263 = vmatprep.subr.mxu0 0.0
    %2264 = vmatpush1.msra.mxu0 0.0
    %2265 = vmatprep.subr.mxu0 0.0
    %2266 = vmatpush1.msra.mxu0 0.0
    %2267 = vmatprep.subr.mxu0 0.0
    %2268 = vmatpush1.msra.mxu0 0.0
    %2269 = vmatprep.subr.mxu0 0.0
    %2270 = vmatpush1.msra.mxu0 0.0
    %2271 = vmatprep.subr.mxu0 0.0
    %2272 = vmatpush1.msra.mxu0 0.0
    %2273 = vmatprep.subr.mxu0 0.0
    %v2274 = vand.u32 %v2136, 4294901760
    %v2275 = vsub.f32 %v2136, %v2274
    %v2276 = vand.u32 %v2275, 4294901760
    %v2277 = vsub.f32 %v2275, %v2276
    %v2278 = vand.u32 %v2277, 4294901760
    %2279 = vmatpush1.msra.mxu0 %v2278
    %2280 = vmatprep.subr.mxu0 0.0
    %2281 = vmatpush2.msra.mxu0 0.0
    %2282 = vmatprep.subr.mxu0 0.0
    %2283 = vmatpush2.msra.mxu0 0.0
    %2284 = vmatprep.subr.mxu0 0.0
    %2285 = vmatpush2.msra.mxu0 0.0
    %2286 = vmatprep.subr.mxu0 0.0
    %2287 = vmatpush2.msra.mxu0 0.0
    %2288 = vmatprep.subr.mxu0 0.0
    %2289 = vmatpush2.msra.mxu0 0.0
    %2290 = vmatprep.subr.mxu0 0.0
    %2291 = vmatpush2.msra.mxu0 0.0
    %2292 = vmatprep.subr.mxu0 0.0
    %2293 = vmatpush2.msra.mxu0 0.0
    %2294 = vmatprep.subr.mxu0 0.0
    %2295 = vmatpush2.msra.mxu0 0.0
    %2296 = vmatprep.subr.mxu0 0.0
    %2297 = vmatpush2.msra.mxu0 0.0
    %2298 = vmatprep.subr.mxu0 0.0
    %2299 = vmatpush2.msra.mxu0 0.0
    %2300 = vmatprep.subr.mxu0 0.0
    %2301 = vmatpush2.msra.mxu0 0.0
    %2302 = vmatprep.subr.mxu0 0.0
    %2303 = vmatpush2.msra.mxu0 0.0
    %2304 = vmatprep.subr.mxu0 0.0
    %2305 = vmatpush2.msra.mxu0 0.0
    %2306 = vmatprep.subr.mxu0 0.0
    %2307 = vmatpush2.msra.mxu0 0.0
    %2308 = vmatprep.subr.mxu0 0.0
    %2309 = vmatpush2.msra.mxu0 0.0
    %2310 = vmatprep.subr.mxu0 0.0
    %2311 = vmatpush2.msra.mxu0 0.0
    %2312 = vmatprep.mubr.f32.mxu0 0.0
    %v2313 = vand.u32 %v75, 4294901760
    %2314 = vmatmul.mubr.f32.gmra.mxu0 %v2313
    %v2315 = vpop.f32.mrf.mxu0
    %v2316 = vadd.f32 %v2210, %v2315
    %v2317 = vpop.f32.mrf.mxu0
    %2318 = vmatprep.mubr.f32.mxu0 0.0
    %v2319 = vand.u32 %v78, 4294901760
    %2320 = vmatmul.mubr.f32.gmra.mxu0 %v2319
    %v2321 = vpop.f32.mrf.mxu0
    %v2322 = vadd.f32 %v2220, %v2321
    %v2323 = vpop.f32.mrf.mxu0
    %2324 = vmatprep.mubr.f32.mxu0 0.0
    %v2325 = vand.u32 %v81, 4294901760
    %2326 = vmatmul.mubr.f32.gmra.mxu0 %v2325
    %v2327 = vpop.f32.mrf.mxu0
    %v2328 = vadd.f32 %v2230, %v2327
    %v2329 = vpop.f32.mrf.mxu0
    %2330 = vmatprep.mubr.f32.mxu0 0.0
    %v2331 = vand.u32 %v84, 4294901760
    %2332 = vmatmul.mubr.f32.gmra.mxu0 %v2331
    %v2333 = vpop.f32.mrf.mxu0
    %v2334 = vadd.f32 %v2240, %v2333
    %v2335 = vpop.f32.mrf.mxu0
    %2336 = vdwg.mxu0
    %2337 = vmatprep.subr.mxu0 0.0
    %2338 = vmatpush1.msra.mxu0 0.0
    %2339 = vmatprep.subr.mxu0 0.0
    %2340 = vmatpush1.msra.mxu0 0.0
    %2341 = vmatprep.subr.mxu0 0.0
    %2342 = vmatpush1.msra.mxu0 0.0
    %2343 = vmatprep.subr.mxu0 0.0
    %2344 = vmatpush1.msra.mxu0 0.0
    %2345 = vmatprep.subr.mxu0 0.0
    %2346 = vmatpush1.msra.mxu0 0.0
    %2347 = vmatprep.subr.mxu0 0.0
    %2348 = vmatpush1.msra.mxu0 0.0
    %2349 = vmatprep.subr.mxu0 0.0
    %2350 = vmatpush1.msra.mxu0 0.0
    %2351 = vmatprep.subr.mxu0 0.0
    %2352 = vmatpush1.msra.mxu0 0.0
    %2353 = vmatprep.subr.mxu0 0.0
    %2354 = vmatpush1.msra.mxu0 0.0
    %2355 = vmatprep.subr.mxu0 0.0
    %2356 = vmatpush1.msra.mxu0 0.0
    %2357 = vmatprep.subr.mxu0 0.0
    %2358 = vmatpush1.msra.mxu0 0.0
    %2359 = vmatprep.subr.mxu0 0.0
    %2360 = vmatpush1.msra.mxu0 0.0
    %2361 = vmatprep.subr.mxu0 0.0
    %2362 = vmatpush1.msra.mxu0 0.0
    %2363 = vmatprep.subr.mxu0 0.0
    %2364 = vmatpush1.msra.mxu0 0.0
    %2365 = vmatprep.subr.mxu0 0.0
    %2366 = vmatpush1.msra.mxu0 0.0
    %2367 = vmatprep.subr.mxu0 0.0
    %v2368 = vand.u32 %v2136, 4294901760
    %v2369 = vsub.f32 %v2136, %v2368
    %2370 = vmatpush1.msra.mxu0 %v2369
    %2371 = vmatprep.subr.mxu0 0.0
    %2372 = vmatpush2.msra.mxu0 0.0
    %2373 = vmatprep.subr.mxu0 0.0
    %2374 = vmatpush2.msra.mxu0 0.0
    %2375 = vmatprep.subr.mxu0 0.0
    %2376 = vmatpush2.msra.mxu0 0.0
    %2377 = vmatprep.subr.mxu0 0.0
    %2378 = vmatpush2.msra.mxu0 0.0
    %2379 = vmatprep.subr.mxu0 0.0
    %2380 = vmatpush2.msra.mxu0 0.0
    %2381 = vmatprep.subr.mxu0 0.0
    %2382 = vmatpush2.msra.mxu0 0.0
    %2383 = vmatprep.subr.mxu0 0.0
    %2384 = vmatpush2.msra.mxu0 0.0
    %2385 = vmatprep.subr.mxu0 0.0
    %2386 = vmatpush2.msra.mxu0 0.0
    %2387 = vmatprep.subr.mxu0 0.0
    %2388 = vmatpush2.msra.mxu0 0.0
    %2389 = vmatprep.subr.mxu0 0.0
    %2390 = vmatpush2.msra.mxu0 0.0
    %2391 = vmatprep.subr.mxu0 0.0
    %2392 = vmatpush2.msra.mxu0 0.0
    %2393 = vmatprep.subr.mxu0 0.0
    %2394 = vmatpush2.msra.mxu0 0.0
    %2395 = vmatprep.subr.mxu0 0.0
    %2396 = vmatpush2.msra.mxu0 0.0
    %2397 = vmatprep.subr.mxu0 0.0
    %2398 = vmatpush2.msra.mxu0 0.0
    %2399 = vmatprep.subr.mxu0 0.0
    %2400 = vmatpush2.msra.mxu0 0.0
    %2401 = vmatprep.subr.mxu0 0.0
    %2402 = vmatpush2.msra.mxu0 0.0
    %2403 = vmatprep.mubr.f32.mxu0 0.0
    %v2404 = vand.u32 %v75, 4294901760
    %v2405 = vsub.f32 %v75, %v2404
    %2406 = vmatmul.mubr.f32.gmra.mxu0 %v2405
    %v2407 = vpop.f32.mrf.mxu0
    %v2408 = vadd.f32 %v2316, %v2407
    %v2409 = vpop.f32.mrf.mxu0
    %2410 = vmatprep.mubr.f32.mxu0 0.0
    %v2411 = vand.u32 %v78, 4294901760
    %v2412 = vsub.f32 %v78, %v2411
    %2413 = vmatmul.mubr.f32.gmra.mxu0 %v2412
    %v2414 = vpop.f32.mrf.mxu0
    %v2415 = vadd.f32 %v2322, %v2414
    %v2416 = vpop.f32.mrf.mxu0
    %2417 = vmatprep.mubr.f32.mxu0 0.0
    %v2418 = vand.u32 %v81, 4294901760
    %v2419 = vsub.f32 %v81, %v2418
    %2420 = vmatmul.mubr.f32.gmra.mxu0 %v2419
    %v2421 = vpop.f32.mrf.mxu0
    %v2422 = vadd.f32 %v2328, %v2421
    %v2423 = vpop.f32.mrf.mxu0
    %2424 = vmatprep.mubr.f32.mxu0 0.0
    %v2425 = vand.u32 %v84, 4294901760
    %v2426 = vsub.f32 %v84, %v2425
    %2427 = vmatmul.mubr.f32.gmra.mxu0 %v2426
    %v2428 = vpop.f32.mrf.mxu0
    %v2429 = vadd.f32 %v2334, %v2428
    %v2430 = vpop.f32.mrf.mxu0
    %2431 = vdwg.mxu0
    %2432 = vmatprep.subr.mxu0 0.0
    %2433 = vmatpush1.msra.mxu0 0.0
    %2434 = vmatprep.subr.mxu0 0.0
    %2435 = vmatpush1.msra.mxu0 0.0
    %2436 = vmatprep.subr.mxu0 0.0
    %2437 = vmatpush1.msra.mxu0 0.0
    %2438 = vmatprep.subr.mxu0 0.0
    %2439 = vmatpush1.msra.mxu0 0.0
    %2440 = vmatprep.subr.mxu0 0.0
    %2441 = vmatpush1.msra.mxu0 0.0
    %2442 = vmatprep.subr.mxu0 0.0
    %2443 = vmatpush1.msra.mxu0 0.0
    %2444 = vmatprep.subr.mxu0 0.0
    %2445 = vmatpush1.msra.mxu0 0.0
    %2446 = vmatprep.subr.mxu0 0.0
    %2447 = vmatpush1.msra.mxu0 0.0
    %2448 = vmatprep.subr.mxu0 0.0
    %2449 = vmatpush1.msra.mxu0 0.0
    %2450 = vmatprep.subr.mxu0 0.0
    %2451 = vmatpush1.msra.mxu0 0.0
    %2452 = vmatprep.subr.mxu0 0.0
    %2453 = vmatpush1.msra.mxu0 0.0
    %2454 = vmatprep.subr.mxu0 0.0
    %2455 = vmatpush1.msra.mxu0 0.0
    %2456 = vmatprep.subr.mxu0 0.0
    %2457 = vmatpush1.msra.mxu0 0.0
    %2458 = vmatprep.subr.mxu0 0.0
    %2459 = vmatpush1.msra.mxu0 0.0
    %2460 = vmatprep.subr.mxu0 0.0
    %2461 = vmatpush1.msra.mxu0 0.0
    %2462 = vmatprep.subr.mxu0 0.0
    %v2463 = vand.u32 %v2136, 4294901760
    %2464 = vmatpush1.msra.mxu0 %v2463
    %2465 = vmatprep.subr.mxu0 0.0
    %2466 = vmatpush2.msra.mxu0 0.0
    %2467 = vmatprep.subr.mxu0 0.0
    %2468 = vmatpush2.msra.mxu0 0.0
    %2469 = vmatprep.subr.mxu0 0.0
    %2470 = vmatpush2.msra.mxu0 0.0
    %2471 = vmatprep.subr.mxu0 0.0
    %2472 = vmatpush2.msra.mxu0 0.0
    %2473 = vmatprep.subr.mxu0 0.0
    %2474 = vmatpush2.msra.mxu0 0.0
    %2475 = vmatprep.subr.mxu0 0.0
    %2476 = vmatpush2.msra.mxu0 0.0
    %2477 = vmatprep.subr.mxu0 0.0
    %2478 = vmatpush2.msra.mxu0 0.0
    %2479 = vmatprep.subr.mxu0 0.0
    %2480 = vmatpush2.msra.mxu0 0.0
    %2481 = vmatprep.subr.mxu0 0.0
    %2482 = vmatpush2.msra.mxu0 0.0
    %2483 = vmatprep.subr.mxu0 0.0
    %2484 = vmatpush2.msra.mxu0 0.0
    %2485 = vmatprep.subr.mxu0 0.0
    %2486 = vmatpush2.msra.mxu0 0.0
    %2487 = vmatprep.subr.mxu0 0.0
    %2488 = vmatpush2.msra.mxu0 0.0
    %2489 = vmatprep.subr.mxu0 0.0
    %2490 = vmatpush2.msra.mxu0 0.0
    %2491 = vmatprep.subr.mxu0 0.0
    %2492 = vmatpush2.msra.mxu0 0.0
    %2493 = vmatprep.subr.mxu0 0.0
    %2494 = vmatpush2.msra.mxu0 0.0
    %2495 = vmatprep.subr.mxu0 0.0
    %2496 = vmatpush2.msra.mxu0 0.0
    %2497 = vmatprep.mubr.f32.mxu0 0.0
    %v2498 = vand.u32 %v75, 4294901760
    %v2499 = vsub.f32 %v75, %v2498
    %v2500 = vand.u32 %v2499, 4294901760
    %2501 = vmatmul.mubr.f32.gmra.mxu0 %v2500
    %v2502 = vpop.f32.mrf.mxu0
    %v2503 = vadd.f32 %v2408, %v2502
    %v2504 = vpop.f32.mrf.mxu0
    %2505 = vmatprep.mubr.f32.mxu0 0.0
    %v2506 = vand.u32 %v78, 4294901760
    %v2507 = vsub.f32 %v78, %v2506
    %v2508 = vand.u32 %v2507, 4294901760
    %2509 = vmatmul.mubr.f32.gmra.mxu0 %v2508
    %v2510 = vpop.f32.mrf.mxu0
    %v2511 = vadd.f32 %v2415, %v2510
    %v2512 = vpop.f32.mrf.mxu0
    %2513 = vmatprep.mubr.f32.mxu0 0.0
    %v2514 = vand.u32 %v81, 4294901760
    %v2515 = vsub.f32 %v81, %v2514
    %v2516 = vand.u32 %v2515, 4294901760
    %2517 = vmatmul.mubr.f32.gmra.mxu0 %v2516
    %v2518 = vpop.f32.mrf.mxu0
    %v2519 = vadd.f32 %v2422, %v2518
    %v2520 = vpop.f32.mrf.mxu0
    %2521 = vmatprep.mubr.f32.mxu0 0.0
    %v2522 = vand.u32 %v84, 4294901760
    %v2523 = vsub.f32 %v84, %v2522
    %v2524 = vand.u32 %v2523, 4294901760
    %2525 = vmatmul.mubr.f32.gmra.mxu0 %v2524
    %v2526 = vpop.f32.mrf.mxu0
    %v2527 = vadd.f32 %v2429, %v2526
    %v2528 = vpop.f32.mrf.mxu0
    %2529 = vdwg.mxu0
    %2530 = vmatprep.subr.mxu0 0.0
    %2531 = vmatpush1.msra.mxu0 0.0
    %2532 = vmatprep.subr.mxu0 0.0
    %2533 = vmatpush1.msra.mxu0 0.0
    %2534 = vmatprep.subr.mxu0 0.0
    %2535 = vmatpush1.msra.mxu0 0.0
    %2536 = vmatprep.subr.mxu0 0.0
    %2537 = vmatpush1.msra.mxu0 0.0
    %2538 = vmatprep.subr.mxu0 0.0
    %2539 = vmatpush1.msra.mxu0 0.0
    %2540 = vmatprep.subr.mxu0 0.0
    %2541 = vmatpush1.msra.mxu0 0.0
    %2542 = vmatprep.subr.mxu0 0.0
    %2543 = vmatpush1.msra.mxu0 0.0
    %2544 = vmatprep.subr.mxu0 0.0
    %2545 = vmatpush1.msra.mxu0 0.0
    %2546 = vmatprep.subr.mxu0 0.0
    %2547 = vmatpush1.msra.mxu0 0.0
    %2548 = vmatprep.subr.mxu0 0.0
    %2549 = vmatpush1.msra.mxu0 0.0
    %2550 = vmatprep.subr.mxu0 0.0
    %2551 = vmatpush1.msra.mxu0 0.0
    %2552 = vmatprep.subr.mxu0 0.0
    %2553 = vmatpush1.msra.mxu0 0.0
    %2554 = vmatprep.subr.mxu0 0.0
    %2555 = vmatpush1.msra.mxu0 0.0
    %2556 = vmatprep.subr.mxu0 0.0
    %2557 = vmatpush1.msra.mxu0 0.0
    %2558 = vmatprep.subr.mxu0 0.0
    %2559 = vmatpush1.msra.mxu0 0.0
    %2560 = vmatprep.subr.mxu0 0.0
    %v2561 = vand.u32 %v2136, 4294901760
    %v2562 = vsub.f32 %v2136, %v2561
    %v2563 = vand.u32 %v2562, 4294901760
    %2564 = vmatpush1.msra.mxu0 %v2563
    %2565 = vmatprep.subr.mxu0 0.0
    %2566 = vmatpush2.msra.mxu0 0.0
    %2567 = vmatprep.subr.mxu0 0.0
    %2568 = vmatpush2.msra.mxu0 0.0
    %2569 = vmatprep.subr.mxu0 0.0
    %2570 = vmatpush2.msra.mxu0 0.0
    %2571 = vmatprep.subr.mxu0 0.0
    %2572 = vmatpush2.msra.mxu0 0.0
    %2573 = vmatprep.subr.mxu0 0.0
    %2574 = vmatpush2.msra.mxu0 0.0
    %2575 = vmatprep.subr.mxu0 0.0
    %2576 = vmatpush2.msra.mxu0 0.0
    %2577 = vmatprep.subr.mxu0 0.0
    %2578 = vmatpush2.msra.mxu0 0.0
    %2579 = vmatprep.subr.mxu0 0.0
    %2580 = vmatpush2.msra.mxu0 0.0
    %2581 = vmatprep.subr.mxu0 0.0
    %2582 = vmatpush2.msra.mxu0 0.0
    %2583 = vmatprep.subr.mxu0 0.0
    %2584 = vmatpush2.msra.mxu0 0.0
    %2585 = vmatprep.subr.mxu0 0.0
    %2586 = vmatpush2.msra.mxu0 0.0
    %2587 = vmatprep.subr.mxu0 0.0
    %2588 = vmatpush2.msra.mxu0 0.0
    %2589 = vmatprep.subr.mxu0 0.0
    %2590 = vmatpush2.msra.mxu0 0.0
    %2591 = vmatprep.subr.mxu0 0.0
    %2592 = vmatpush2.msra.mxu0 0.0
    %2593 = vmatprep.subr.mxu0 0.0
    %2594 = vmatpush2.msra.mxu0 0.0
    %2595 = vmatprep.subr.mxu0 0.0
    %2596 = vmatpush2.msra.mxu0 0.0
    %2597 = vmatprep.mubr.f32.mxu0 0.0
    %v2598 = vand.u32 %v75, 4294901760
    %2599 = vmatmul.mubr.f32.gmra.mxu0 %v2598
    %v2600 = vpop.f32.mrf.mxu0
    %v2601 = vadd.f32 %v2503, %v2600
    %v2602 = vpop.f32.mrf.mxu0
    %2603 = vmatprep.mubr.f32.mxu0 0.0
    %v2604 = vand.u32 %v78, 4294901760
    %2605 = vmatmul.mubr.f32.gmra.mxu0 %v2604
    %v2606 = vpop.f32.mrf.mxu0
    %v2607 = vadd.f32 %v2511, %v2606
    %v2608 = vpop.f32.mrf.mxu0
    %2609 = vmatprep.mubr.f32.mxu0 0.0
    %v2610 = vand.u32 %v81, 4294901760
    %2611 = vmatmul.mubr.f32.gmra.mxu0 %v2610
    %v2612 = vpop.f32.mrf.mxu0
    %v2613 = vadd.f32 %v2519, %v2612
    %v2614 = vpop.f32.mrf.mxu0
    %2615 = vmatprep.mubr.f32.mxu0 0.0
    %v2616 = vand.u32 %v84, 4294901760
    %2617 = vmatmul.mubr.f32.gmra.mxu0 %v2616
    %v2618 = vpop.f32.mrf.mxu0
    %v2619 = vadd.f32 %v2527, %v2618
    %v2620 = vpop.f32.mrf.mxu0
    %2621 = vdwg.mxu0
    %2622 = vmatprep.subr.mxu0 0.0
    %2623 = vmatpush1.msra.mxu0 0.0
    %2624 = vmatprep.subr.mxu0 0.0
    %2625 = vmatpush1.msra.mxu0 0.0
    %2626 = vmatprep.subr.mxu0 0.0
    %2627 = vmatpush1.msra.mxu0 0.0
    %2628 = vmatprep.subr.mxu0 0.0
    %2629 = vmatpush1.msra.mxu0 0.0
    %2630 = vmatprep.subr.mxu0 0.0
    %2631 = vmatpush1.msra.mxu0 0.0
    %2632 = vmatprep.subr.mxu0 0.0
    %2633 = vmatpush1.msra.mxu0 0.0
    %2634 = vmatprep.subr.mxu0 0.0
    %2635 = vmatpush1.msra.mxu0 0.0
    %2636 = vmatprep.subr.mxu0 0.0
    %2637 = vmatpush1.msra.mxu0 0.0
    %2638 = vmatprep.subr.mxu0 0.0
    %2639 = vmatpush1.msra.mxu0 0.0
    %2640 = vmatprep.subr.mxu0 0.0
    %2641 = vmatpush1.msra.mxu0 0.0
    %2642 = vmatprep.subr.mxu0 0.0
    %2643 = vmatpush1.msra.mxu0 0.0
    %2644 = vmatprep.subr.mxu0 0.0
    %2645 = vmatpush1.msra.mxu0 0.0
    %2646 = vmatprep.subr.mxu0 0.0
    %2647 = vmatpush1.msra.mxu0 0.0
    %2648 = vmatprep.subr.mxu0 0.0
    %2649 = vmatpush1.msra.mxu0 0.0
    %2650 = vmatprep.subr.mxu0 0.0
    %2651 = vmatpush1.msra.mxu0 0.0
    %2652 = vmatprep.subr.mxu0 0.0
    %v2653 = vand.u32 %v2136, 4294901760
    %2654 = vmatpush1.msra.mxu0 %v2653
    %2655 = vmatprep.subr.mxu0 0.0
    %2656 = vmatpush2.msra.mxu0 0.0
    %2657 = vmatprep.subr.mxu0 0.0
    %2658 = vmatpush2.msra.mxu0 0.0
    %2659 = vmatprep.subr.mxu0 0.0
    %2660 = vmatpush2.msra.mxu0 0.0
    %2661 = vmatprep.subr.mxu0 0.0
    %2662 = vmatpush2.msra.mxu0 0.0
    %2663 = vmatprep.subr.mxu0 0.0
    %2664 = vmatpush2.msra.mxu0 0.0
    %2665 = vmatprep.subr.mxu0 0.0
    %2666 = vmatpush2.msra.mxu0 0.0
    %2667 = vmatprep.subr.mxu0 0.0
    %2668 = vmatpush2.msra.mxu0 0.0
    %2669 = vmatprep.subr.mxu0 0.0
    %2670 = vmatpush2.msra.mxu0 0.0
    %2671 = vmatprep.subr.mxu0 0.0
    %2672 = vmatpush2.msra.mxu0 0.0
    %2673 = vmatprep.subr.mxu0 0.0
    %2674 = vmatpush2.msra.mxu0 0.0
    %2675 = vmatprep.subr.mxu0 0.0
    %2676 = vmatpush2.msra.mxu0 0.0
    %2677 = vmatprep.subr.mxu0 0.0
    %2678 = vmatpush2.msra.mxu0 0.0
    %2679 = vmatprep.subr.mxu0 0.0
    %2680 = vmatpush2.msra.mxu0 0.0
    %2681 = vmatprep.subr.mxu0 0.0
    %2682 = vmatpush2.msra.mxu0 0.0
    %2683 = vmatprep.subr.mxu0 0.0
    %2684 = vmatpush2.msra.mxu0 0.0
    %2685 = vmatprep.subr.mxu0 0.0
    %2686 = vmatpush2.msra.mxu0 0.0
    %2687 = vmatprep.mubr.f32.mxu0 0.0
    %v2688 = vand.u32 %v75, 4294901760
    %2689 = vmatmul.mubr.f32.gmra.mxu0 %v2688
    %v2690 = vpop.f32.mrf.mxu0
    %v2691 = vadd.f32 %v2601, %v2690
    %v2692 = vpop.f32.mrf.mxu0
    %2693 = vmatprep.mubr.f32.mxu0 0.0
    %v2694 = vand.u32 %v78, 4294901760
    %2695 = vmatmul.mubr.f32.gmra.mxu0 %v2694
    %v2696 = vpop.f32.mrf.mxu0
    %v2697 = vadd.f32 %v2607, %v2696
    %v2698 = vpop.f32.mrf.mxu0
    %2699 = vmatprep.mubr.f32.mxu0 0.0
    %v2700 = vand.u32 %v81, 4294901760
    %2701 = vmatmul.mubr.f32.gmra.mxu0 %v2700
    %v2702 = vpop.f32.mrf.mxu0
    %v2703 = vadd.f32 %v2613, %v2702
    %v2704 = vpop.f32.mrf.mxu0
    %2705 = vmatprep.mubr.f32.mxu0 0.0
    %v2706 = vand.u32 %v84, 4294901760
    %2707 = vmatmul.mubr.f32.gmra.mxu0 %v2706
    %v2708 = vpop.f32.mrf.mxu0
    %v2709 = vadd.f32 %v2619, %v2708
    %v2710 = vpop.f32.mrf.mxu0
    %2711 = vdwg.mxu0
    %v2712 = vadd.f32 %v2115, %v2691
    %v2713 = vadd.f32 %v2121, %v2697
    %v2714 = vadd.f32 %v2127, %v2703
    %v2715 = vadd.f32 %v2133, %v2709
    %v2716 = vlaneseq
    %v2717 = vshrl.u32 %v2716, 7
    %v2718 = vsub.s32 1, %v2717
    %v2719 = vrot.slane %v1543, %v2718
    %v2720 = vmul.f32 %v2712, %v2719
    %v2721 = vmul.f32 %v2713, %v2719
    %v2722 = vmul.f32 %v2714, %v2719
    %v2723 = vmul.f32 %v2715, %v2719
    %2724 = vadd.xlane.f32.xlu0 %v2720
    %v2725 = vpop.xlane.xlu0 %2724
    %2726 = vadd.xlane.f32.xlu0 %v2721
    %v2727 = vpop.xlane.xlu0 %2726
    %2728 = vadd.xlane.f32.xlu0 %v2722
    %v2729 = vpop.xlane.xlu0 %2728
    %2730 = vadd.xlane.f32.xlu0 %v2723
    %v2731 = vpop.xlane.xlu0 %2730
    %s2732 = sld [smem:[#allocation2]]
    %v2733 = vstv %s2732
    %v2734 = vadd.f32 %v2725, %v2733
    %v2735 = vadd.f32 %v2727, %v2733
    %v2736 = vadd.f32 %v2729, %v2733
    %v2737 = vadd.f32 %v2731, %v2733
    %v2739 = vrot.slane %v1543, 2
    %2741 = vmatprep.subr.mxu0 0.0
    %2742 = vmatpush1.xpose.msra.mxu0 0.0
    %2743 = vmatprep.subr.mxu0 0.0
    %2744 = vmatpush1.xpose.msra.mxu0 0.0
    %2745 = vmatprep.subr.mxu0 0.0
    %2746 = vmatpush1.xpose.msra.mxu0 0.0
    %2747 = vmatprep.subr.mxu0 0.0
    %2748 = vmatpush1.xpose.msra.mxu0 0.0
    %2749 = vmatprep.subr.mxu0 0.0
    %2750 = vmatpush1.xpose.msra.mxu0 0.0
    %2751 = vmatprep.subr.mxu0 0.0
    %2752 = vmatpush1.xpose.msra.mxu0 0.0
    %2753 = vmatprep.subr.mxu0 0.0
    %2754 = vmatpush1.xpose.msra.mxu0 0.0
    %2755 = vmatprep.subr.mxu0 0.0
    %2756 = vmatpush1.xpose.msra.mxu0 0.0
    %2757 = vmatprep.subr.mxu0 0.0
    %2758 = vmatpush1.xpose.msra.mxu0 0.0
    %2759 = vmatprep.subr.mxu0 0.0
    %2760 = vmatpush1.xpose.msra.mxu0 0.0
    %2761 = vmatprep.subr.mxu0 0.0
    %2762 = vmatpush1.xpose.msra.mxu0 0.0
    %2763 = vmatprep.subr.mxu0 0.0
    %2764 = vmatpush1.xpose.msra.mxu0 0.0
    %2765 = vmatprep.subr.mxu0 0.0
    %2766 = vmatpush1.xpose.msra.mxu0 %v2715
    %2767 = vmatprep.subr.mxu0 0.0
    %2768 = vmatpush1.xpose.msra.mxu0 %v2714
    %2769 = vmatprep.subr.mxu0 0.0
    %2770 = vmatpush1.xpose.msra.mxu0 %v2713
    %2771 = vmatprep.subr.mxu0 0.0
    %2772 = vmatpush1.xpose.msra.mxu0 %v2712
    %2773 = vmatprep.subr.mxu0 0.0
    %2774 = vmatpush2.xpose.msra.mxu0 0.0
    %2775 = vmatprep.subr.mxu0 0.0
    %2776 = vmatpush2.xpose.msra.mxu0 0.0
    %2777 = vmatprep.subr.mxu0 0.0
    %2778 = vmatpush2.xpose.msra.mxu0 0.0
    %2779 = vmatprep.subr.mxu0 0.0
    %2780 = vmatpush2.xpose.msra.mxu0 0.0
    %2781 = vmatprep.subr.mxu0 0.0
    %2782 = vmatpush2.xpose.msra.mxu0 0.0
    %2783 = vmatprep.subr.mxu0 0.0
    %2784 = vmatpush2.xpose.msra.mxu0 0.0
    %2785 = vmatprep.subr.mxu0 0.0
    %2786 = vmatpush2.xpose.msra.mxu0 0.0
    %2787 = vmatprep.subr.mxu0 0.0
    %2788 = vmatpush2.xpose.msra.mxu0 0.0
    %2789 = vmatprep.subr.mxu0 0.0
    %2790 = vmatpush2.xpose.msra.mxu0 0.0
    %2791 = vmatprep.subr.mxu0 0.0
    %2792 = vmatpush2.xpose.msra.mxu0 0.0
    %2793 = vmatprep.subr.mxu0 0.0
    %2794 = vmatpush2.xpose.msra.mxu0 0.0
    %2795 = vmatprep.subr.mxu0 0.0
    %2796 = vmatpush2.xpose.msra.mxu0 0.0
    %2797 = vmatprep.subr.mxu0 0.0
    %2798 = vmatpush2.xpose.msra.mxu0 0.0
    %2799 = vmatprep.subr.mxu0 0.0
    %2800 = vmatpush2.xpose.msra.mxu0 0.0
    %2801 = vmatprep.subr.mxu0 0.0
    %2802 = vmatpush2.xpose.msra.mxu0 0.0
    %2803 = vmatprep.subr.mxu0 0.0
    %2804 = vmatpush2.xpose.msra.mxu0 0.0
    %2805 = vmatprep.mubr.f32.mxu0 0.0
    %2806 = vmatmul.mubr.f32.gmra.mxu0 %v2739
    %v2807 = vpop.f32.mrf.mxu0
    %v2808 = vadd.f32 0.0, %v2807
    %v2809 = vpop.f32.mrf.mxu0
    %2810 = vdwg.mxu0
    %v2811 = vlaneseq
    %v2812 = vshrl.u32 %v2811, 7
    %v2813 = vsub.s32 0, %v2812
    %v2814 = vrot.slane %v2808, %v2813
    %v2815 = vadd.f32 %v2734, %v2814
    %v2816 = vadd.f32 %v2735, %v2814
    %v2817 = vadd.f32 %v2736, %v2814
    %v2818 = vadd.f32 %v2737, %v2814
    %vm2819 = vcmp.ge.f32.partialorder %v2815, 0.0
    %vm2820 = vcmp.ge.f32.partialorder %v2816, 0.0
    %vm2821 = vcmp.ge.f32.partialorder %v2817, 0.0
    %vm2822 = vcmp.ge.f32.partialorder %v2818, 0.0
    %v2823 = vmul.f32 %v2815, 0.01
    %v2824 = vmul.f32 %v2816, 0.01
    %v2825 = vmul.f32 %v2817, 0.01
    %v2826 = vmul.f32 %v2818, 0.01
    %v2827 = vsel %vm2819, %v2815, %v2823
    %v2828 = vsel %vm2820, %v2816, %v2824
    %v2829 = vsel %vm2821, %v2817, %v2825
    %v2830 = vsel %vm2822, %v2818, %v2826
    %v2831 = vld [vmem:[%s15] sm:$0xf]
    %s2832 = sld [smem:[#allocation3]]
    %v2833 = vstv %s2832
    %v2834 = vmul.f32 %v2833, %v2831
    %s2835 = sld [smem:[#allocation3 + $0x1]]
    %v2836 = vstv %s2835
    %v2837 = vmul.f32 %v2836, %v2831
    %v2839 = vrot.slane %v2837, 1
    %v2841 = vadd.f32 %v2834, %v2839
    %v2843 = vrot.slane %v2831, 3
    %v2845 = vadd.f32 %v2841, %v2843
    %v2846 = vpack.c.bf16 %v2713, %v2712
    %v2847 = vpack.c.bf16 %v2715, %v2714
    %v2848 = vld [vmem:[%s12] sm:$0xf]
    %v2849 = vld [vmem:[%s12 + $0x4] sm:$0xf]
    %v2850 = vld [vmem:[%s12 + $0x8] sm:$0xf]
    %v2851 = vld [vmem:[%s12 + $0xc] sm:$0xf]
    %v2852 = vld [vmem:[%s12 + $0x10] sm:$0xf]
    %v2853 = vld [vmem:[%s12 + $0x14] sm:$0xf]
    %v2854 = vld [vmem:[%s12 + $0x18] sm:$0xf]
    %v2855 = vld [vmem:[%s12 + $0x1c] sm:$0xf]
    %v2856 = vld [vmem:[%s12 + $0x20] sm:$0xf]
    %v2857 = vld [vmem:[%s12 + $0x24] sm:$0xf]
    %v2858 = vld [vmem:[%s12 + $0x28] sm:$0xf]
    %v2859 = vld [vmem:[%s12 + $0x2c] sm:$0xf]
    %v2860 = vld [vmem:[%s12 + $0x30] sm:$0xf]
    %v2861 = vld [vmem:[%s12 + $0x34] sm:$0xf]
    %v2862 = vld [vmem:[%s12 + $0x38] sm:$0xf]
    %v2863 = vld [vmem:[%s12 + $0x3c] sm:$0xf]
    %v2864 = vpack.c.bf16 %v2828, %v2827
    %v2865 = vpack.c.bf16 %v2830, %v2829
    %v2866 = vld [vmem:[%s13] sm:$0xf]
    %v2867 = vld [vmem:[%s13 + $0x4] sm:$0xf]
    %v2868 = vld [vmem:[%s13 + $0x8] sm:$0xf]
    %v2869 = vld [vmem:[%s13 + $0xc] sm:$0xf]
    %v2874 = vunpack.c.l.b16 %v2866
    %v2875 = vunpack.c.l.b16 %v2867
    %v2876 = vunpack.c.l.b16 %v2868
    %v2877 = vunpack.c.l.b16 %v2869
    %v2878 = vpack.c.b16 %v2875, %v2874
    %v2879 = vpack.c.b16 %v2877, %v2876
    %vm2882 = vcmask 261120
    %v2884 = vsel %vm2882, %v2864, 0
    %v2887 = vsel %vm2882, %v2865, 0
    %2889 = vmatprep.subr.bf16.mxu0 0
    %2890 = vmatpush1.bf16.msra.mxu0 0
    %2891 = vmatprep.subr.bf16.mxu0 0
    %2892 = vmatpush1.bf16.msra.mxu0 0
    %2893 = vmatprep.subr.bf16.mxu0 0
    %2894 = vmatpush1.bf16.msra.mxu0 0
    %2895 = vmatprep.subr.bf16.mxu0 0
    %2896 = vmatpush1.bf16.msra.mxu0 0
    %2897 = vmatprep.subr.bf16.mxu0 0
    %2898 = vmatpush1.bf16.msra.mxu0 0
    %2899 = vmatprep.subr.bf16.mxu0 0
    %2900 = vmatpush1.bf16.msra.mxu0 0
    %2901 = vmatprep.subr.bf16.mxu0 0
    %2902 = vmatpush1.bf16.msra.mxu0 %v2879
    %2903 = vmatprep.subr.bf16.mxu0 0
    %2904 = vmatpush1.bf16.msra.mxu0 %v2878
    %2905 = vmatprep.subr.bf16.mxu0 0
    %2906 = vmatpush2.bf16.msra.mxu0 0
    %2907 = vmatprep.subr.bf16.mxu0 0
    %2908 = vmatpush2.bf16.msra.mxu0 0
    %2909 = vmatprep.subr.bf16.mxu0 0
    %2910 = vmatpush2.bf16.msra.mxu0 0
    %2911 = vmatprep.subr.bf16.mxu0 0
    %2912 = vmatpush2.bf16.msra.mxu0 0
    %2913 = vmatprep.subr.bf16.mxu0 0
    %2914 = vmatpush2.bf16.msra.mxu0 0
    %2915 = vmatprep.subr.bf16.mxu0 0
    %2916 = vmatpush2.bf16.msra.mxu0 0
    %2917 = vmatprep.subr.bf16.mxu0 0
    %2918 = vmatpush2.bf16.msra.mxu0 0
    %2919 = vmatprep.subr.bf16.mxu0 0
    %2920 = vmatpush2.bf16.msra.mxu0 0
    %2921 = vmatprep.mubr.bf16.mxu0 0
    %2922 = vmatmul.mubr.bf16.gmra.mxu0 %v2884
    %v2923 = vpop.f32.mrf.mxu0
    %v2924 = vadd.f32 0.0, %v2923
    %v2925 = vpop.f32.mrf.mxu0
    %v2926 = vpop.f32.mrf.mxu0
    %v2927 = vadd.f32 0.0, %v2926
    %v2928 = vpop.f32.mrf.mxu0
    %2929 = vmatprep.mubr.bf16.mxu0 0
    %2930 = vmatmul.mubr.bf16.gmra.mxu0 %v2887
    %v2931 = vpop.f32.mrf.mxu0
    %v2932 = vadd.f32 0.0, %v2931
    %v2933 = vpop.f32.mrf.mxu0
    %v2934 = vpop.f32.mrf.mxu0
    %v2935 = vadd.f32 0.0, %v2934
    %v2936 = vpop.f32.mrf.mxu0
    %2937 = vdwg.mxu0
    %v2954 = vunpack.c.l.b16 %v2848
    %v2955 = vunpack.c.l.b16 %v2849
    %v2956 = vunpack.c.l.b16 %v2850
    %v2957 = vunpack.c.l.b16 %v2851
    %v2958 = vunpack.c.l.b16 %v2852
    %v2959 = vunpack.c.l.b16 %v2853
    %v2960 = vunpack.c.l.b16 %v2854
    %v2961 = vunpack.c.l.b16 %v2855
    %v2962 = vunpack.c.l.b16 %v2856
    %v2963 = vunpack.c.l.b16 %v2857
    %v2964 = vunpack.c.l.b16 %v2858
    %v2965 = vunpack.c.l.b16 %v2859
    %v2966 = vunpack.c.l.b16 %v2860
    %v2967 = vunpack.c.l.b16 %v2861
    %v2968 = vunpack.c.l.b16 %v2862
    %v2969 = vunpack.c.l.b16 %v2863
    %v2970 = vpack.c.b16 %v2955, %v2954
    %v2971 = vpack.c.b16 %v2957, %v2956
    %v2972 = vpack.c.b16 %v2959, %v2958
    %v2973 = vpack.c.b16 %v2961, %v2960
    %v2974 = vpack.c.b16 %v2963, %v2962
    %v2975 = vpack.c.b16 %v2965, %v2964
    %v2976 = vpack.c.b16 %v2967, %v2966
    %v2977 = vpack.c.b16 %v2969, %v2968
    %2986 = vmatprep.subr.bf16.mxu0 0
    %2987 = vmatpush1.bf16.msra.mxu0 %v2977
    %2988 = vmatprep.subr.bf16.mxu0 0
    %2989 = vmatpush1.bf16.msra.mxu0 %v2976
    %2990 = vmatprep.subr.bf16.mxu0 0
    %2991 = vmatpush1.bf16.msra.mxu0 %v2975
    %2992 = vmatprep.subr.bf16.mxu0 0
    %2993 = vmatpush1.bf16.msra.mxu0 %v2974
    %2994 = vmatprep.subr.bf16.mxu0 0
    %2995 = vmatpush1.bf16.msra.mxu0 %v2973
    %2996 = vmatprep.subr.bf16.mxu0 0
    %2997 = vmatpush1.bf16.msra.mxu0 %v2972
    %2998 = vmatprep.subr.bf16.mxu0 0
    %2999 = vmatpush1.bf16.msra.mxu0 %v2971
    %3000 = vmatprep.subr.bf16.mxu0 0
    %3001 = vmatpush1.bf16.msra.mxu0 %v2970
    %3002 = vmatprep.subr.bf16.mxu0 0
    %3003 = vmatpush2.bf16.msra.mxu0 0
    %3004 = vmatprep.subr.bf16.mxu0 0
    %3005 = vmatpush2.bf16.msra.mxu0 0
    %3006 = vmatprep.subr.bf16.mxu0 0
    %3007 = vmatpush2.bf16.msra.mxu0 0
    %3008 = vmatprep.subr.bf16.mxu0 0
    %3009 = vmatpush2.bf16.msra.mxu0 0
    %3010 = vmatprep.subr.bf16.mxu0 0
    %3011 = vmatpush2.bf16.msra.mxu0 0
    %3012 = vmatprep.subr.bf16.mxu0 0
    %3013 = vmatpush2.bf16.msra.mxu0 0
    %3014 = vmatprep.subr.bf16.mxu0 0
    %3015 = vmatpush2.bf16.msra.mxu0 0
    %3016 = vmatprep.subr.bf16.mxu0 0
    %3017 = vmatpush2.bf16.msra.mxu0 0
    %3018 = vmatprep.mubr.bf16.mxu0 0
    %3019 = vmatmul.mubr.bf16.gmra.mxu0 %v2846
    %v3020 = vpop.f32.mrf.mxu0
    %v3021 = vadd.f32 %v2924, %v3020
    %v3022 = vpop.f32.mrf.mxu0
    %v3023 = vpop.f32.mrf.mxu0
    %v3024 = vadd.f32 %v2927, %v3023
    %v3025 = vpop.f32.mrf.mxu0
    %3026 = vmatprep.mubr.bf16.mxu0 0
    %3027 = vmatmul.mubr.bf16.gmra.mxu0 %v2847
    %v3028 = vpop.f32.mrf.mxu0
    %v3029 = vadd.f32 %v2932, %v3028
    %v3030 = vpop.f32.mrf.mxu0
    %v3031 = vpop.f32.mrf.mxu0
    %v3032 = vadd.f32 %v2935, %v3031
    %v3033 = vpop.f32.mrf.mxu0
    %3034 = vdwg.mxu0
    %v3035 = vld [vmem:[%s11] sm:$0xf]
    %v3036 = vld [vmem:[%s11 + $0x4] sm:$0xf]
    %v3037 = vld [vmem:[%s11 + $0x8] sm:$0xf]
    %v3038 = vld [vmem:[%s11 + $0xc] sm:$0xf]
    %v3039 = vld [vmem:[%s14] sm:$0xf]
    %v3040 = vld [vmem:[%s14 + $0x4] sm:$0xf]
    %v3041 = vld [vmem:[%s14 + $0x8] sm:$0xf]
    %v3042 = vld [vmem:[%s14 + $0xc] sm:$0xf]
    %v3043 = vld [vmem:[%s14 + $0x10] sm:$0xf]
    %v3044 = vld [vmem:[%s14 + $0x14] sm:$0xf]
    %v3045 = vld [vmem:[%s14 + $0x18] sm:$0xf]
    %v3046 = vld [vmem:[%s14 + $0x1c] sm:$0xf]
    %v3047 = vld [vmem:[%s14 + $0x20] sm:$0xf]
    %v3048 = vld [vmem:[%s14 + $0x24] sm:$0xf]
    %v3049 = vld [vmem:[%s14 + $0x28] sm:$0xf]
    %v3050 = vld [vmem:[%s14 + $0x2c] sm:$0xf]
    %v3051 = vld [vmem:[%s14 + $0x30] sm:$0xf]
    %v3052 = vld [vmem:[%s14 + $0x34] sm:$0xf]
    %v3053 = vld [vmem:[%s14 + $0x38] sm:$0xf]
    %v3054 = vld [vmem:[%s14 + $0x3c] sm:$0xf]
    %v3059 = vunpack.c.l.b16 %v3035
    %v3060 = vunpack.c.l.b16 %v3036
    %v3061 = vunpack.c.l.b16 %v3037
    %v3062 = vunpack.c.l.b16 %v3038
    %v3063 = vpack.c.b16 %v3060, %v3059
    %v3064 = vpack.c.b16 %v3062, %v3061
    %v3083 = vunpack.c.l.b16 %v3039
    %v3084 = vunpack.c.l.b16 %v3040
    %v3085 = vunpack.c.l.b16 %v3041
    %v3086 = vunpack.c.l.b16 %v3042
    %v3087 = vunpack.c.l.b16 %v3043
    %v3088 = vunpack.c.l.b16 %v3044
    %v3089 = vunpack.c.l.b16 %v3045
    %v3090 = vunpack.c.l.b16 %v3046
    %v3091 = vunpack.c.l.b16 %v3047
    %v3092 = vunpack.c.l.b16 %v3048
    %v3093 = vunpack.c.l.b16 %v3049
    %v3094 = vunpack.c.l.b16 %v3050
    %v3095 = vunpack.c.l.b16 %v3051
    %v3096 = vunpack.c.l.b16 %v3052
    %v3097 = vunpack.c.l.b16 %v3053
    %v3098 = vunpack.c.l.b16 %v3054
    %v3099 = vpack.c.b16 %v3084, %v3083
    %v3100 = vpack.c.b16 %v3086, %v3085
    %v3101 = vpack.c.b16 %v3088, %v3087
    %v3102 = vpack.c.b16 %v3090, %v3089
    %v3103 = vpack.c.b16 %v3092, %v3091
    %v3104 = vpack.c.b16 %v3094, %v3093
    %v3105 = vpack.c.b16 %v3096, %v3095
    %v3106 = vpack.c.b16 %v3098, %v3097
    %3115 = vmatprep.subr.bf16.mxu0 0
    %3116 = vmatpush1.bf16.msra.mxu0 %v3106
    %3117 = vmatprep.subr.bf16.mxu0 0
    %3118 = vmatpush1.bf16.msra.mxu0 %v3105
    %3119 = vmatprep.subr.bf16.mxu0 0
    %3120 = vmatpush1.bf16.msra.mxu0 %v3104
    %3121 = vmatprep.subr.bf16.mxu0 0
    %3122 = vmatpush1.bf16.msra.mxu0 %v3103
    %3123 = vmatprep.subr.bf16.mxu0 0
    %3124 = vmatpush1.bf16.msra.mxu0 %v3102
    %3125 = vmatprep.subr.bf16.mxu0 0
    %3126 = vmatpush1.bf16.msra.mxu0 %v3101
    %3127 = vmatprep.subr.bf16.mxu0 0
    %3128 = vmatpush1.bf16.msra.mxu0 %v3100
    %3129 = vmatprep.subr.bf16.mxu0 0
    %3130 = vmatpush1.bf16.msra.mxu0 %v3099
    %3131 = vmatprep.subr.bf16.mxu0 0
    %3132 = vmatpush2.bf16.msra.mxu0 0
    %3133 = vmatprep.subr.bf16.mxu0 0
    %3134 = vmatpush2.bf16.msra.mxu0 0
    %3135 = vmatprep.subr.bf16.mxu0 0
    %3136 = vmatpush2.bf16.msra.mxu0 0
    %3137 = vmatprep.subr.bf16.mxu0 0
    %3138 = vmatpush2.bf16.msra.mxu0 0
    %3139 = vmatprep.subr.bf16.mxu0 0
    %3140 = vmatpush2.bf16.msra.mxu0 0
    %3141 = vmatprep.subr.bf16.mxu0 0
    %3142 = vmatpush2.bf16.msra.mxu0 0
    %3143 = vmatprep.subr.bf16.mxu0 0
    %3144 = vmatpush2.bf16.msra.mxu0 0
    %3145 = vmatprep.subr.bf16.mxu0 0
    %3146 = vmatpush2.bf16.msra.mxu0 0
    %3147 = vmatprep.mubr.bf16.mxu0 0
    %3148 = vmatmul.mubr.bf16.gmra.mxu0 %v3063
    %v3149 = vpop.f32.mrf.mxu0
    %v3150 = vadd.f32 0.0, %v3149
    %v3151 = vpop.f32.mrf.mxu0
    %v3152 = vpop.f32.mrf.mxu0
    %v3153 = vadd.f32 0.0, %v3152
    %v3154 = vpop.f32.mrf.mxu0
    %3155 = vmatprep.mubr.bf16.mxu0 0
    %3156 = vmatmul.mubr.bf16.gmra.mxu0 %v3064
    %v3157 = vpop.f32.mrf.mxu0
    %v3158 = vadd.f32 0.0, %v3157
    %v3159 = vpop.f32.mrf.mxu0
    %v3160 = vpop.f32.mrf.mxu0
    %v3161 = vadd.f32 0.0, %v3160
    %v3162 = vpop.f32.mrf.mxu0
    %3163 = vdwg.mxu0
    %v3164 = vadd.f32 %v3021, %v3150
    %v3165 = vadd.f32 %v3024, %v3153
    %v3166 = vadd.f32 %v3029, %v3158
    %v3167 = vadd.f32 %v3032, %v3161
    %3169 = vset.pattern.permute.xlu0 0
    %3170 = vperm.xlu0 %3169, %v661
    %v3171 = vpop.permute.xlu0 %3170
    %3174 = vset.pattern.permute.xlu0 0
    %3175 = vperm.xlu0 %3174, %v662
    %v3176 = vpop.permute.xlu0 %3175
    %3179 = vset.pattern.permute.xlu0 0
    %3180 = vperm.xlu0 %3179, %v663
    %v3181 = vpop.permute.xlu0 %3180
    %3184 = vset.pattern.permute.xlu0 0
    %3185 = vperm.xlu0 %3184, %v664
    %v3186 = vpop.permute.xlu0 %3185
    %v3188 = vlaneseq
    %v3189 = vshrl.u32 %v3188, 7
    %v3190 = vsub.s32 2, %v3189
    %v3191 = vrot.slane %v2831, %v3190
    %v3192 = vmul.f32 %v3171, %v3191
    %v3193 = vmul.f32 %v3176, %v3191
    %v3194 = vmul.f32 %v3181, %v3191
    %v3195 = vmul.f32 %v3186, %v3191
    %v3196 = vadd.f32 %v3164, %v3192
    %v3197 = vadd.f32 %v3165, %v3193
    %v3198 = vadd.f32 %v3166, %v3194
    %v3199 = vadd.f32 %v3167, %v3195
    %v3200 = vlaneseq
    %v3201 = vshrl.u32 %v3200, 7
    %v3202 = vsub.s32 0, %v3201
    %v3203 = vrot.slane %v2845, %v3202
    %v3204 = vadd.f32 %v3196, %v3203
    %v3205 = vadd.f32 %v3197, %v3203
    %v3206 = vadd.f32 %v3198, %v3203
    %v3207 = vadd.f32 %v3199, %v3203
    %3208 = vmax.xlane.f32.xlu0 %v3204
    %v3209 = vpop.xlane.xlu0 %3208
    %3210 = vmax.xlane.f32.xlu0 %v3205
    %v3211 = vpop.xlane.xlu0 %3210
    %3212 = vmax.xlane.f32.xlu0 %v3206
    %v3213 = vpop.xlane.xlu0 %3212
    %3214 = vmax.xlane.f32.xlu0 %v3207
    %v3215 = vpop.xlane.xlu0 %3214
    %v3216 = vsub.f32 %v3204, %v3209
    %v3217 = vsub.f32 %v3205, %v3211
    %v3218 = vsub.f32 %v3206, %v3213
    %v3219 = vsub.f32 %v3207, %v3215
    %v3220 = vmul.f32 %v3216, 1.442695
    %v3221 = vpow.pop %v3220
    %v3222 = vmul.f32 %v3217, 1.442695
    %v3223 = vpow.pop %v3222
    %v3224 = vmul.f32 %v3218, 1.442695
    %v3225 = vpow.pop %v3224
    %v3226 = vmul.f32 %v3219, 1.442695
    %v3227 = vpow.pop %v3226
    %3228 = vadd.xlane.f32.xlu0 %v3221
    %v3229 = vpop.xlane.xlu0 %3228
    %3230 = vadd.xlane.f32.xlu0 %v3223
    %v3231 = vpop.xlane.xlu0 %3230
    %3232 = vadd.xlane.f32.xlu0 %v3225
    %v3233 = vpop.xlane.xlu0 %3232
    %3234 = vadd.xlane.f32.xlu0 %v3227
    %v3235 = vpop.xlane.xlu0 %3234
    %v3236 = vlog2.pop %v3229
    %v3237 = vmul.f32 %v3236, 0.6931472
    %v3238 = vlog2.pop %v3231
    %v3239 = vmul.f32 %v3238, 0.6931472
    %v3240 = vlog2.pop %v3233
    %v3241 = vmul.f32 %v3240, 0.6931472
    %v3242 = vlog2.pop %v3235
    %v3243 = vmul.f32 %v3242, 0.6931472
    %v3244 = vsub.f32 %v3216, %v3237
    %v3245 = vsub.f32 %v3217, %v3239
    %v3246 = vsub.f32 %v3218, %v3241
    %v3247 = vsub.f32 %v3219, %v3243
    %3248 = vst [vmem:[%s16] sm:$0xff] %v3244
    %3249 = vst [vmem:[%s16 + $0x8] sm:$0xff] %v3245
    %3250 = vst [vmem:[%s16 + $0x10] sm:$0xff] %v3246
    %3251 = vst [vmem:[%s16 + $0x18] sm:$0xff] %v3247
    // Predicated region
    $region70: #{egl_forward.1} parent=1 // pred_check
      _
    $region71: #{egl_forward.1} parent=1 // pred_check_branch
      %3253 = sbr.rel (0) target = $region73
    $region72: #{egl_forward.1} parent=1 // pred_region
      _
    $region73: #{egl_forward.1} parent=1 // pred_fallthru
      _
    // Predicated region
    $region74: #{egl_forward.1} parent=1 // pred_check
      _
    $region75: #{egl_forward.1} parent=1 // pred_check_branch
      %3255 = sbr.rel (0) target = $region77
    $region76: #{egl_forward.1} parent=1 // pred_region
      _
    $region77: #{egl_forward.1} parent=1 // pred_fallthru
      _
    %3256 = vsyncpa [#allocation4], 1

</llo_original>
